<compile_context>
chip_gen: v7x
topology: tpu7x:2x2x1
jax: 0.10.0
libtpu: 0.0.40
codegen_flags: <defaults>
</compile_context>

<pallas_src>
import jax
import jax.numpy as jnp
import numpy as np
from jax.experimental import pallas as pl
from jax.experimental.pallas import tpu as pltpu

H = 128  # nn.LSTM(hidden_size=128)


# ------------------------------ LSTM cell math -------------------------------
def _sigmoid_via_tanh(x):
    # sigma(x) = 0.5 * (tanh(x/2) + 1): one EUP op for the whole gate slab.
    return 0.5 * jnp.tanh(0.5 * x) + 0.5


def _lstm_cell_ifog(pre, c_prev):
    """Kernel-side cell. pre: [B, 4H] gates in (i, f, o, g) column order."""
    sig = _sigmoid_via_tanh(pre[:, :3 * H])       # one contiguous sigmoid slab
    i = sig[:, 0 * H:1 * H]
    f = sig[:, 1 * H:2 * H]
    o = sig[:, 2 * H:3 * H]
    g = jnp.tanh(pre[:, 3 * H:4 * H])
    c = f * c_prev + i * g
    h = o * jnp.tanh(c)
    return h, c


def _lstm_cell_ifgo(pre, c_prev):
    """Reference cell. pre: [B, 4H] gates in PyTorch (i, f, g, o) order."""
    i = jax.nn.sigmoid(pre[:, 0 * H:1 * H])
    f = jax.nn.sigmoid(pre[:, 1 * H:2 * H])
    g = jnp.tanh(pre[:, 2 * H:3 * H])
    o = jax.nn.sigmoid(pre[:, 3 * H:4 * H])
    c = f * c_prev + i * g
    h = o * jnp.tanh(c)
    return h, c


# --------------------------- Fused WGAN kernel --------------------------------
# Generator: fc(noise) -> repeat T -> LSTM(128->128) -> per-t Linear(128->1)
# Discriminator: LSTM(1->128) over fake -> per-t Linear(128->1)
# Both recurrences are interleaved with a 1-step skew; the hidden matmuls are
# fused into one block-diagonal K=2H matmul per iteration.
def wgan_kernel(noise_ref,
                g_wfc_ref, g_bfc_ref, g_wih_ref, g_bg_ref,
                g_wout_ref, g_bout_ref,
                whh_fused_ref,
                d_wih_ref, d_bg_ref, d_wout_ref, d_bout_ref,
                fake_ref, score_ref):
    T, B = fake_ref.shape
    H4 = 4 * H

    # Loop-invariant loads (weights stay resident across the unrolled loop).
    whh_f = whh_fused_ref[...]               # [2H, 8H] block_diag(g_whh, d_whh)
    g_wout_all = g_wout_ref[...]             # [T, H]
    g_bout_all = g_bout_ref[...]             # [T, 1]
    d_wih_all = d_wih_ref[...]               # [1, 4H]
    d_bg_all = d_bg_ref[...]                 # [1, 4H]

    # Generator front-end; LSTM input is the same at every timestep
    # (unsqueeze+repeat), so the input projection is loop-invariant.
    z = jnp.dot(noise_ref[...], g_wfc_ref[...],
                preferred_element_type=jnp.float32) + g_bfc_ref[...]   # [B, H]
    xw_g = jnp.dot(z, g_wih_ref[...],
                   preferred_element_type=jnp.float32) + g_bg_ref[...]  # [B, 4H]

    h_g = jnp.zeros((B, H), jnp.float32)     # loop-carried in vregs
    c_g = jnp.zeros((B, H), jnp.float32)
    h_d = jnp.zeros((B, H), jnp.float32)
    c_d = jnp.zeros((B, H), jnp.float32)
    y_prev = None                            # fake_{k-1}, shape [B, 1]
    hs_g = []
    hs_d = []

    # Iteration k runs gen step k (k < T) and disc step k-1 (k >= 1); the two
    # halves inside one iteration are data-independent (skewed interleave).
    for k in range(T + 1):
        if k == 0:
            pre_g = xw_g                     # h_g(-1) == 0 => recurrence term 0
        else:
            hh = jnp.concatenate([h_g, h_d], axis=-1)                  # [B, 2H]
            rec = jnp.dot(hh, whh_f, preferred_element_type=jnp.float32)  # [B, 8H]
            if k < T:
                pre_g = xw_g + rec[:, :H4]
            # Disc step k-1: input is fake_{k-1}; the cross block of whh_f is 0.
            pre_d = y_prev * d_wih_all + d_bg_all + rec[:, H4:]
            h_d, c_d = _lstm_cell_ifog(pre_d, c_d)
            hs_d.append(h_d)
        if k < T:
            h_g, c_g = _lstm_cell_ifog(pre_g, c_g)
            hs_g.append(h_g)
            # Per-step generator head feeds the next disc step.
            y_prev = (jnp.sum(h_g * g_wout_all[k], axis=-1, keepdims=True)
                      + g_bout_all[k])                                  # [B, 1]

    # Batched output heads in [T, B] layout (leading-axis stacking is layout-free).
    hs_g_tbh = jnp.stack(hs_g, axis=0)                                  # [T, B, H]
    fake_ref[...] = (jnp.sum(hs_g_tbh * g_wout_all[:, None, :], axis=-1)
                     + g_bout_all)                                      # [T, B]
    hs_d_tbh = jnp.stack(hs_d, axis=0)                                  # [T, B, H]
    score_ref[...] = (jnp.sum(hs_d_tbh * d_wout_ref[...][:, None, :], axis=-1)
                      + d_bout_ref[...])                                # [T, B]


# --------------------------------- Wrapper ------------------------------------
def _vmem_spec():
    return pl.BlockSpec(memory_space=pltpu.MemorySpace.VMEM)


def wgan_forward(noise, gen_kp, disc_kp, time_steps):
    """Fused generator+discriminator forward. Params must be kernel-layout
    (use prepare_kernel_params)."""
    B, nd = noise.shape
    T = time_steps

    # Advisory cost estimate for XLA's scheduler around this tiny custom call.
    flops = int(2 * B * nd * H                      # generator fc
                + 2 * B * H * 4 * H                 # generator input projection
                + 2 * T * B * (2 * H) * (8 * H)     # fused recurrence matmuls
                + 4 * T * B * 4 * H                 # disc input proj + gate adds
                + 4 * T * B * H)                    # two output heads
    transcendentals = int(2 * T * B * 5 * H)
    param_elems = (nd * H + H + H * 4 * H + 4 * H + T * H + T
                   + (2 * H) * (8 * H)
                   + 4 * H + 4 * H + T * H + T)
    bytes_accessed = int(4 * (B * nd + param_elems + 2 * T * B))

    fake_tb, score_tb = pl.pallas_call(
        wgan_kernel,
        out_shape=(jax.ShapeDtypeStruct((T, B), jnp.float32),
                   jax.ShapeDtypeStruct((T, B), jnp.float32)),
        in_specs=[_vmem_spec()] * 12,
        out_specs=(_vmem_spec(), _vmem_spec()),
        cost_estimate=pl.CostEstimate(flops=flops,
                                      transcendentals=transcendentals,
                                      bytes_accessed=bytes_accessed),
    )(noise,
      gen_kp["wfc"], gen_kp["bfc"], gen_kp["wih"], gen_kp["bg"],
      gen_kp["wout"], gen_kp["bout"],
      gen_kp["whh_fused"],
      disc_kp["wih"], disc_kp["bg"], disc_kp["wout"], disc_kp["bout"])

    # Kernel emits [T, B]; tiny transpose + reshape to PyTorch's [B, T, 1].
    fake = jnp.transpose(fake_tb)[:, :, None]
    score = jnp.transpose(score_tb)[:, :, None]
    return fake, score


# --------------------------- Deterministic params -----------------------------
def _uniform(key, shape, bound):
    return jax.random.uniform(key, shape, jnp.float32, -bound, bound)


def init_params(key, noise_dim, time_steps):
    """Params in PyTorch layout: LSTM gate columns ordered (i, f, g, o)."""
    ks = jax.random.split(key, 14)
    lb = 1.0 / np.sqrt(H)  # PyTorch LSTM / Linear(128,1) init bound

    gen = {
        "wfc":  _uniform(ks[0], (noise_dim, H), 1.0 / np.sqrt(noise_dim)),
        "bfc":  _uniform(ks[1], (1, H), 1.0 / np.sqrt(noise_dim)),
        "wih":  _uniform(ks[2], (H, 4 * H), lb),       # transposed weight_ih_l0
        "whh":  _uniform(ks[3], (H, 4 * H), lb),       # transposed weight_hh_l0
        "bg":   _uniform(ks[4], (1, 4 * H), lb) + _uniform(ks[5], (1, 4 * H), lb),
        "wout": _uniform(ks[6], (time_steps, H), lb),  # stacked T x Linear(128,1)
        "bout": _uniform(ks[7], (time_steps,), lb),
    }
    disc = {
        "wih":  _uniform(ks[8], (1, 4 * H), lb),       # input_size == 1
        "whh":  _uniform(ks[9], (H, 4 * H), lb),
        "bg":   _uniform(ks[10], (1, 4 * H), lb) + _uniform(ks[11], (1, 4 * H), lb),
        "wout": _uniform(ks[12], (time_steps, H), lb),
        "bout": _uniform(ks[13], (time_steps,), lb),
    }
    return gen, disc


def _permute_gates_ifgo_to_ifog(w):
    """Reorder gate columns [i | f | g | o] -> [i | f | o | g] (last axis 4H)."""
    return jnp.concatenate([w[:, :2 * H], w[:, 3 * H:4 * H], w[:, 2 * H:3 * H]],
                           axis=-1)


def prepare_kernel_params(gen, disc):
    """One-time kernel-layout prep: gate-column permutation, block-diagonal
    fused W_hh, and column-vector output biases."""
    T = gen["wout"].shape[0]
    g_wih = _permute_gates_ifgo_to_ifog(gen["wih"])
    g_whh = _permute_gates_ifgo_to_ifog(gen["whh"])
    g_bg = _permute_gates_ifgo_to_ifog(gen["bg"])
    d_wih = _permute_gates_ifgo_to_ifog(disc["wih"])
    d_whh = _permute_gates_ifgo_to_ifog(disc["whh"])
    d_bg = _permute_gates_ifgo_to_ifog(disc["bg"])

    # block_diag(g_whh, d_whh): [2H, 8H]; off-diagonal blocks are zero.
    whh_fused = jnp.zeros((2 * H, 8 * H), jnp.float32)
    whh_fused = whh_fused.at[:H, :4 * H].set(g_whh)
    whh_fused = whh_fused.at[H:, 4 * H:].set(d_whh)

    gen_kp = {"wfc": gen["wfc"], "bfc": gen["bfc"], "wih": g_wih, "bg": g_bg,
              "wout": gen["wout"], "bout": gen["bout"].reshape(T, 1),
              "whh_fused": whh_fused}
    disc_kp = {"wih": d_wih, "bg": d_bg,
               "wout": disc["wout"], "bout": disc["bout"].reshape(T, 1)}
    return gen_kp, disc_kp


# ------------------------------ Pure-JAX reference ----------------------------
def _lstm_ref(x_seq, wih, whh, bg):
    B, T, _ = x_seq.shape
    h = jnp.zeros((B, H), jnp.float32)
    c = jnp.zeros((B, H), jnp.float32)
    hs = []
    for t in range(T):
        pre = x_seq[:, t, :] @ wih + h @ whh + bg
        h, c = _lstm_cell_ifgo(pre, c)
        hs.append(h)
    return jnp.stack(hs, axis=1)  # [B, T, H]


def _heads_ref(hs, wout, bout):
    return (jnp.einsum("btd,td->bt", hs, wout) + bout[None, :])[:, :, None]


def wgan_forward_ref(noise, gp, dp, T):
    z = noise @ gp["wfc"] + gp["bfc"]
    x_seq = jnp.repeat(z[:, None, :], T, axis=1)
    hs = _lstm_ref(x_seq, gp["wih"], gp["whh"], gp["bg"])
    fake = _heads_ref(hs, gp["wout"], gp["bout"])
    hs_d = _lstm_ref(fake, dp["wih"], dp["whh"], dp["bg"])
    score = _heads_ref(hs_d, dp["wout"], dp["bout"])
    return fake, score


# ------------------------------------ Main -------------------------------------
if __name__ == "__main__":
    B, NOISE_DIM, TIME_STEPS = 8, 32, 8

    key = jax.random.PRNGKey(0)
    k_params, k_noise = jax.random.split(key)
    gen_params, disc_params = init_params(k_params, NOISE_DIM, TIME_STEPS)
    noise = jax.random.normal(k_noise, (B, NOISE_DIM), jnp.float32)

    # One-time kernel-layout param preparation.
    gen_kp, disc_kp = prepare_kernel_params(gen_params, disc_params)

    fake, score = wgan_forward(noise, gen_kp, disc_kp, TIME_STEPS)
    jax.block_until_ready((fake, score))

    fake_ref, score_ref = wgan_forward_ref(noise, gen_params, disc_params, TIME_STEPS)
    np.testing.assert_allclose(np.asarray(fake), np.asarray(fake_ref),
                               rtol=1e-3, atol=1e-3)
    np.testing.assert_allclose(np.asarray(score), np.asarray(score_ref),
                               rtol=1e-3, atol=1e-3)

    assert fake.shape == (B, TIME_STEPS, 1) and score.shape == (B, TIME_STEPS, 1)
    print("KERNEL_OK")
</pallas_src>

<mosaic_0001>
module attributes {stable_mosaic.version = 11 : i64} {
  func.func @wgan_kernel(%arg0: memref<8x32xf32, #tpu.memory_space<vmem>>, %arg1: memref<32x128xf32, #tpu.memory_space<vmem>>, %arg2: memref<1x128xf32, #tpu.memory_space<vmem>>, %arg3: memref<128x512xf32, #tpu.memory_space<vmem>>, %arg4: memref<1x512xf32, #tpu.memory_space<vmem>>, %arg5: memref<8x128xf32, #tpu.memory_space<vmem>>, %arg6: memref<8x1xf32, #tpu.memory_space<vmem>>, %arg7: memref<256x1024xf32, #tpu.memory_space<vmem>>, %arg8: memref<1x512xf32, #tpu.memory_space<vmem>>, %arg9: memref<1x512xf32, #tpu.memory_space<vmem>>, %arg10: memref<8x128xf32, #tpu.memory_space<vmem>>, %arg11: memref<8x1xf32, #tpu.memory_space<vmem>>, %arg12: memref<8x8xf32, #tpu.memory_space<vmem>>, %arg13: memref<8x8xf32, #tpu.memory_space<vmem>>) attributes {dimension_semantics = [], scalar_prefetch = 0 : i64, scratch_operands = 0 : i64, tpu.core_type = #tpu.core_type<tc>} {
    %c0 = arith.constant 0 : index
    %c0_0 = arith.constant 0 : index
    %0 = vector.load %arg7[%c0, %c0_0] : memref<256x1024xf32, #tpu.memory_space<vmem>>, vector<256x1024xf32>
    %c0_1 = arith.constant 0 : index
    %c0_2 = arith.constant 0 : index
    %1 = vector.load %arg5[%c0_1, %c0_2] : memref<8x128xf32, #tpu.memory_space<vmem>>, vector<8x128xf32>
    %c0_3 = arith.constant 0 : index
    %c0_4 = arith.constant 0 : index
    %2 = vector.load %arg6[%c0_3, %c0_4] : memref<8x1xf32, #tpu.memory_space<vmem>>, vector<8x1xf32>
    %c0_5 = arith.constant 0 : index
    %c0_6 = arith.constant 0 : index
    %3 = vector.load %arg8[%c0_5, %c0_6] : memref<1x512xf32, #tpu.memory_space<vmem>>, vector<1x512xf32>
    %c0_7 = arith.constant 0 : index
    %c0_8 = arith.constant 0 : index
    %4 = vector.load %arg9[%c0_7, %c0_8] : memref<1x512xf32, #tpu.memory_space<vmem>>, vector<1x512xf32>
    %c0_9 = arith.constant 0 : index
    %c0_10 = arith.constant 0 : index
    %5 = vector.load %arg0[%c0_9, %c0_10] : memref<8x32xf32, #tpu.memory_space<vmem>>, vector<8x32xf32>
    %c0_11 = arith.constant 0 : index
    %c0_12 = arith.constant 0 : index
    %6 = vector.load %arg1[%c0_11, %c0_12] : memref<32x128xf32, #tpu.memory_space<vmem>>, vector<32x128xf32>
    %cst = arith.constant dense<0.000000e+00> : vector<8x128xf32>
    %7 = tpu.matmul %5, %6, %cst {dimension_numbers = #tpu.dot_dimension_numbers<[1], [0], [0], [1], [0, 0, 1, 1], [], []>} : vector<8x32xf32>, vector<32x128xf32>, vector<8x128xf32> -> vector<8x128xf32>
    %c0_13 = arith.constant 0 : index
    %c0_14 = arith.constant 0 : index
    %8 = vector.load %arg2[%c0_13, %c0_14] : memref<1x128xf32, #tpu.memory_space<vmem>>, vector<1x128xf32>
    %9 = vector.broadcast %8 : vector<1x128xf32> to vector<8x128xf32>
    %10 = arith.addf %7, %9 : vector<8x128xf32>
    %c0_15 = arith.constant 0 : index
    %c0_16 = arith.constant 0 : index
    %11 = vector.load %arg3[%c0_15, %c0_16] : memref<128x512xf32, #tpu.memory_space<vmem>>, vector<128x512xf32>
    %cst_17 = arith.constant dense<0.000000e+00> : vector<8x512xf32>
    %12 = tpu.matmul %10, %11, %cst_17 {dimension_numbers = #tpu.dot_dimension_numbers<[1], [0], [0], [1], [0, 0, 1, 1], [], []>} : vector<8x128xf32>, vector<128x512xf32>, vector<8x512xf32> -> vector<8x512xf32>
    %c0_18 = arith.constant 0 : index
    %c0_19 = arith.constant 0 : index
    %13 = vector.load %arg4[%c0_18, %c0_19] : memref<1x512xf32, #tpu.memory_space<vmem>>, vector<1x512xf32>
    %14 = vector.broadcast %13 : vector<1x512xf32> to vector<8x512xf32>
    %15 = arith.addf %12, %14 : vector<8x512xf32>
    %cst_20 = arith.constant 0.000000e+00 : f32
    %16 = vector.broadcast %cst_20 : f32 to vector<8x128xf32>
    %cst_21 = arith.constant 0.000000e+00 : f32
    %17 = vector.broadcast %cst_21 : f32 to vector<8x128xf32>
    %cst_22 = arith.constant 0.000000e+00 : f32
    %18 = vector.broadcast %cst_22 : f32 to vector<8x128xf32>
    %19 = vector.extract_strided_slice %15 {offsets = [0, 0], sizes = [8, 384], strides = [1, 1]} : vector<8x512xf32> to vector<8x384xf32>
    %cst_23 = arith.constant 5.000000e-01 : f32
    %20 = vector.broadcast %cst_23 : f32 to vector<8x384xf32>
    %21 = arith.mulf %20, %19 : vector<8x384xf32>
    %22 = math.tanh %21 : vector<8x384xf32>
    %cst_24 = arith.constant 5.000000e-01 : f32
    %23 = vector.broadcast %cst_24 : f32 to vector<8x384xf32>
    %24 = arith.mulf %23, %22 : vector<8x384xf32>
    %cst_25 = arith.constant 5.000000e-01 : f32
    %25 = vector.broadcast %cst_25 : f32 to vector<8x384xf32>
    %26 = arith.addf %24, %25 : vector<8x384xf32>
    %27 = vector.extract_strided_slice %26 {offsets = [0, 0], sizes = [8, 128], strides = [1, 1]} : vector<8x384xf32> to vector<8x128xf32>
    %28 = vector.extract_strided_slice %26 {offsets = [0, 128], sizes = [8, 128], strides = [1, 1]} : vector<8x384xf32> to vector<8x128xf32>
    %29 = vector.extract_strided_slice %26 {offsets = [0, 256], sizes = [8, 128], strides = [1, 1]} : vector<8x384xf32> to vector<8x128xf32>
    %30 = vector.extract_strided_slice %15 {offsets = [0, 384], sizes = [8, 128], strides = [1, 1]} : vector<8x512xf32> to vector<8x128xf32>
    %31 = math.tanh %30 : vector<8x128xf32>
    %32 = arith.mulf %28, %16 : vector<8x128xf32>
    %33 = arith.mulf %27, %31 : vector<8x128xf32>
    %34 = arith.addf %32, %33 : vector<8x128xf32>
    %35 = math.tanh %34 : vector<8x128xf32>
    %36 = arith.mulf %29, %35 : vector<8x128xf32>
    %37 = vector.extract_strided_slice %1 {offsets = [0, 0], sizes = [1, 128], strides = [1, 1]} : vector<8x128xf32> to vector<1x128xf32>
    %38 = vector.shape_cast %37 : vector<1x128xf32> to vector<128xf32>
    %39 = vector.shape_cast %38 : vector<128xf32> to vector<1x128xf32>
    %40 = vector.broadcast %39 : vector<1x128xf32> to vector<8x128xf32>
    %41 = arith.mulf %36, %40 : vector<8x128xf32>
    %cst_26 = arith.constant dense<0.000000e+00> : vector<8xf32>
    %42 = vector.multi_reduction <add>, %41, %cst_26 [1] : vector<8x128xf32> to vector<8xf32>
    %43 = vector.shape_cast %42 : vector<8xf32> to vector<8x1xf32>
    %44 = vector.extract_strided_slice %2 {offsets = [0, 0], sizes = [1, 1], strides = [1, 1]} : vector<8x1xf32> to vector<1x1xf32>
    %45 = vector.shape_cast %44 : vector<1x1xf32> to vector<1xf32>
    %46 = vector.shape_cast %45 : vector<1xf32> to vector<1x1xf32>
    %47 = vector.broadcast %46 : vector<1x1xf32> to vector<8x1xf32>
    %48 = arith.addf %43, %47 : vector<8x1xf32>
    %49 = tpu.concatenate %36, %17 in 1 : vector<8x128xf32>, vector<8x128xf32> -> vector<8x256xf32>
    %cst_27 = arith.constant dense<0.000000e+00> : vector<8x1024xf32>
    %50 = tpu.matmul %49, %0, %cst_27 {dimension_numbers = #tpu.dot_dimension_numbers<[1], [0], [0], [1], [0, 0, 1, 1], [], []>} : vector<8x256xf32>, vector<256x1024xf32>, vector<8x1024xf32> -> vector<8x1024xf32>
    %51 = vector.extract_strided_slice %50 {offsets = [0, 0], sizes = [8, 512], strides = [1, 1]} : vector<8x1024xf32> to vector<8x512xf32>
    %52 = arith.addf %15, %51 : vector<8x512xf32>
    %53 = vector.broadcast %48 : vector<8x1xf32> to vector<8x512xf32>
    %54 = vector.broadcast %3 : vector<1x512xf32> to vector<8x512xf32>
    %55 = arith.mulf %53, %54 : vector<8x512xf32>
    %56 = vector.broadcast %4 : vector<1x512xf32> to vector<8x512xf32>
    %57 = arith.addf %55, %56 : vector<8x512xf32>
    %58 = vector.extract_strided_slice %50 {offsets = [0, 512], sizes = [8, 512], strides = [1, 1]} : vector<8x1024xf32> to vector<8x512xf32>
    %59 = arith.addf %57, %58 : vector<8x512xf32>
    %60 = vector.extract_strided_slice %59 {offsets = [0, 0], sizes = [8, 384], strides = [1, 1]} : vector<8x512xf32> to vector<8x384xf32>
    %cst_28 = arith.constant 5.000000e-01 : f32
    %61 = vector.broadcast %cst_28 : f32 to vector<8x384xf32>
    %62 = arith.mulf %61, %60 : vector<8x384xf32>
    %63 = math.tanh %62 : vector<8x384xf32>
    %cst_29 = arith.constant 5.000000e-01 : f32
    %64 = vector.broadcast %cst_29 : f32 to vector<8x384xf32>
    %65 = arith.mulf %64, %63 : vector<8x384xf32>
    %cst_30 = arith.constant 5.000000e-01 : f32
    %66 = vector.broadcast %cst_30 : f32 to vector<8x384xf32>
    %67 = arith.addf %65, %66 : vector<8x384xf32>
    %68 = vector.extract_strided_slice %67 {offsets = [0, 0], sizes = [8, 128], strides = [1, 1]} : vector<8x384xf32> to vector<8x128xf32>
    %69 = vector.extract_strided_slice %67 {offsets = [0, 128], sizes = [8, 128], strides = [1, 1]} : vector<8x384xf32> to vector<8x128xf32>
    %70 = vector.extract_strided_slice %67 {offsets = [0, 256], sizes = [8, 128], strides = [1, 1]} : vector<8x384xf32> to vector<8x128xf32>
    %71 = vector.extract_strided_slice %59 {offsets = [0, 384], sizes = [8, 128], strides = [1, 1]} : vector<8x512xf32> to vector<8x128xf32>
    %72 = math.tanh %71 : vector<8x128xf32>
    %73 = arith.mulf %69, %18 : vector<8x128xf32>
    %74 = arith.mulf %68, %72 : vector<8x128xf32>
    %75 = arith.addf %73, %74 : vector<8x128xf32>
    %76 = math.tanh %75 : vector<8x128xf32>
    %77 = arith.mulf %70, %76 : vector<8x128xf32>
    %78 = vector.extract_strided_slice %52 {offsets = [0, 0], sizes = [8, 384], strides = [1, 1]} : vector<8x512xf32> to vector<8x384xf32>
    %cst_31 = arith.constant 5.000000e-01 : f32
    %79 = vector.broadcast %cst_31 : f32 to vector<8x384xf32>
    %80 = arith.mulf %79, %78 : vector<8x384xf32>
    %81 = math.tanh %80 : vector<8x384xf32>
    %cst_32 = arith.constant 5.000000e-01 : f32
    %82 = vector.broadcast %cst_32 : f32 to vector<8x384xf32>
    %83 = arith.mulf %82, %81 : vector<8x384xf32>
    %cst_33 = arith.constant 5.000000e-01 : f32
    %84 = vector.broadcast %cst_33 : f32 to vector<8x384xf32>
    %85 = arith.addf %83, %84 : vector<8x384xf32>
    %86 = vector.extract_strided_slice %85 {offsets = [0, 0], sizes = [8, 128], strides = [1, 1]} : vector<8x384xf32> to vector<8x128xf32>
    %87 = vector.extract_strided_slice %85 {offsets = [0, 128], sizes = [8, 128], strides = [1, 1]} : vector<8x384xf32> to vector<8x128xf32>
    %88 = vector.extract_strided_slice %85 {offsets = [0, 256], sizes = [8, 128], strides = [1, 1]} : vector<8x384xf32> to vector<8x128xf32>
    %89 = vector.extract_strided_slice %52 {offsets = [0, 384], sizes = [8, 128], strides = [1, 1]} : vector<8x512xf32> to vector<8x128xf32>
    %90 = math.tanh %89 : vector<8x128xf32>
    %91 = arith.mulf %87, %34 : vector<8x128xf32>
    %92 = arith.mulf %86, %90 : vector<8x128xf32>
    %93 = arith.addf %91, %92 : vector<8x128xf32>
    %94 = math.tanh %93 : vector<8x128xf32>
    %95 = arith.mulf %88, %94 : vector<8x128xf32>
    %96 = vector.extract_strided_slice %1 {offsets = [1, 0], sizes = [1, 128], strides = [1, 1]} : vector<8x128xf32> to vector<1x128xf32>
    %97 = vector.shape_cast %96 : vector<1x128xf32> to vector<128xf32>
    %98 = vector.shape_cast %97 : vector<128xf32> to vector<1x128xf32>
    %99 = vector.broadcast %98 : vector<1x128xf32> to vector<8x128xf32>
    %100 = arith.mulf %95, %99 : vector<8x128xf32>
    %cst_34 = arith.constant dense<0.000000e+00> : vector<8xf32>
    %101 = vector.multi_reduction <add>, %100, %cst_34 [1] : vector<8x128xf32> to vector<8xf32>
    %102 = vector.shape_cast %101 : vector<8xf32> to vector<8x1xf32>
    %103 = vector.extract_strided_slice %2 {offsets = [1, 0], sizes = [1, 1], strides = [1, 1]} : vector<8x1xf32> to vector<1x1xf32>
    %104 = vector.shape_cast %103 : vector<1x1xf32> to vector<1xf32>
    %105 = vector.shape_cast %104 : vector<1xf32> to vector<1x1xf32>
    %106 = vector.broadcast %105 : vector<1x1xf32> to vector<8x1xf32>
    %107 = arith.addf %102, %106 : vector<8x1xf32>
    %108 = tpu.concatenate %95, %77 in 1 : vector<8x128xf32>, vector<8x128xf32> -> vector<8x256xf32>
    %cst_35 = arith.constant dense<0.000000e+00> : vector<8x1024xf32>
    %109 = tpu.matmul %108, %0, %cst_35 {dimension_numbers = #tpu.dot_dimension_numbers<[1], [0], [0], [1], [0, 0, 1, 1], [], []>} : vector<8x256xf32>, vector<256x1024xf32>, vector<8x1024xf32> -> vector<8x1024xf32>
    %110 = vector.extract_strided_slice %109 {offsets = [0, 0], sizes = [8, 512], strides = [1, 1]} : vector<8x1024xf32> to vector<8x512xf32>
    %111 = arith.addf %15, %110 : vector<8x512xf32>
    %112 = vector.broadcast %107 : vector<8x1xf32> to vector<8x512xf32>
    %113 = vector.broadcast %3 : vector<1x512xf32> to vector<8x512xf32>
    %114 = arith.mulf %112, %113 : vector<8x512xf32>
    %115 = vector.broadcast %4 : vector<1x512xf32> to vector<8x512xf32>
    %116 = arith.addf %114, %115 : vector<8x512xf32>
    %117 = vector.extract_strided_slice %109 {offsets = [0, 512], sizes = [8, 512], strides = [1, 1]} : vector<8x1024xf32> to vector<8x512xf32>
    %118 = arith.addf %116, %117 : vector<8x512xf32>
    %119 = vector.extract_strided_slice %118 {offsets = [0, 0], sizes = [8, 384], strides = [1, 1]} : vector<8x512xf32> to vector<8x384xf32>
    %cst_36 = arith.constant 5.000000e-01 : f32
    %120 = vector.broadcast %cst_36 : f32 to vector<8x384xf32>
    %121 = arith.mulf %120, %119 : vector<8x384xf32>
    %122 = math.tanh %121 : vector<8x384xf32>
    %cst_37 = arith.constant 5.000000e-01 : f32
    %123 = vector.broadcast %cst_37 : f32 to vector<8x384xf32>
    %124 = arith.mulf %123, %122 : vector<8x384xf32>
    %cst_38 = arith.constant 5.000000e-01 : f32
    %125 = vector.broadcast %cst_38 : f32 to vector<8x384xf32>
    %126 = arith.addf %124, %125 : vector<8x384xf32>
    %127 = vector.extract_strided_slice %126 {offsets = [0, 0], sizes = [8, 128], strides = [1, 1]} : vector<8x384xf32> to vector<8x128xf32>
    %128 = vector.extract_strided_slice %126 {offsets = [0, 128], sizes = [8, 128], strides = [1, 1]} : vector<8x384xf32> to vector<8x128xf32>
    %129 = vector.extract_strided_slice %126 {offsets = [0, 256], sizes = [8, 128], strides = [1, 1]} : vector<8x384xf32> to vector<8x128xf32>
    %130 = vector.extract_strided_slice %118 {offsets = [0, 384], sizes = [8, 128], strides = [1, 1]} : vector<8x512xf32> to vector<8x128xf32>
    %131 = math.tanh %130 : vector<8x128xf32>
    %132 = arith.mulf %128, %75 : vector<8x128xf32>
    %133 = arith.mulf %127, %131 : vector<8x128xf32>
    %134 = arith.addf %132, %133 : vector<8x128xf32>
    %135 = math.tanh %134 : vector<8x128xf32>
    %136 = arith.mulf %129, %135 : vector<8x128xf32>
    %137 = vector.extract_strided_slice %111 {offsets = [0, 0], sizes = [8, 384], strides = [1, 1]} : vector<8x512xf32> to vector<8x384xf32>
    %cst_39 = arith.constant 5.000000e-01 : f32
    %138 = vector.broadcast %cst_39 : f32 to vector<8x384xf32>
    %139 = arith.mulf %138, %137 : vector<8x384xf32>
    %140 = math.tanh %139 : vector<8x384xf32>
    %cst_40 = arith.constant 5.000000e-01 : f32
    %141 = vector.broadcast %cst_40 : f32 to vector<8x384xf32>
    %142 = arith.mulf %141, %140 : vector<8x384xf32>
    %cst_41 = arith.constant 5.000000e-01 : f32
    %143 = vector.broadcast %cst_41 : f32 to vector<8x384xf32>
    %144 = arith.addf %142, %143 : vector<8x384xf32>
    %145 = vector.extract_strided_slice %144 {offsets = [0, 0], sizes = [8, 128], strides = [1, 1]} : vector<8x384xf32> to vector<8x128xf32>
    %146 = vector.extract_strided_slice %144 {offsets = [0, 128], sizes = [8, 128], strides = [1, 1]} : vector<8x384xf32> to vector<8x128xf32>
    %147 = vector.extract_strided_slice %144 {offsets = [0, 256], sizes = [8, 128], strides = [1, 1]} : vector<8x384xf32> to vector<8x128xf32>
    %148 = vector.extract_strided_slice %111 {offsets = [0, 384], sizes = [8, 128], strides = [1, 1]} : vector<8x512xf32> to vector<8x128xf32>
    %149 = math.tanh %148 : vector<8x128xf32>
    %150 = arith.mulf %146, %93 : vector<8x128xf32>
    %151 = arith.mulf %145, %149 : vector<8x128xf32>
    %152 = arith.addf %150, %151 : vector<8x128xf32>
    %153 = math.tanh %152 : vector<8x128xf32>
    %154 = arith.mulf %147, %153 : vector<8x128xf32>
    %155 = vector.extract_strided_slice %1 {offsets = [2, 0], sizes = [1, 128], strides = [1, 1]} : vector<8x128xf32> to vector<1x128xf32>
    %156 = vector.shape_cast %155 : vector<1x128xf32> to vector<128xf32>
    %157 = vector.shape_cast %156 : vector<128xf32> to vector<1x128xf32>
    %158 = vector.broadcast %157 : vector<1x128xf32> to vector<8x128xf32>
    %159 = arith.mulf %154, %158 : vector<8x128xf32>
    %cst_42 = arith.constant dense<0.000000e+00> : vector<8xf32>
    %160 = vector.multi_reduction <add>, %159, %cst_42 [1] : vector<8x128xf32> to vector<8xf32>
    %161 = vector.shape_cast %160 : vector<8xf32> to vector<8x1xf32>
    %162 = vector.extract_strided_slice %2 {offsets = [2, 0], sizes = [1, 1], strides = [1, 1]} : vector<8x1xf32> to vector<1x1xf32>
    %163 = vector.shape_cast %162 : vector<1x1xf32> to vector<1xf32>
    %164 = vector.shape_cast %163 : vector<1xf32> to vector<1x1xf32>
    %165 = vector.broadcast %164 : vector<1x1xf32> to vector<8x1xf32>
    %166 = arith.addf %161, %165 : vector<8x1xf32>
    %167 = tpu.concatenate %154, %136 in 1 : vector<8x128xf32>, vector<8x128xf32> -> vector<8x256xf32>
    %cst_43 = arith.constant dense<0.000000e+00> : vector<8x1024xf32>
    %168 = tpu.matmul %167, %0, %cst_43 {dimension_numbers = #tpu.dot_dimension_numbers<[1], [0], [0], [1], [0, 0, 1, 1], [], []>} : vector<8x256xf32>, vector<256x1024xf32>, vector<8x1024xf32> -> vector<8x1024xf32>
    %169 = vector.extract_strided_slice %168 {offsets = [0, 0], sizes = [8, 512], strides = [1, 1]} : vector<8x1024xf32> to vector<8x512xf32>
    %170 = arith.addf %15, %169 : vector<8x512xf32>
    %171 = vector.broadcast %166 : vector<8x1xf32> to vector<8x512xf32>
    %172 = vector.broadcast %3 : vector<1x512xf32> to vector<8x512xf32>
    %173 = arith.mulf %171, %172 : vector<8x512xf32>
    %174 = vector.broadcast %4 : vector<1x512xf32> to vector<8x512xf32>
    %175 = arith.addf %173, %174 : vector<8x512xf32>
    %176 = vector.extract_strided_slice %168 {offsets = [0, 512], sizes = [8, 512], strides = [1, 1]} : vector<8x1024xf32> to vector<8x512xf32>
    %177 = arith.addf %175, %176 : vector<8x512xf32>
    %178 = vector.extract_strided_slice %177 {offsets = [0, 0], sizes = [8, 384], strides = [1, 1]} : vector<8x512xf32> to vector<8x384xf32>
    %cst_44 = arith.constant 5.000000e-01 : f32
    %179 = vector.broadcast %cst_44 : f32 to vector<8x384xf32>
    %180 = arith.mulf %179, %178 : vector<8x384xf32>
    %181 = math.tanh %180 : vector<8x384xf32>
    %cst_45 = arith.constant 5.000000e-01 : f32
    %182 = vector.broadcast %cst_45 : f32 to vector<8x384xf32>
    %183 = arith.mulf %182, %181 : vector<8x384xf32>
    %cst_46 = arith.constant 5.000000e-01 : f32
    %184 = vector.broadcast %cst_46 : f32 to vector<8x384xf32>
    %185 = arith.addf %183, %184 : vector<8x384xf32>
    %186 = vector.extract_strided_slice %185 {offsets = [0, 0], sizes = [8, 128], strides = [1, 1]} : vector<8x384xf32> to vector<8x128xf32>
    %187 = vector.extract_strided_slice %185 {offsets = [0, 128], sizes = [8, 128], strides = [1, 1]} : vector<8x384xf32> to vector<8x128xf32>
    %188 = vector.extract_strided_slice %185 {offsets = [0, 256], sizes = [8, 128], strides = [1, 1]} : vector<8x384xf32> to vector<8x128xf32>
    %189 = vector.extract_strided_slice %177 {offsets = [0, 384], sizes = [8, 128], strides = [1, 1]} : vector<8x512xf32> to vector<8x128xf32>
    %190 = math.tanh %189 : vector<8x128xf32>
    %191 = arith.mulf %187, %134 : vector<8x128xf32>
    %192 = arith.mulf %186, %190 : vector<8x128xf32>
    %193 = arith.addf %191, %192 : vector<8x128xf32>
    %194 = math.tanh %193 : vector<8x128xf32>
    %195 = arith.mulf %188, %194 : vector<8x128xf32>
    %196 = vector.extract_strided_slice %170 {offsets = [0, 0], sizes = [8, 384], strides = [1, 1]} : vector<8x512xf32> to vector<8x384xf32>
    %cst_47 = arith.constant 5.000000e-01 : f32
    %197 = vector.broadcast %cst_47 : f32 to vector<8x384xf32>
    %198 = arith.mulf %197, %196 : vector<8x384xf32>
    %199 = math.tanh %198 : vector<8x384xf32>
    %cst_48 = arith.constant 5.000000e-01 : f32
    %200 = vector.broadcast %cst_48 : f32 to vector<8x384xf32>
    %201 = arith.mulf %200, %199 : vector<8x384xf32>
    %cst_49 = arith.constant 5.000000e-01 : f32
    %202 = vector.broadcast %cst_49 : f32 to vector<8x384xf32>
    %203 = arith.addf %201, %202 : vector<8x384xf32>
    %204 = vector.extract_strided_slice %203 {offsets = [0, 0], sizes = [8, 128], strides = [1, 1]} : vector<8x384xf32> to vector<8x128xf32>
    %205 = vector.extract_strided_slice %203 {offsets = [0, 128], sizes = [8, 128], strides = [1, 1]} : vector<8x384xf32> to vector<8x128xf32>
    %206 = vector.extract_strided_slice %203 {offsets = [0, 256], sizes = [8, 128], strides = [1, 1]} : vector<8x384xf32> to vector<8x128xf32>
    %207 = vector.extract_strided_slice %170 {offsets = [0, 384], sizes = [8, 128], strides = [1, 1]} : vector<8x512xf32> to vector<8x128xf32>
    %208 = math.tanh %207 : vector<8x128xf32>
    %209 = arith.mulf %205, %152 : vector<8x128xf32>
    %210 = arith.mulf %204, %208 : vector<8x128xf32>
    %211 = arith.addf %209, %210 : vector<8x128xf32>
    %212 = math.tanh %211 : vector<8x128xf32>
    %213 = arith.mulf %206, %212 : vector<8x128xf32>
    %214 = vector.extract_strided_slice %1 {offsets = [3, 0], sizes = [1, 128], strides = [1, 1]} : vector<8x128xf32> to vector<1x128xf32>
    %215 = vector.shape_cast %214 : vector<1x128xf32> to vector<128xf32>
    %216 = vector.shape_cast %215 : vector<128xf32> to vector<1x128xf32>
    %217 = vector.broadcast %216 : vector<1x128xf32> to vector<8x128xf32>
    %218 = arith.mulf %213, %217 : vector<8x128xf32>
    %cst_50 = arith.constant dense<0.000000e+00> : vector<8xf32>
    %219 = vector.multi_reduction <add>, %218, %cst_50 [1] : vector<8x128xf32> to vector<8xf32>
    %220 = vector.shape_cast %219 : vector<8xf32> to vector<8x1xf32>
    %221 = vector.extract_strided_slice %2 {offsets = [3, 0], sizes = [1, 1], strides = [1, 1]} : vector<8x1xf32> to vector<1x1xf32>
    %222 = vector.shape_cast %221 : vector<1x1xf32> to vector<1xf32>
    %223 = vector.shape_cast %222 : vector<1xf32> to vector<1x1xf32>
    %224 = vector.broadcast %223 : vector<1x1xf32> to vector<8x1xf32>
    %225 = arith.addf %220, %224 : vector<8x1xf32>
    %226 = tpu.concatenate %213, %195 in 1 : vector<8x128xf32>, vector<8x128xf32> -> vector<8x256xf32>
    %cst_51 = arith.constant dense<0.000000e+00> : vector<8x1024xf32>
    %227 = tpu.matmul %226, %0, %cst_51 {dimension_numbers = #tpu.dot_dimension_numbers<[1], [0], [0], [1], [0, 0, 1, 1], [], []>} : vector<8x256xf32>, vector<256x1024xf32>, vector<8x1024xf32> -> vector<8x1024xf32>
    %228 = vector.extract_strided_slice %227 {offsets = [0, 0], sizes = [8, 512], strides = [1, 1]} : vector<8x1024xf32> to vector<8x512xf32>
    %229 = arith.addf %15, %228 : vector<8x512xf32>
    %230 = vector.broadcast %225 : vector<8x1xf32> to vector<8x512xf32>
    %231 = vector.broadcast %3 : vector<1x512xf32> to vector<8x512xf32>
    %232 = arith.mulf %230, %231 : vector<8x512xf32>
    %233 = vector.broadcast %4 : vector<1x512xf32> to vector<8x512xf32>
    %234 = arith.addf %232, %233 : vector<8x512xf32>
    %235 = vector.extract_strided_slice %227 {offsets = [0, 512], sizes = [8, 512], strides = [1, 1]} : vector<8x1024xf32> to vector<8x512xf32>
    %236 = arith.addf %234, %235 : vector<8x512xf32>
    %237 = vector.extract_strided_slice %236 {offsets = [0, 0], sizes = [8, 384], strides = [1, 1]} : vector<8x512xf32> to vector<8x384xf32>
    %cst_52 = arith.constant 5.000000e-01 : f32
    %238 = vector.broadcast %cst_52 : f32 to vector<8x384xf32>
    %239 = arith.mulf %238, %237 : vector<8x384xf32>
    %240 = math.tanh %239 : vector<8x384xf32>
    %cst_53 = arith.constant 5.000000e-01 : f32
    %241 = vector.broadcast %cst_53 : f32 to vector<8x384xf32>
    %242 = arith.mulf %241, %240 : vector<8x384xf32>
    %cst_54 = arith.constant 5.000000e-01 : f32
    %243 = vector.broadcast %cst_54 : f32 to vector<8x384xf32>
    %244 = arith.addf %242, %243 : vector<8x384xf32>
    %245 = vector.extract_strided_slice %244 {offsets = [0, 0], sizes = [8, 128], strides = [1, 1]} : vector<8x384xf32> to vector<8x128xf32>
    %246 = vector.extract_strided_slice %244 {offsets = [0, 128], sizes = [8, 128], strides = [1, 1]} : vector<8x384xf32> to vector<8x128xf32>
    %247 = vector.extract_strided_slice %244 {offsets = [0, 256], sizes = [8, 128], strides = [1, 1]} : vector<8x384xf32> to vector<8x128xf32>
    %248 = vector.extract_strided_slice %236 {offsets = [0, 384], sizes = [8, 128], strides = [1, 1]} : vector<8x512xf32> to vector<8x128xf32>
    %249 = math.tanh %248 : vector<8x128xf32>
    %250 = arith.mulf %246, %193 : vector<8x128xf32>
    %251 = arith.mulf %245, %249 : vector<8x128xf32>
    %252 = arith.addf %250, %251 : vector<8x128xf32>
    %253 = math.tanh %252 : vector<8x128xf32>
    %254 = arith.mulf %247, %253 : vector<8x128xf32>
    %255 = vector.extract_strided_slice %229 {offsets = [0, 0], sizes = [8, 384], strides = [1, 1]} : vector<8x512xf32> to vector<8x384xf32>
    %cst_55 = arith.constant 5.000000e-01 : f32
    %256 = vector.broadcast %cst_55 : f32 to vector<8x384xf32>
    %257 = arith.mulf %256, %255 : vector<8x384xf32>
    %258 = math.tanh %257 : vector<8x384xf32>
    %cst_56 = arith.constant 5.000000e-01 : f32
    %259 = vector.broadcast %cst_56 : f32 to vector<8x384xf32>
    %260 = arith.mulf %259, %258 : vector<8x384xf32>
    %cst_57 = arith.constant 5.000000e-01 : f32
    %261 = vector.broadcast %cst_57 : f32 to vector<8x384xf32>
    %262 = arith.addf %260, %261 : vector<8x384xf32>
    %263 = vector.extract_strided_slice %262 {offsets = [0, 0], sizes = [8, 128], strides = [1, 1]} : vector<8x384xf32> to vector<8x128xf32>
    %264 = vector.extract_strided_slice %262 {offsets = [0, 128], sizes = [8, 128], strides = [1, 1]} : vector<8x384xf32> to vector<8x128xf32>
    %265 = vector.extract_strided_slice %262 {offsets = [0, 256], sizes = [8, 128], strides = [1, 1]} : vector<8x384xf32> to vector<8x128xf32>
    %266 = vector.extract_strided_slice %229 {offsets = [0, 384], sizes = [8, 128], strides = [1, 1]} : vector<8x512xf32> to vector<8x128xf32>
    %267 = math.tanh %266 : vector<8x128xf32>
    %268 = arith.mulf %264, %211 : vector<8x128xf32>
    %269 = arith.mulf %263, %267 : vector<8x128xf32>
    %270 = arith.addf %268, %269 : vector<8x128xf32>
    %271 = math.tanh %270 : vector<8x128xf32>
    %272 = arith.mulf %265, %271 : vector<8x128xf32>
    %273 = vector.extract_strided_slice %1 {offsets = [4, 0], sizes = [1, 128], strides = [1, 1]} : vector<8x128xf32> to vector<1x128xf32>
    %274 = vector.shape_cast %273 : vector<1x128xf32> to vector<128xf32>
    %275 = vector.shape_cast %274 : vector<128xf32> to vector<1x128xf32>
    %276 = vector.broadcast %275 : vector<1x128xf32> to vector<8x128xf32>
    %277 = arith.mulf %272, %276 : vector<8x128xf32>
    %cst_58 = arith.constant dense<0.000000e+00> : vector<8xf32>
    %278 = vector.multi_reduction <add>, %277, %cst_58 [1] : vector<8x128xf32> to vector<8xf32>
    %279 = vector.shape_cast %278 : vector<8xf32> to vector<8x1xf32>
    %280 = vector.extract_strided_slice %2 {offsets = [4, 0], sizes = [1, 1], strides = [1, 1]} : vector<8x1xf32> to vector<1x1xf32>
    %281 = vector.shape_cast %280 : vector<1x1xf32> to vector<1xf32>
    %282 = vector.shape_cast %281 : vector<1xf32> to vector<1x1xf32>
    %283 = vector.broadcast %282 : vector<1x1xf32> to vector<8x1xf32>
    %284 = arith.addf %279, %283 : vector<8x1xf32>
    %285 = tpu.concatenate %272, %254 in 1 : vector<8x128xf32>, vector<8x128xf32> -> vector<8x256xf32>
    %cst_59 = arith.constant dense<0.000000e+00> : vector<8x1024xf32>
    %286 = tpu.matmul %285, %0, %cst_59 {dimension_numbers = #tpu.dot_dimension_numbers<[1], [0], [0], [1], [0, 0, 1, 1], [], []>} : vector<8x256xf32>, vector<256x1024xf32>, vector<8x1024xf32> -> vector<8x1024xf32>
    %287 = vector.extract_strided_slice %286 {offsets = [0, 0], sizes = [8, 512], strides = [1, 1]} : vector<8x1024xf32> to vector<8x512xf32>
    %288 = arith.addf %15, %287 : vector<8x512xf32>
    %289 = vector.broadcast %284 : vector<8x1xf32> to vector<8x512xf32>
    %290 = vector.broadcast %3 : vector<1x512xf32> to vector<8x512xf32>
    %291 = arith.mulf %289, %290 : vector<8x512xf32>
    %292 = vector.broadcast %4 : vector<1x512xf32> to vector<8x512xf32>
    %293 = arith.addf %291, %292 : vector<8x512xf32>
    %294 = vector.extract_strided_slice %286 {offsets = [0, 512], sizes = [8, 512], strides = [1, 1]} : vector<8x1024xf32> to vector<8x512xf32>
    %295 = arith.addf %293, %294 : vector<8x512xf32>
    %296 = vector.extract_strided_slice %295 {offsets = [0, 0], sizes = [8, 384], strides = [1, 1]} : vector<8x512xf32> to vector<8x384xf32>
    %cst_60 = arith.constant 5.000000e-01 : f32
    %297 = vector.broadcast %cst_60 : f32 to vector<8x384xf32>
    %298 = arith.mulf %297, %296 : vector<8x384xf32>
    %299 = math.tanh %298 : vector<8x384xf32>
    %cst_61 = arith.constant 5.000000e-01 : f32
    %300 = vector.broadcast %cst_61 : f32 to vector<8x384xf32>
    %301 = arith.mulf %300, %299 : vector<8x384xf32>
    %cst_62 = arith.constant 5.000000e-01 : f32
    %302 = vector.broadcast %cst_62 : f32 to vector<8x384xf32>
    %303 = arith.addf %301, %302 : vector<8x384xf32>
    %304 = vector.extract_strided_slice %303 {offsets = [0, 0], sizes = [8, 128], strides = [1, 1]} : vector<8x384xf32> to vector<8x128xf32>
    %305 = vector.extract_strided_slice %303 {offsets = [0, 128], sizes = [8, 128], strides = [1, 1]} : vector<8x384xf32> to vector<8x128xf32>
    %306 = vector.extract_strided_slice %303 {offsets = [0, 256], sizes = [8, 128], strides = [1, 1]} : vector<8x384xf32> to vector<8x128xf32>
    %307 = vector.extract_strided_slice %295 {offsets = [0, 384], sizes = [8, 128], strides = [1, 1]} : vector<8x512xf32> to vector<8x128xf32>
    %308 = math.tanh %307 : vector<8x128xf32>
    %309 = arith.mulf %305, %252 : vector<8x128xf32>
    %310 = arith.mulf %304, %308 : vector<8x128xf32>
    %311 = arith.addf %309, %310 : vector<8x128xf32>
    %312 = math.tanh %311 : vector<8x128xf32>
    %313 = arith.mulf %306, %312 : vector<8x128xf32>
    %314 = vector.extract_strided_slice %288 {offsets = [0, 0], sizes = [8, 384], strides = [1, 1]} : vector<8x512xf32> to vector<8x384xf32>
    %cst_63 = arith.constant 5.000000e-01 : f32
    %315 = vector.broadcast %cst_63 : f32 to vector<8x384xf32>
    %316 = arith.mulf %315, %314 : vector<8x384xf32>
    %317 = math.tanh %316 : vector<8x384xf32>
    %cst_64 = arith.constant 5.000000e-01 : f32
    %318 = vector.broadcast %cst_64 : f32 to vector<8x384xf32>
    %319 = arith.mulf %318, %317 : vector<8x384xf32>
    %cst_65 = arith.constant 5.000000e-01 : f32
    %320 = vector.broadcast %cst_65 : f32 to vector<8x384xf32>
    %321 = arith.addf %319, %320 : vector<8x384xf32>
    %322 = vector.extract_strided_slice %321 {offsets = [0, 0], sizes = [8, 128], strides = [1, 1]} : vector<8x384xf32> to vector<8x128xf32>
    %323 = vector.extract_strided_slice %321 {offsets = [0, 128], sizes = [8, 128], strides = [1, 1]} : vector<8x384xf32> to vector<8x128xf32>
    %324 = vector.extract_strided_slice %321 {offsets = [0, 256], sizes = [8, 128], strides = [1, 1]} : vector<8x384xf32> to vector<8x128xf32>
    %325 = vector.extract_strided_slice %288 {offsets = [0, 384], sizes = [8, 128], strides = [1, 1]} : vector<8x512xf32> to vector<8x128xf32>
    %326 = math.tanh %325 : vector<8x128xf32>
    %327 = arith.mulf %323, %270 : vector<8x128xf32>
    %328 = arith.mulf %322, %326 : vector<8x128xf32>
    %329 = arith.addf %327, %328 : vector<8x128xf32>
    %330 = math.tanh %329 : vector<8x128xf32>
    %331 = arith.mulf %324, %330 : vector<8x128xf32>
    %332 = vector.extract_strided_slice %1 {offsets = [5, 0], sizes = [1, 128], strides = [1, 1]} : vector<8x128xf32> to vector<1x128xf32>
    %333 = vector.shape_cast %332 : vector<1x128xf32> to vector<128xf32>
    %334 = vector.shape_cast %333 : vector<128xf32> to vector<1x128xf32>
    %335 = vector.broadcast %334 : vector<1x128xf32> to vector<8x128xf32>
    %336 = arith.mulf %331, %335 : vector<8x128xf32>
    %cst_66 = arith.constant dense<0.000000e+00> : vector<8xf32>
    %337 = vector.multi_reduction <add>, %336, %cst_66 [1] : vector<8x128xf32> to vector<8xf32>
    %338 = vector.shape_cast %337 : vector<8xf32> to vector<8x1xf32>
    %339 = vector.extract_strided_slice %2 {offsets = [5, 0], sizes = [1, 1], strides = [1, 1]} : vector<8x1xf32> to vector<1x1xf32>
    %340 = vector.shape_cast %339 : vector<1x1xf32> to vector<1xf32>
    %341 = vector.shape_cast %340 : vector<1xf32> to vector<1x1xf32>
    %342 = vector.broadcast %341 : vector<1x1xf32> to vector<8x1xf32>
    %343 = arith.addf %338, %342 : vector<8x1xf32>
    %344 = tpu.concatenate %331, %313 in 1 : vector<8x128xf32>, vector<8x128xf32> -> vector<8x256xf32>
    %cst_67 = arith.constant dense<0.000000e+00> : vector<8x1024xf32>
    %345 = tpu.matmul %344, %0, %cst_67 {dimension_numbers = #tpu.dot_dimension_numbers<[1], [0], [0], [1], [0, 0, 1, 1], [], []>} : vector<8x256xf32>, vector<256x1024xf32>, vector<8x1024xf32> -> vector<8x1024xf32>
    %346 = vector.extract_strided_slice %345 {offsets = [0, 0], sizes = [8, 512], strides = [1, 1]} : vector<8x1024xf32> to vector<8x512xf32>
    %347 = arith.addf %15, %346 : vector<8x512xf32>
    %348 = vector.broadcast %343 : vector<8x1xf32> to vector<8x512xf32>
    %349 = vector.broadcast %3 : vector<1x512xf32> to vector<8x512xf32>
    %350 = arith.mulf %348, %349 : vector<8x512xf32>
    %351 = vector.broadcast %4 : vector<1x512xf32> to vector<8x512xf32>
    %352 = arith.addf %350, %351 : vector<8x512xf32>
    %353 = vector.extract_strided_slice %345 {offsets = [0, 512], sizes = [8, 512], strides = [1, 1]} : vector<8x1024xf32> to vector<8x512xf32>
    %354 = arith.addf %352, %353 : vector<8x512xf32>
    %355 = vector.extract_strided_slice %354 {offsets = [0, 0], sizes = [8, 384], strides = [1, 1]} : vector<8x512xf32> to vector<8x384xf32>
    %cst_68 = arith.constant 5.000000e-01 : f32
    %356 = vector.broadcast %cst_68 : f32 to vector<8x384xf32>
    %357 = arith.mulf %356, %355 : vector<8x384xf32>
    %358 = math.tanh %357 : vector<8x384xf32>
    %cst_69 = arith.constant 5.000000e-01 : f32
    %359 = vector.broadcast %cst_69 : f32 to vector<8x384xf32>
    %360 = arith.mulf %359, %358 : vector<8x384xf32>
    %cst_70 = arith.constant 5.000000e-01 : f32
    %361 = vector.broadcast %cst_70 : f32 to vector<8x384xf32>
    %362 = arith.addf %360, %361 : vector<8x384xf32>
    %363 = vector.extract_strided_slice %362 {offsets = [0, 0], sizes = [8, 128], strides = [1, 1]} : vector<8x384xf32> to vector<8x128xf32>
    %364 = vector.extract_strided_slice %362 {offsets = [0, 128], sizes = [8, 128], strides = [1, 1]} : vector<8x384xf32> to vector<8x128xf32>
    %365 = vector.extract_strided_slice %362 {offsets = [0, 256], sizes = [8, 128], strides = [1, 1]} : vector<8x384xf32> to vector<8x128xf32>
    %366 = vector.extract_strided_slice %354 {offsets = [0, 384], sizes = [8, 128], strides = [1, 1]} : vector<8x512xf32> to vector<8x128xf32>
    %367 = math.tanh %366 : vector<8x128xf32>
    %368 = arith.mulf %364, %311 : vector<8x128xf32>
    %369 = arith.mulf %363, %367 : vector<8x128xf32>
    %370 = arith.addf %368, %369 : vector<8x128xf32>
    %371 = math.tanh %370 : vector<8x128xf32>
    %372 = arith.mulf %365, %371 : vector<8x128xf32>
    %373 = vector.extract_strided_slice %347 {offsets = [0, 0], sizes = [8, 384], strides = [1, 1]} : vector<8x512xf32> to vector<8x384xf32>
    %cst_71 = arith.constant 5.000000e-01 : f32
    %374 = vector.broadcast %cst_71 : f32 to vector<8x384xf32>
    %375 = arith.mulf %374, %373 : vector<8x384xf32>
    %376 = math.tanh %375 : vector<8x384xf32>
    %cst_72 = arith.constant 5.000000e-01 : f32
    %377 = vector.broadcast %cst_72 : f32 to vector<8x384xf32>
    %378 = arith.mulf %377, %376 : vector<8x384xf32>
    %cst_73 = arith.constant 5.000000e-01 : f32
    %379 = vector.broadcast %cst_73 : f32 to vector<8x384xf32>
    %380 = arith.addf %378, %379 : vector<8x384xf32>
    %381 = vector.extract_strided_slice %380 {offsets = [0, 0], sizes = [8, 128], strides = [1, 1]} : vector<8x384xf32> to vector<8x128xf32>
    %382 = vector.extract_strided_slice %380 {offsets = [0, 128], sizes = [8, 128], strides = [1, 1]} : vector<8x384xf32> to vector<8x128xf32>
    %383 = vector.extract_strided_slice %380 {offsets = [0, 256], sizes = [8, 128], strides = [1, 1]} : vector<8x384xf32> to vector<8x128xf32>
    %384 = vector.extract_strided_slice %347 {offsets = [0, 384], sizes = [8, 128], strides = [1, 1]} : vector<8x512xf32> to vector<8x128xf32>
    %385 = math.tanh %384 : vector<8x128xf32>
    %386 = arith.mulf %382, %329 : vector<8x128xf32>
    %387 = arith.mulf %381, %385 : vector<8x128xf32>
    %388 = arith.addf %386, %387 : vector<8x128xf32>
    %389 = math.tanh %388 : vector<8x128xf32>
    %390 = arith.mulf %383, %389 : vector<8x128xf32>
    %391 = vector.extract_strided_slice %1 {offsets = [6, 0], sizes = [1, 128], strides = [1, 1]} : vector<8x128xf32> to vector<1x128xf32>
    %392 = vector.shape_cast %391 : vector<1x128xf32> to vector<128xf32>
    %393 = vector.shape_cast %392 : vector<128xf32> to vector<1x128xf32>
    %394 = vector.broadcast %393 : vector<1x128xf32> to vector<8x128xf32>
    %395 = arith.mulf %390, %394 : vector<8x128xf32>
    %cst_74 = arith.constant dense<0.000000e+00> : vector<8xf32>
    %396 = vector.multi_reduction <add>, %395, %cst_74 [1] : vector<8x128xf32> to vector<8xf32>
    %397 = vector.shape_cast %396 : vector<8xf32> to vector<8x1xf32>
    %398 = vector.extract_strided_slice %2 {offsets = [6, 0], sizes = [1, 1], strides = [1, 1]} : vector<8x1xf32> to vector<1x1xf32>
    %399 = vector.shape_cast %398 : vector<1x1xf32> to vector<1xf32>
    %400 = vector.shape_cast %399 : vector<1xf32> to vector<1x1xf32>
    %401 = vector.broadcast %400 : vector<1x1xf32> to vector<8x1xf32>
    %402 = arith.addf %397, %401 : vector<8x1xf32>
    %403 = tpu.concatenate %390, %372 in 1 : vector<8x128xf32>, vector<8x128xf32> -> vector<8x256xf32>
    %cst_75 = arith.constant dense<0.000000e+00> : vector<8x1024xf32>
    %404 = tpu.matmul %403, %0, %cst_75 {dimension_numbers = #tpu.dot_dimension_numbers<[1], [0], [0], [1], [0, 0, 1, 1], [], []>} : vector<8x256xf32>, vector<256x1024xf32>, vector<8x1024xf32> -> vector<8x1024xf32>
    %405 = vector.extract_strided_slice %404 {offsets = [0, 0], sizes = [8, 512], strides = [1, 1]} : vector<8x1024xf32> to vector<8x512xf32>
    %406 = arith.addf %15, %405 : vector<8x512xf32>
    %407 = vector.broadcast %402 : vector<8x1xf32> to vector<8x512xf32>
    %408 = vector.broadcast %3 : vector<1x512xf32> to vector<8x512xf32>
    %409 = arith.mulf %407, %408 : vector<8x512xf32>
    %410 = vector.broadcast %4 : vector<1x512xf32> to vector<8x512xf32>
    %411 = arith.addf %409, %410 : vector<8x512xf32>
    %412 = vector.extract_strided_slice %404 {offsets = [0, 512], sizes = [8, 512], strides = [1, 1]} : vector<8x1024xf32> to vector<8x512xf32>
    %413 = arith.addf %411, %412 : vector<8x512xf32>
    %414 = vector.extract_strided_slice %413 {offsets = [0, 0], sizes = [8, 384], strides = [1, 1]} : vector<8x512xf32> to vector<8x384xf32>
    %cst_76 = arith.constant 5.000000e-01 : f32
    %415 = vector.broadcast %cst_76 : f32 to vector<8x384xf32>
    %416 = arith.mulf %415, %414 : vector<8x384xf32>
    %417 = math.tanh %416 : vector<8x384xf32>
    %cst_77 = arith.constant 5.000000e-01 : f32
    %418 = vector.broadcast %cst_77 : f32 to vector<8x384xf32>
    %419 = arith.mulf %418, %417 : vector<8x384xf32>
    %cst_78 = arith.constant 5.000000e-01 : f32
    %420 = vector.broadcast %cst_78 : f32 to vector<8x384xf32>
    %421 = arith.addf %419, %420 : vector<8x384xf32>
    %422 = vector.extract_strided_slice %421 {offsets = [0, 0], sizes = [8, 128], strides = [1, 1]} : vector<8x384xf32> to vector<8x128xf32>
    %423 = vector.extract_strided_slice %421 {offsets = [0, 128], sizes = [8, 128], strides = [1, 1]} : vector<8x384xf32> to vector<8x128xf32>
    %424 = vector.extract_strided_slice %421 {offsets = [0, 256], sizes = [8, 128], strides = [1, 1]} : vector<8x384xf32> to vector<8x128xf32>
    %425 = vector.extract_strided_slice %413 {offsets = [0, 384], sizes = [8, 128], strides = [1, 1]} : vector<8x512xf32> to vector<8x128xf32>
    %426 = math.tanh %425 : vector<8x128xf32>
    %427 = arith.mulf %423, %370 : vector<8x128xf32>
    %428 = arith.mulf %422, %426 : vector<8x128xf32>
    %429 = arith.addf %427, %428 : vector<8x128xf32>
    %430 = math.tanh %429 : vector<8x128xf32>
    %431 = arith.mulf %424, %430 : vector<8x128xf32>
    %432 = vector.extract_strided_slice %406 {offsets = [0, 0], sizes = [8, 384], strides = [1, 1]} : vector<8x512xf32> to vector<8x384xf32>
    %cst_79 = arith.constant 5.000000e-01 : f32
    %433 = vector.broadcast %cst_79 : f32 to vector<8x384xf32>
    %434 = arith.mulf %433, %432 : vector<8x384xf32>
    %435 = math.tanh %434 : vector<8x384xf32>
    %cst_80 = arith.constant 5.000000e-01 : f32
    %436 = vector.broadcast %cst_80 : f32 to vector<8x384xf32>
    %437 = arith.mulf %436, %435 : vector<8x384xf32>
    %cst_81 = arith.constant 5.000000e-01 : f32
    %438 = vector.broadcast %cst_81 : f32 to vector<8x384xf32>
    %439 = arith.addf %437, %438 : vector<8x384xf32>
    %440 = vector.extract_strided_slice %439 {offsets = [0, 0], sizes = [8, 128], strides = [1, 1]} : vector<8x384xf32> to vector<8x128xf32>
    %441 = vector.extract_strided_slice %439 {offsets = [0, 128], sizes = [8, 128], strides = [1, 1]} : vector<8x384xf32> to vector<8x128xf32>
    %442 = vector.extract_strided_slice %439 {offsets = [0, 256], sizes = [8, 128], strides = [1, 1]} : vector<8x384xf32> to vector<8x128xf32>
    %443 = vector.extract_strided_slice %406 {offsets = [0, 384], sizes = [8, 128], strides = [1, 1]} : vector<8x512xf32> to vector<8x128xf32>
    %444 = math.tanh %443 : vector<8x128xf32>
    %445 = arith.mulf %441, %388 : vector<8x128xf32>
    %446 = arith.mulf %440, %444 : vector<8x128xf32>
    %447 = arith.addf %445, %446 : vector<8x128xf32>
    %448 = math.tanh %447 : vector<8x128xf32>
    %449 = arith.mulf %442, %448 : vector<8x128xf32>
    %450 = vector.extract_strided_slice %1 {offsets = [7, 0], sizes = [1, 128], strides = [1, 1]} : vector<8x128xf32> to vector<1x128xf32>
    %451 = vector.shape_cast %450 : vector<1x128xf32> to vector<128xf32>
    %452 = vector.shape_cast %451 : vector<128xf32> to vector<1x128xf32>
    %453 = vector.broadcast %452 : vector<1x128xf32> to vector<8x128xf32>
    %454 = arith.mulf %449, %453 : vector<8x128xf32>
    %cst_82 = arith.constant dense<0.000000e+00> : vector<8xf32>
    %455 = vector.multi_reduction <add>, %454, %cst_82 [1] : vector<8x128xf32> to vector<8xf32>
    %456 = vector.shape_cast %455 : vector<8xf32> to vector<8x1xf32>
    %457 = vector.extract_strided_slice %2 {offsets = [7, 0], sizes = [1, 1], strides = [1, 1]} : vector<8x1xf32> to vector<1x1xf32>
    %458 = vector.shape_cast %457 : vector<1x1xf32> to vector<1xf32>
    %459 = vector.shape_cast %458 : vector<1xf32> to vector<1x1xf32>
    %460 = vector.broadcast %459 : vector<1x1xf32> to vector<8x1xf32>
    %461 = arith.addf %456, %460 : vector<8x1xf32>
    %462 = tpu.concatenate %449, %431 in 1 : vector<8x128xf32>, vector<8x128xf32> -> vector<8x256xf32>
    %cst_83 = arith.constant dense<0.000000e+00> : vector<8x1024xf32>
    %463 = tpu.matmul %462, %0, %cst_83 {dimension_numbers = #tpu.dot_dimension_numbers<[1], [0], [0], [1], [0, 0, 1, 1], [], []>} : vector<8x256xf32>, vector<256x1024xf32>, vector<8x1024xf32> -> vector<8x1024xf32>
    %464 = vector.broadcast %461 : vector<8x1xf32> to vector<8x512xf32>
    %465 = vector.broadcast %3 : vector<1x512xf32> to vector<8x512xf32>
    %466 = arith.mulf %464, %465 : vector<8x512xf32>
    %467 = vector.broadcast %4 : vector<1x512xf32> to vector<8x512xf32>
    %468 = arith.addf %466, %467 : vector<8x512xf32>
    %469 = vector.extract_strided_slice %463 {offsets = [0, 512], sizes = [8, 512], strides = [1, 1]} : vector<8x1024xf32> to vector<8x512xf32>
    %470 = arith.addf %468, %469 : vector<8x512xf32>
    %471 = vector.extract_strided_slice %470 {offsets = [0, 0], sizes = [8, 384], strides = [1, 1]} : vector<8x512xf32> to vector<8x384xf32>
    %cst_84 = arith.constant 5.000000e-01 : f32
    %472 = vector.broadcast %cst_84 : f32 to vector<8x384xf32>
    %473 = arith.mulf %472, %471 : vector<8x384xf32>
    %474 = math.tanh %473 : vector<8x384xf32>
    %cst_85 = arith.constant 5.000000e-01 : f32
    %475 = vector.broadcast %cst_85 : f32 to vector<8x384xf32>
    %476 = arith.mulf %475, %474 : vector<8x384xf32>
    %cst_86 = arith.constant 5.000000e-01 : f32
    %477 = vector.broadcast %cst_86 : f32 to vector<8x384xf32>
    %478 = arith.addf %476, %477 : vector<8x384xf32>
    %479 = vector.extract_strided_slice %478 {offsets = [0, 0], sizes = [8, 128], strides = [1, 1]} : vector<8x384xf32> to vector<8x128xf32>
    %480 = vector.extract_strided_slice %478 {offsets = [0, 128], sizes = [8, 128], strides = [1, 1]} : vector<8x384xf32> to vector<8x128xf32>
    %481 = vector.extract_strided_slice %478 {offsets = [0, 256], sizes = [8, 128], strides = [1, 1]} : vector<8x384xf32> to vector<8x128xf32>
    %482 = vector.extract_strided_slice %470 {offsets = [0, 384], sizes = [8, 128], strides = [1, 1]} : vector<8x512xf32> to vector<8x128xf32>
    %483 = math.tanh %482 : vector<8x128xf32>
    %484 = arith.mulf %480, %429 : vector<8x128xf32>
    %485 = arith.mulf %479, %483 : vector<8x128xf32>
    %486 = arith.addf %484, %485 : vector<8x128xf32>
    %487 = math.tanh %486 : vector<8x128xf32>
    %488 = arith.mulf %481, %487 : vector<8x128xf32>
    %489 = vector.shape_cast %36 : vector<8x128xf32> to vector<1x8x128xf32>
    %490 = vector.shape_cast %95 : vector<8x128xf32> to vector<1x8x128xf32>
    %491 = vector.shape_cast %154 : vector<8x128xf32> to vector<1x8x128xf32>
    %492 = vector.shape_cast %213 : vector<8x128xf32> to vector<1x8x128xf32>
    %493 = vector.shape_cast %272 : vector<8x128xf32> to vector<1x8x128xf32>
    %494 = vector.shape_cast %331 : vector<8x128xf32> to vector<1x8x128xf32>
    %495 = vector.shape_cast %390 : vector<8x128xf32> to vector<1x8x128xf32>
    %496 = vector.shape_cast %449 : vector<8x128xf32> to vector<1x8x128xf32>
    %497 = tpu.concatenate %489, %490, %491, %492, %493, %494, %495, %496 in 0 : vector<1x8x128xf32>, vector<1x8x128xf32>, vector<1x8x128xf32>, vector<1x8x128xf32>, vector<1x8x128xf32>, vector<1x8x128xf32>, vector<1x8x128xf32>, vector<1x8x128xf32> -> vector<8x8x128xf32>
    %498 = vector.shape_cast %1 : vector<8x128xf32> to vector<8x1x128xf32>
    %499 = vector.broadcast %498 : vector<8x1x128xf32> to vector<8x8x128xf32>
    %500 = arith.mulf %497, %499 : vector<8x8x128xf32>
    %cst_87 = arith.constant dense<0.000000e+00> : vector<8x8xf32>
    %501 = vector.multi_reduction <add>, %500, %cst_87 [2] : vector<8x8x128xf32> to vector<8x8xf32>
    %502 = vector.broadcast %2 : vector<8x1xf32> to vector<8x8xf32>
    %503 = arith.addf %501, %502 : vector<8x8xf32>
    %c0_88 = arith.constant 0 : index
    %c0_89 = arith.constant 0 : index
    %504 = vector.load %arg12[%c0_88, %c0_89] : memref<8x8xf32, #tpu.memory_space<vmem>>, vector<8x8xf32>
    tpu.vector_store %arg12[%c0_88, %c0_89], %503 {strides = array<i32>} : memref<8x8xf32, #tpu.memory_space<vmem>>, vector<8x8xf32>,
    %505 = vector.shape_cast %77 : vector<8x128xf32> to vector<1x8x128xf32>
    %506 = vector.shape_cast %136 : vector<8x128xf32> to vector<1x8x128xf32>
    %507 = vector.shape_cast %195 : vector<8x128xf32> to vector<1x8x128xf32>
    %508 = vector.shape_cast %254 : vector<8x128xf32> to vector<1x8x128xf32>
    %509 = vector.shape_cast %313 : vector<8x128xf32> to vector<1x8x128xf32>
    %510 = vector.shape_cast %372 : vector<8x128xf32> to vector<1x8x128xf32>
    %511 = vector.shape_cast %431 : vector<8x128xf32> to vector<1x8x128xf32>
    %512 = vector.shape_cast %488 : vector<8x128xf32> to vector<1x8x128xf32>
    %513 = tpu.concatenate %505, %506, %507, %508, %509, %510, %511, %512 in 0 : vector<1x8x128xf32>, vector<1x8x128xf32>, vector<1x8x128xf32>, vector<1x8x128xf32>, vector<1x8x128xf32>, vector<1x8x128xf32>, vector<1x8x128xf32>, vector<1x8x128xf32> -> vector<8x8x128xf32>
    %c0_90 = arith.constant 0 : index
    %c0_91 = arith.constant 0 : index
    %514 = vector.load %arg10[%c0_90, %c0_91] : memref<8x128xf32, #tpu.memory_space<vmem>>, vector<8x128xf32>
    %515 = vector.shape_cast %514 : vector<8x128xf32> to vector<8x1x128xf32>
    %516 = vector.broadcast %515 : vector<8x1x128xf32> to vector<8x8x128xf32>
    %517 = arith.mulf %513, %516 : vector<8x8x128xf32>
    %cst_92 = arith.constant dense<0.000000e+00> : vector<8x8xf32>
    %518 = vector.multi_reduction <add>, %517, %cst_92 [2] : vector<8x8x128xf32> to vector<8x8xf32>
    %c0_93 = arith.constant 0 : index
    %c0_94 = arith.constant 0 : index
    %519 = vector.load %arg11[%c0_93, %c0_94] : memref<8x1xf32, #tpu.memory_space<vmem>>, vector<8x1xf32>
    %520 = vector.broadcast %519 : vector<8x1xf32> to vector<8x8xf32>
    %521 = arith.addf %518, %520 : vector<8x8xf32>
    %c0_95 = arith.constant 0 : index
    %c0_96 = arith.constant 0 : index
    %522 = vector.load %arg13[%c0_95, %c0_96] : memref<8x8xf32, #tpu.memory_space<vmem>>, vector<8x8xf32>
    tpu.vector_store %arg13[%c0_95, %c0_96], %521 {strides = array<i32>} : memref<8x8xf32, #tpu.memory_space<vmem>>, vector<8x8xf32>,
    return
  }
}

</mosaic_0001>

<llo_original>
// kernel: tpu_custom_call.1
$region0: #{tpu_custom_call.1}
  #allocation0 [shape = 'u32[]', space=smem, size = 0x4, offset = 0x4, fixed_abs, tag = 'smem constant byte address 0x4 - core index']
  #allocation1 [shape = 'u32[144,128]{1,0:T(1,128)}', space=vmem, size = 0x12000, scoped, tag = 'internal scratch']
  %s0 = inlined_call_operand.vmem [shape: f32[8,32], index: 0, kind: input, shape index: {}]
  %s1 = inlined_call_operand.hbm [shape: f32[32,128], index: 1, kind: input, shape index: {}]
  %s2 = inlined_call_operand.hbm [shape: f32[1,128], index: 2, kind: input, shape index: {}]
  %s3 = inlined_call_operand.hbm [shape: f32[128,512], index: 3, kind: input, shape index: {}]
  %s4 = inlined_call_operand.vmem [shape: f32[1,512], index: 4, kind: input, shape index: {}]
  %s5 = inlined_call_operand.vmem [shape: f32[8,128], index: 5, kind: input, shape index: {}]
  %s6 = inlined_call_operand.vmem [shape: f32[8,1], index: 6, kind: input, shape index: {}]
  %s7 = inlined_call_operand.hbm [shape: f32[256,1024], index: 7, kind: input, shape index: {}]
  %s8 = inlined_call_operand.vmem [shape: f32[1,512], index: 8, kind: input, shape index: {}]
  %s9 = inlined_call_operand.vmem [shape: f32[1,512], index: 9, kind: input, shape index: {}]
  %s10 = inlined_call_operand.vmem [shape: f32[8,128], index: 10, kind: input, shape index: {}]
  %s11 = inlined_call_operand.vmem [shape: f32[8,1], index: 11, kind: input, shape index: {}]
  %s12 = inlined_call_operand.hbm [shape: f32[8,8], index: 12, kind: output, shape index: {0}]
  %s13 = inlined_call_operand.hbm [shape: f32[8,8], index: 13, kind: output, shape index: {1}]
  %14 = xla_tuple %s12, %s13
  %s15 = sld [smem:[#allocation0]]
  $region82: #{tpu_custom_call.1} parent=0
    _
  %s17 = ssub.s32 1, %s15
  %s18 = scalar_select 0, %s17, %s15
  $region1: #{tpu_custom_call.1} parent=0
    #allocation2 [shape = 'u8[16384]{0}', space=vmem, size = 0x4000, scoped, tag = 'input window, operand 1, single buffered']
    #allocation3 [shape = 's32[1]{0}', space=sflag, size = 0x4, scoped, tag = 'scoped memory for tpu_custom_call.1']
    #allocation4 [shape = 's32[1]{0}', space=sflag, size = 0x4, scoped, tag = 'scoped memory for tpu_custom_call.1']
    #allocation5 [shape = 'u8[512]{0}', space=vmem, size = 0x400, scoped, tag = 'input window, operand 2, single buffered']
    #allocation6 [shape = 's32[1]{0}', space=sflag, size = 0x4, scoped, tag = 'scoped memory for tpu_custom_call.1']
    #allocation7 [shape = 'u8[262144]{0}', space=vmem, size = 0x40000, scoped, tag = 'input window, operand 3, single buffered']
    #allocation8 [shape = 'u8[1048576]{0}', space=vmem, size = 0x100000, scoped, tag = 'input window, operand 7, single buffered']
    #allocation9 [shape = 's32[1]{0}', space=sflag, size = 0x4, scoped, tag = 'scoped memory for tpu_custom_call.1']
    #allocation10 [shape = 'u8[4096]{0}', space=vmem, size = 0x1000, scoped, tag = 'output window, operand 0, single buffered']
    #allocation11 [shape = 'u8[4096]{0}', space=vmem, size = 0x1000, scoped, tag = 'output window, operand 1, single buffered']
    #allocation12 [shape = 's32[1]{0}', space=sflag, size = 0x4, scoped, tag = 'scoped memory for tpu_custom_call.1']
    %19 = vsyncpa [#allocation3], 0
    %20 = vsyncpa [#allocation6], 0
    %21 = vsyncpa [#allocation9], 0
    %22 = vsyncpa [#allocation4], 0
    %23 = vsyncpa [#allocation12], 0
    // Predicated region
    $region2: #{tpu_custom_call.1} parent=1 // pred_check
      _
    $region3: #{tpu_custom_call.1} parent=1 // pred_check_branch
      %25 = sbr.rel (0) target = $region5
    $region4: #{tpu_custom_call.1} parent=1 // pred_region
      _
    $region5: #{tpu_custom_call.1} parent=1 // pred_fallthru
      _
    // Predicated region
    $region6: #{tpu_custom_call.1} parent=1 // pred_check
      _
    $region7: #{tpu_custom_call.1} parent=1 // pred_check_branch
      %27 = sbr.rel (0) target = $region9
    $region8: #{tpu_custom_call.1} parent=1 // pred_region
      %s29 = ssub.s32 512, 512
      %30 = vsyncadd [#allocation3], %s29
      %s31 = sshll.u32 [#allocation2], 4
      %s32 = int_to_ptr.vmem [resolvable:$true] %s31
      %37 = dma.hbm_to_vmem [thread:$0]  %s1, 512, %s32, [#allocation3], 128, 128, 8
    $region9: #{tpu_custom_call.1} parent=1 // pred_fallthru
      _
    // Predicated region
    $region10: #{tpu_custom_call.1} parent=1 // pred_check
      _
    $region11: #{tpu_custom_call.1} parent=1 // pred_check_branch
      %39 = sbr.rel (0) target = $region13
    $region12: #{tpu_custom_call.1} parent=1 // pred_region
      %s41 = ssub.s32 16, 16
      %42 = vsyncadd [#allocation6], %s41
      %s44 = sshll.u32 [#allocation5], 4
      %s45 = int_to_ptr.vmem [resolvable:$true] %s44
      %47 = dma.hbm_to_vmem [thread:$0]  %s2, 16, %s45, [#allocation6]
    $region13: #{tpu_custom_call.1} parent=1 // pred_fallthru
      _
    // Predicated region
    $region14: #{tpu_custom_call.1} parent=1 // pred_check
      _
    $region15: #{tpu_custom_call.1} parent=1 // pred_check_branch
      %49 = sbr.rel (0) target = $region17
    $region16: #{tpu_custom_call.1} parent=1 // pred_region
      %s51 = ssub.s32 8192, 8192
      %52 = vsyncadd [#allocation6], %s51
      %s53 = sshll.u32 [#allocation7], 4
      %s54 = int_to_ptr.vmem [resolvable:$true] %s53
      %59 = dma.hbm_to_vmem [thread:$0]  %s3, 8192, %s54, [#allocation6], 512, 512, 32
    $region17: #{tpu_custom_call.1} parent=1 // pred_fallthru
      _
    // Predicated region
    $region18: #{tpu_custom_call.1} parent=1 // pred_check
      _
    $region19: #{tpu_custom_call.1} parent=1 // pred_check_branch
      %61 = sbr.rel (0) target = $region21
    $region20: #{tpu_custom_call.1} parent=1 // pred_region
      _
    $region21: #{tpu_custom_call.1} parent=1 // pred_fallthru
      _
    // Predicated region
    $region22: #{tpu_custom_call.1} parent=1 // pred_check
      _
    $region23: #{tpu_custom_call.1} parent=1 // pred_check_branch
      %63 = sbr.rel (0) target = $region25
    $region24: #{tpu_custom_call.1} parent=1 // pred_region
      _
    $region25: #{tpu_custom_call.1} parent=1 // pred_fallthru
      _
    // Predicated region
    $region26: #{tpu_custom_call.1} parent=1 // pred_check
      _
    $region27: #{tpu_custom_call.1} parent=1 // pred_check_branch
      %65 = sbr.rel (0) target = $region29
    $region28: #{tpu_custom_call.1} parent=1 // pred_region
      _
    $region29: #{tpu_custom_call.1} parent=1 // pred_fallthru
      _
    // Predicated region
    $region30: #{tpu_custom_call.1} parent=1 // pred_check
      _
    $region31: #{tpu_custom_call.1} parent=1 // pred_check_branch
      %67 = sbr.rel (0) target = $region33
    $region32: #{tpu_custom_call.1} parent=1 // pred_region
      %s69 = ssub.s32 32768, 32768
      %70 = vsyncadd [#allocation9], %s69
      %s71 = sshll.u32 [#allocation8], 4
      %s72 = int_to_ptr.vmem [resolvable:$true] %s71
      %77 = dma.hbm_to_vmem [thread:$0]  %s7, 32768, %s72, [#allocation9], 1024, 1024, 64
    $region33: #{tpu_custom_call.1} parent=1 // pred_fallthru
      _
    // Predicated region
    $region34: #{tpu_custom_call.1} parent=1 // pred_check
      _
    $region35: #{tpu_custom_call.1} parent=1 // pred_check_branch
      %79 = sbr.rel (0) target = $region37
    $region36: #{tpu_custom_call.1} parent=1 // pred_region
      _
    $region37: #{tpu_custom_call.1} parent=1 // pred_fallthru
      _
    // Predicated region
    $region38: #{tpu_custom_call.1} parent=1 // pred_check
      _
    $region39: #{tpu_custom_call.1} parent=1 // pred_check_branch
      %81 = sbr.rel (0) target = $region41
    $region40: #{tpu_custom_call.1} parent=1 // pred_region
      _
    $region41: #{tpu_custom_call.1} parent=1 // pred_fallthru
      _
    // Predicated region
    $region42: #{tpu_custom_call.1} parent=1 // pred_check
      _
    $region43: #{tpu_custom_call.1} parent=1 // pred_check_branch
      %83 = sbr.rel (0) target = $region45
    $region44: #{tpu_custom_call.1} parent=1 // pred_region
      _
    $region45: #{tpu_custom_call.1} parent=1 // pred_fallthru
      _
    // Predicated region
    $region46: #{tpu_custom_call.1} parent=1 // pred_check
      _
    $region47: #{tpu_custom_call.1} parent=1 // pred_check_branch
      %85 = sbr.rel (0) target = $region49
    $region48: #{tpu_custom_call.1} parent=1 // pred_region
      _
    $region49: #{tpu_custom_call.1} parent=1 // pred_fallthru
      _
    // Predicated region
    $region50: #{tpu_custom_call.1} parent=1 // pred_check
      _
    $region51: #{tpu_custom_call.1} parent=1 // pred_check_branch
      %87 = sbr.rel (0) target = $region53
    $region52: #{tpu_custom_call.1} parent=1 // pred_region
      %88 = dma.done [#allocation3], 512
    $region53: #{tpu_custom_call.1} parent=1 // pred_fallthru
      _
    // Predicated region
    $region54: #{tpu_custom_call.1} parent=1 // pred_check
      _
    $region55: #{tpu_custom_call.1} parent=1 // pred_check_branch
      %90 = sbr.rel (0) target = $region57
    $region56: #{tpu_custom_call.1} parent=1 // pred_region
      %91 = dma.done [#allocation6], 16
    $region57: #{tpu_custom_call.1} parent=1 // pred_fallthru
      _
    // Predicated region
    $region58: #{tpu_custom_call.1} parent=1 // pred_check
      _
    $region59: #{tpu_custom_call.1} parent=1 // pred_check_branch
      %93 = sbr.rel (0) target = $region61
    $region60: #{tpu_custom_call.1} parent=1 // pred_region
      %94 = dma.done [#allocation6], 8192
    $region61: #{tpu_custom_call.1} parent=1 // pred_fallthru
      _
    // Predicated region
    $region62: #{tpu_custom_call.1} parent=1 // pred_check
      _
    $region63: #{tpu_custom_call.1} parent=1 // pred_check_branch
      %96 = sbr.rel (0) target = $region65
    $region64: #{tpu_custom_call.1} parent=1 // pred_region
      %97 = dma.done [#allocation9], 32768
    $region65: #{tpu_custom_call.1} parent=1 // pred_fallthru
      _
    %v98 = vld [vmem:[#allocation8] sm:$0xff]
    %v99 = vld [vmem:[#allocation8 + $0x8] sm:$0xff]
    %v100 = vld [vmem:[#allocation8 + $0x10] sm:$0xff]
    %v101 = vld [vmem:[#allocation8 + $0x18] sm:$0xff]
    %v102 = vld [vmem:[#allocation8 + $0x20] sm:$0xff]
    %v103 = vld [vmem:[#allocation8 + $0x28] sm:$0xff]
    %v104 = vld [vmem:[#allocation8 + $0x30] sm:$0xff]
    %v105 = vld [vmem:[#allocation8 + $0x38] sm:$0xff]
    %v106 = vld [vmem:[#allocation8 + $0x40] sm:$0xff]
    %v107 = vld [vmem:[#allocation8 + $0x48] sm:$0xff]
    %v108 = vld [vmem:[#allocation8 + $0x50] sm:$0xff]
    %v109 = vld [vmem:[#allocation8 + $0x58] sm:$0xff]
    %v110 = vld [vmem:[#allocation8 + $0x60] sm:$0xff]
    %v111 = vld [vmem:[#allocation8 + $0x68] sm:$0xff]
    %v112 = vld [vmem:[#allocation8 + $0x70] sm:$0xff]
    %v113 = vld [vmem:[#allocation8 + $0x78] sm:$0xff]
    %v114 = vld [vmem:[#allocation8 + $0x80] sm:$0xff]
    %v115 = vld [vmem:[#allocation8 + $0x88] sm:$0xff]
    %v116 = vld [vmem:[#allocation8 + $0x90] sm:$0xff]
    %v117 = vld [vmem:[#allocation8 + $0x98] sm:$0xff]
    %v118 = vld [vmem:[#allocation8 + $0xa0] sm:$0xff]
    %v119 = vld [vmem:[#allocation8 + $0xa8] sm:$0xff]
    %v120 = vld [vmem:[#allocation8 + $0xb0] sm:$0xff]
    %v121 = vld [vmem:[#allocation8 + $0xb8] sm:$0xff]
    %v122 = vld [vmem:[#allocation8 + $0xc0] sm:$0xff]
    %v123 = vld [vmem:[#allocation8 + $0xc8] sm:$0xff]
    %v124 = vld [vmem:[#allocation8 + $0xd0] sm:$0xff]
    %v125 = vld [vmem:[#allocation8 + $0xd8] sm:$0xff]
    %v126 = vld [vmem:[#allocation8 + $0xe0] sm:$0xff]
    %v127 = vld [vmem:[#allocation8 + $0xe8] sm:$0xff]
    %v128 = vld [vmem:[#allocation8 + $0xf0] sm:$0xff]
    %v129 = vld [vmem:[#allocation8 + $0xf8] sm:$0xff]
    %v130 = vld [vmem:[#allocation8 + $0x100] sm:$0xff]
    %v131 = vld [vmem:[#allocation8 + $0x108] sm:$0xff]
    %v132 = vld [vmem:[#allocation8 + $0x110] sm:$0xff]
    %v133 = vld [vmem:[#allocation8 + $0x118] sm:$0xff]
    %v134 = vld [vmem:[#allocation8 + $0x120] sm:$0xff]
    %v135 = vld [vmem:[#allocation8 + $0x128] sm:$0xff]
    %v136 = vld [vmem:[#allocation8 + $0x130] sm:$0xff]
    %v137 = vld [vmem:[#allocation8 + $0x138] sm:$0xff]
    %v138 = vld [vmem:[#allocation8 + $0x140] sm:$0xff]
    %v139 = vld [vmem:[#allocation8 + $0x148] sm:$0xff]
    %v140 = vld [vmem:[#allocation8 + $0x150] sm:$0xff]
    %v141 = vld [vmem:[#allocation8 + $0x158] sm:$0xff]
    %v142 = vld [vmem:[#allocation8 + $0x160] sm:$0xff]
    %v143 = vld [vmem:[#allocation8 + $0x168] sm:$0xff]
    %v144 = vld [vmem:[#allocation8 + $0x170] sm:$0xff]
    %v145 = vld [vmem:[#allocation8 + $0x178] sm:$0xff]
    %v146 = vld [vmem:[#allocation8 + $0x180] sm:$0xff]
    %v147 = vld [vmem:[#allocation8 + $0x188] sm:$0xff]
    %v148 = vld [vmem:[#allocation8 + $0x190] sm:$0xff]
    %v149 = vld [vmem:[#allocation8 + $0x198] sm:$0xff]
    %v150 = vld [vmem:[#allocation8 + $0x1a0] sm:$0xff]
    %v151 = vld [vmem:[#allocation8 + $0x1a8] sm:$0xff]
    %v152 = vld [vmem:[#allocation8 + $0x1b0] sm:$0xff]
    %v153 = vld [vmem:[#allocation8 + $0x1b8] sm:$0xff]
    %v154 = vld [vmem:[#allocation8 + $0x1c0] sm:$0xff]
    %v155 = vld [vmem:[#allocation8 + $0x1c8] sm:$0xff]
    %v156 = vld [vmem:[#allocation8 + $0x1d0] sm:$0xff]
    %v157 = vld [vmem:[#allocation8 + $0x1d8] sm:$0xff]
    %v158 = vld [vmem:[#allocation8 + $0x1e0] sm:$0xff]
    %v159 = vld [vmem:[#allocation8 + $0x1e8] sm:$0xff]
    %v160 = vld [vmem:[#allocation8 + $0x1f0] sm:$0xff]
    %v161 = vld [vmem:[#allocation8 + $0x1f8] sm:$0xff]
    %v162 = vld [vmem:[#allocation8 + $0x200] sm:$0xff]
    %v163 = vld [vmem:[#allocation8 + $0x208] sm:$0xff]
    %v164 = vld [vmem:[#allocation8 + $0x210] sm:$0xff]
    %v165 = vld [vmem:[#allocation8 + $0x218] sm:$0xff]
    %v166 = vld [vmem:[#allocation8 + $0x220] sm:$0xff]
    %v167 = vld [vmem:[#allocation8 + $0x228] sm:$0xff]
    %v168 = vld [vmem:[#allocation8 + $0x230] sm:$0xff]
    %v169 = vld [vmem:[#allocation8 + $0x238] sm:$0xff]
    %v170 = vld [vmem:[#allocation8 + $0x240] sm:$0xff]
    %v171 = vld [vmem:[#allocation8 + $0x248] sm:$0xff]
    %v172 = vld [vmem:[#allocation8 + $0x250] sm:$0xff]
    %v173 = vld [vmem:[#allocation8 + $0x258] sm:$0xff]
    %v174 = vld [vmem:[#allocation8 + $0x260] sm:$0xff]
    %v175 = vld [vmem:[#allocation8 + $0x268] sm:$0xff]
    %v176 = vld [vmem:[#allocation8 + $0x270] sm:$0xff]
    %v177 = vld [vmem:[#allocation8 + $0x278] sm:$0xff]
    %v178 = vld [vmem:[#allocation8 + $0x280] sm:$0xff]
    %v179 = vld [vmem:[#allocation8 + $0x288] sm:$0xff]
    %v180 = vld [vmem:[#allocation8 + $0x290] sm:$0xff]
    %v181 = vld [vmem:[#allocation8 + $0x298] sm:$0xff]
    %v182 = vld [vmem:[#allocation8 + $0x2a0] sm:$0xff]
    %v183 = vld [vmem:[#allocation8 + $0x2a8] sm:$0xff]
    %v184 = vld [vmem:[#allocation8 + $0x2b0] sm:$0xff]
    %v185 = vld [vmem:[#allocation8 + $0x2b8] sm:$0xff]
    %v186 = vld [vmem:[#allocation8 + $0x2c0] sm:$0xff]
    %v187 = vld [vmem:[#allocation8 + $0x2c8] sm:$0xff]
    %v188 = vld [vmem:[#allocation8 + $0x2d0] sm:$0xff]
    %v189 = vld [vmem:[#allocation8 + $0x2d8] sm:$0xff]
    %v190 = vld [vmem:[#allocation8 + $0x2e0] sm:$0xff]
    %v191 = vld [vmem:[#allocation8 + $0x2e8] sm:$0xff]
    %v192 = vld [vmem:[#allocation8 + $0x2f0] sm:$0xff]
    %v193 = vld [vmem:[#allocation8 + $0x2f8] sm:$0xff]
    %v194 = vld [vmem:[#allocation8 + $0x300] sm:$0xff]
    %v195 = vld [vmem:[#allocation8 + $0x308] sm:$0xff]
    %v196 = vld [vmem:[#allocation8 + $0x310] sm:$0xff]
    %v197 = vld [vmem:[#allocation8 + $0x318] sm:$0xff]
    %v198 = vld [vmem:[#allocation8 + $0x320] sm:$0xff]
    %v199 = vld [vmem:[#allocation8 + $0x328] sm:$0xff]
    %v200 = vld [vmem:[#allocation8 + $0x330] sm:$0xff]
    %v201 = vld [vmem:[#allocation8 + $0x338] sm:$0xff]
    %v202 = vld [vmem:[#allocation8 + $0x340] sm:$0xff]
    %v203 = vld [vmem:[#allocation8 + $0x348] sm:$0xff]
    %v204 = vld [vmem:[#allocation8 + $0x350] sm:$0xff]
    %v205 = vld [vmem:[#allocation8 + $0x358] sm:$0xff]
    %v206 = vld [vmem:[#allocation8 + $0x360] sm:$0xff]
    %v207 = vld [vmem:[#allocation8 + $0x368] sm:$0xff]
    %v208 = vld [vmem:[#allocation8 + $0x370] sm:$0xff]
    %v209 = vld [vmem:[#allocation8 + $0x378] sm:$0xff]
    %v210 = vld [vmem:[#allocation8 + $0x380] sm:$0xff]
    %v211 = vld [vmem:[#allocation8 + $0x388] sm:$0xff]
    %v212 = vld [vmem:[#allocation8 + $0x390] sm:$0xff]
    %v213 = vld [vmem:[#allocation8 + $0x398] sm:$0xff]
    %v214 = vld [vmem:[#allocation8 + $0x3a0] sm:$0xff]
    %v215 = vld [vmem:[#allocation8 + $0x3a8] sm:$0xff]
    %v216 = vld [vmem:[#allocation8 + $0x3b0] sm:$0xff]
    %v217 = vld [vmem:[#allocation8 + $0x3b8] sm:$0xff]
    %v218 = vld [vmem:[#allocation8 + $0x3c0] sm:$0xff]
    %v219 = vld [vmem:[#allocation8 + $0x3c8] sm:$0xff]
    %v220 = vld [vmem:[#allocation8 + $0x3d0] sm:$0xff]
    %v221 = vld [vmem:[#allocation8 + $0x3d8] sm:$0xff]
    %v222 = vld [vmem:[#allocation8 + $0x3e0] sm:$0xff]
    %v223 = vld [vmem:[#allocation8 + $0x3e8] sm:$0xff]
    %v224 = vld [vmem:[#allocation8 + $0x3f0] sm:$0xff]
    %v225 = vld [vmem:[#allocation8 + $0x3f8] sm:$0xff]
    %v226 = vld [vmem:[#allocation8 + $0x400] sm:$0xff]
    %v227 = vld [vmem:[#allocation8 + $0x408] sm:$0xff]
    %v228 = vld [vmem:[#allocation8 + $0x410] sm:$0xff]
    %v229 = vld [vmem:[#allocation8 + $0x418] sm:$0xff]
    %v230 = vld [vmem:[#allocation8 + $0x420] sm:$0xff]
    %v231 = vld [vmem:[#allocation8 + $0x428] sm:$0xff]
    %v232 = vld [vmem:[#allocation8 + $0x430] sm:$0xff]
    %v233 = vld [vmem:[#allocation8 + $0x438] sm:$0xff]
    %v234 = vld [vmem:[#allocation8 + $0x440] sm:$0xff]
    %v235 = vld [vmem:[#allocation8 + $0x448] sm:$0xff]
    %v236 = vld [vmem:[#allocation8 + $0x450] sm:$0xff]
    %v237 = vld [vmem:[#allocation8 + $0x458] sm:$0xff]
    %v238 = vld [vmem:[#allocation8 + $0x460] sm:$0xff]
    %v239 = vld [vmem:[#allocation8 + $0x468] sm:$0xff]
    %v240 = vld [vmem:[#allocation8 + $0x470] sm:$0xff]
    %v241 = vld [vmem:[#allocation8 + $0x478] sm:$0xff]
    %v242 = vld [vmem:[#allocation8 + $0x480] sm:$0xff]
    %v243 = vld [vmem:[#allocation8 + $0x488] sm:$0xff]
    %v244 = vld [vmem:[#allocation8 + $0x490] sm:$0xff]
    %v245 = vld [vmem:[#allocation8 + $0x498] sm:$0xff]
    %v246 = vld [vmem:[#allocation8 + $0x4a0] sm:$0xff]
    %v247 = vld [vmem:[#allocation8 + $0x4a8] sm:$0xff]
    %v248 = vld [vmem:[#allocation8 + $0x4b0] sm:$0xff]
    %v249 = vld [vmem:[#allocation8 + $0x4b8] sm:$0xff]
    %v250 = vld [vmem:[#allocation8 + $0x4c0] sm:$0xff]
    %v251 = vld [vmem:[#allocation8 + $0x4c8] sm:$0xff]
    %v252 = vld [vmem:[#allocation8 + $0x4d0] sm:$0xff]
    %v253 = vld [vmem:[#allocation8 + $0x4d8] sm:$0xff]
    %v254 = vld [vmem:[#allocation8 + $0x4e0] sm:$0xff]
    %v255 = vld [vmem:[#allocation8 + $0x4e8] sm:$0xff]
    %v256 = vld [vmem:[#allocation8 + $0x4f0] sm:$0xff]
    %v257 = vld [vmem:[#allocation8 + $0x4f8] sm:$0xff]
    %v258 = vld [vmem:[#allocation8 + $0x500] sm:$0xff]
    %v259 = vld [vmem:[#allocation8 + $0x508] sm:$0xff]
    %v260 = vld [vmem:[#allocation8 + $0x510] sm:$0xff]
    %v261 = vld [vmem:[#allocation8 + $0x518] sm:$0xff]
    %v262 = vld [vmem:[#allocation8 + $0x520] sm:$0xff]
    %v263 = vld [vmem:[#allocation8 + $0x528] sm:$0xff]
    %v264 = vld [vmem:[#allocation8 + $0x530] sm:$0xff]
    %v265 = vld [vmem:[#allocation8 + $0x538] sm:$0xff]
    %v266 = vld [vmem:[#allocation8 + $0x540] sm:$0xff]
    %v267 = vld [vmem:[#allocation8 + $0x548] sm:$0xff]
    %v268 = vld [vmem:[#allocation8 + $0x550] sm:$0xff]
    %v269 = vld [vmem:[#allocation8 + $0x558] sm:$0xff]
    %v270 = vld [vmem:[#allocation8 + $0x560] sm:$0xff]
    %v271 = vld [vmem:[#allocation8 + $0x568] sm:$0xff]
    %v272 = vld [vmem:[#allocation8 + $0x570] sm:$0xff]
    %v273 = vld [vmem:[#allocation8 + $0x578] sm:$0xff]
    %v274 = vld [vmem:[#allocation8 + $0x580] sm:$0xff]
    %v275 = vld [vmem:[#allocation8 + $0x588] sm:$0xff]
    %v276 = vld [vmem:[#allocation8 + $0x590] sm:$0xff]
    %v277 = vld [vmem:[#allocation8 + $0x598] sm:$0xff]
    %v278 = vld [vmem:[#allocation8 + $0x5a0] sm:$0xff]
    %v279 = vld [vmem:[#allocation8 + $0x5a8] sm:$0xff]
    %v280 = vld [vmem:[#allocation8 + $0x5b0] sm:$0xff]
    %v281 = vld [vmem:[#allocation8 + $0x5b8] sm:$0xff]
    %v282 = vld [vmem:[#allocation8 + $0x5c0] sm:$0xff]
    %v283 = vld [vmem:[#allocation8 + $0x5c8] sm:$0xff]
    %v284 = vld [vmem:[#allocation8 + $0x5d0] sm:$0xff]
    %v285 = vld [vmem:[#allocation8 + $0x5d8] sm:$0xff]
    %v286 = vld [vmem:[#allocation8 + $0x5e0] sm:$0xff]
    %v287 = vld [vmem:[#allocation8 + $0x5e8] sm:$0xff]
    %v288 = vld [vmem:[#allocation8 + $0x5f0] sm:$0xff]
    %v289 = vld [vmem:[#allocation8 + $0x5f8] sm:$0xff]
    %v290 = vld [vmem:[#allocation8 + $0x600] sm:$0xff]
    %v291 = vld [vmem:[#allocation8 + $0x608] sm:$0xff]
    %v292 = vld [vmem:[#allocation8 + $0x610] sm:$0xff]
    %v293 = vld [vmem:[#allocation8 + $0x618] sm:$0xff]
    %v294 = vld [vmem:[#allocation8 + $0x620] sm:$0xff]
    %v295 = vld [vmem:[#allocation8 + $0x628] sm:$0xff]
    %v296 = vld [vmem:[#allocation8 + $0x630] sm:$0xff]
    %v297 = vld [vmem:[#allocation8 + $0x638] sm:$0xff]
    %v298 = vld [vmem:[#allocation8 + $0x640] sm:$0xff]
    %v299 = vld [vmem:[#allocation8 + $0x648] sm:$0xff]
    %v300 = vld [vmem:[#allocation8 + $0x650] sm:$0xff]
    %v301 = vld [vmem:[#allocation8 + $0x658] sm:$0xff]
    %v302 = vld [vmem:[#allocation8 + $0x660] sm:$0xff]
    %v303 = vld [vmem:[#allocation8 + $0x668] sm:$0xff]
    %v304 = vld [vmem:[#allocation8 + $0x670] sm:$0xff]
    %v305 = vld [vmem:[#allocation8 + $0x678] sm:$0xff]
    %v306 = vld [vmem:[#allocation8 + $0x680] sm:$0xff]
    %v307 = vld [vmem:[#allocation8 + $0x688] sm:$0xff]
    %v308 = vld [vmem:[#allocation8 + $0x690] sm:$0xff]
    %v309 = vld [vmem:[#allocation8 + $0x698] sm:$0xff]
    %v310 = vld [vmem:[#allocation8 + $0x6a0] sm:$0xff]
    %v311 = vld [vmem:[#allocation8 + $0x6a8] sm:$0xff]
    %v312 = vld [vmem:[#allocation8 + $0x6b0] sm:$0xff]
    %v313 = vld [vmem:[#allocation8 + $0x6b8] sm:$0xff]
    %v314 = vld [vmem:[#allocation8 + $0x6c0] sm:$0xff]
    %v315 = vld [vmem:[#allocation8 + $0x6c8] sm:$0xff]
    %v316 = vld [vmem:[#allocation8 + $0x6d0] sm:$0xff]
    %v317 = vld [vmem:[#allocation8 + $0x6d8] sm:$0xff]
    %v318 = vld [vmem:[#allocation8 + $0x6e0] sm:$0xff]
    %v319 = vld [vmem:[#allocation8 + $0x6e8] sm:$0xff]
    %v320 = vld [vmem:[#allocation8 + $0x6f0] sm:$0xff]
    %v321 = vld [vmem:[#allocation8 + $0x6f8] sm:$0xff]
    %v322 = vld [vmem:[#allocation8 + $0x700] sm:$0xff]
    %v323 = vld [vmem:[#allocation8 + $0x708] sm:$0xff]
    %v324 = vld [vmem:[#allocation8 + $0x710] sm:$0xff]
    %v325 = vld [vmem:[#allocation8 + $0x718] sm:$0xff]
    %v326 = vld [vmem:[#allocation8 + $0x720] sm:$0xff]
    %v327 = vld [vmem:[#allocation8 + $0x728] sm:$0xff]
    %v328 = vld [vmem:[#allocation8 + $0x730] sm:$0xff]
    %v329 = vld [vmem:[#allocation8 + $0x738] sm:$0xff]
    %v330 = vld [vmem:[#allocation8 + $0x740] sm:$0xff]
    %v331 = vld [vmem:[#allocation8 + $0x748] sm:$0xff]
    %v332 = vld [vmem:[#allocation8 + $0x750] sm:$0xff]
    %v333 = vld [vmem:[#allocation8 + $0x758] sm:$0xff]
    %v334 = vld [vmem:[#allocation8 + $0x760] sm:$0xff]
    %v335 = vld [vmem:[#allocation8 + $0x768] sm:$0xff]
    %v336 = vld [vmem:[#allocation8 + $0x770] sm:$0xff]
    %v337 = vld [vmem:[#allocation8 + $0x778] sm:$0xff]
    %v338 = vld [vmem:[#allocation8 + $0x780] sm:$0xff]
    %v339 = vld [vmem:[#allocation8 + $0x788] sm:$0xff]
    %v340 = vld [vmem:[#allocation8 + $0x790] sm:$0xff]
    %v341 = vld [vmem:[#allocation8 + $0x798] sm:$0xff]
    %v342 = vld [vmem:[#allocation8 + $0x7a0] sm:$0xff]
    %v343 = vld [vmem:[#allocation8 + $0x7a8] sm:$0xff]
    %v344 = vld [vmem:[#allocation8 + $0x7b0] sm:$0xff]
    %v345 = vld [vmem:[#allocation8 + $0x7b8] sm:$0xff]
    %v346 = vld [vmem:[#allocation8 + $0x7c0] sm:$0xff]
    %v347 = vld [vmem:[#allocation8 + $0x7c8] sm:$0xff]
    %v348 = vld [vmem:[#allocation8 + $0x7d0] sm:$0xff]
    %v349 = vld [vmem:[#allocation8 + $0x7d8] sm:$0xff]
    %v350 = vld [vmem:[#allocation8 + $0x7e0] sm:$0xff]
    %v351 = vld [vmem:[#allocation8 + $0x7e8] sm:$0xff]
    %v352 = vld [vmem:[#allocation8 + $0x7f0] sm:$0xff]
    %v353 = vld [vmem:[#allocation8 + $0x7f8] sm:$0xff]
    %v354 = vld [vmem:[%s5] sm:$0xff]
    %v355 = vld [vmem:[%s6] sm:$0xff]
    %v356 = vld [vmem:[%s8] sm:$0xf]
    %v357 = vld [vmem:[%s9] sm:$0xf]
    %v358 = vld [vmem:[%s0] sm:$0xff]
    %v359 = vld [vmem:[#allocation2] sm:$0xff]
    %v360 = vld [vmem:[#allocation2 + $0x8] sm:$0xff]
    %v361 = vld [vmem:[#allocation2 + $0x10] sm:$0xff]
    %v362 = vld [vmem:[#allocation2 + $0x18] sm:$0xff]
    %v363 = vld [vmem:[#allocation5] sm:$0x1]
    %v365 = vlaneseq
    %v366 = vshrl.u32 %v365, 7
    %v367 = vsub.s32 0, %v366
    %v368 = vrot.slane %v363, %v367
    %vm370 = vcmask 261120
    %v372 = vsel %vm370, %v358, 0
    %374 = vmatprep.subr.mxu0 0.0
    %375 = vmatpush1.msra.mxu0 %v359
    %376 = vmatprep.subr.mxu0 0.0
    %377 = vmatpush1.msra.mxu0 %v360
    %378 = vmatprep.subr.mxu0 0.0
    %379 = vmatpush1.msra.mxu0 %v361
    %380 = vmatprep.subr.mxu0 0.0
    %381 = vmatpush1.msra.mxu0 %v362
    %382 = vmatprep.subr.mxu0 0.0
    %383 = vmatpush1.msra.mxu0 0.0
    %384 = vmatprep.subr.mxu0 0.0
    %385 = vmatpush1.msra.mxu0 0.0
    %386 = vmatprep.subr.mxu0 0.0
    %387 = vmatpush1.msra.mxu0 0.0
    %388 = vmatprep.subr.mxu0 0.0
    %389 = vmatpush1.msra.mxu0 0.0
    %390 = vmatprep.subr.mxu0 0.0
    %391 = vmatpush1.msra.mxu0 0.0
    %392 = vmatprep.subr.mxu0 0.0
    %393 = vmatpush1.msra.mxu0 0.0
    %394 = vmatprep.subr.mxu0 0.0
    %395 = vmatpush1.msra.mxu0 0.0
    %396 = vmatprep.subr.mxu0 0.0
    %397 = vmatpush1.msra.mxu0 0.0
    %398 = vmatprep.subr.mxu0 0.0
    %399 = vmatpush1.msra.mxu0 0.0
    %400 = vmatprep.subr.mxu0 0.0
    %401 = vmatpush1.msra.mxu0 0.0
    %402 = vmatprep.subr.mxu0 0.0
    %403 = vmatpush1.msra.mxu0 0.0
    %404 = vmatprep.subr.mxu0 0.0
    %405 = vmatpush1.msra.mxu0 0.0
    %406 = vmatprep.subr.mxu0 0.0
    %407 = vmatpush1.msra.mxu0 0.0
    %408 = vmatprep.subr.mxu0 0.0
    %409 = vmatpush1.msra.mxu0 0.0
    %410 = vmatprep.subr.mxu0 0.0
    %411 = vmatpush1.msra.mxu0 0.0
    %412 = vmatprep.subr.mxu0 0.0
    %413 = vmatpush1.msra.mxu0 0.0
    %414 = vmatprep.subr.mxu0 0.0
    %415 = vmatpush1.msra.mxu0 0.0
    %416 = vmatprep.subr.mxu0 0.0
    %417 = vmatpush1.msra.mxu0 0.0
    %418 = vmatprep.subr.mxu0 0.0
    %419 = vmatpush1.msra.mxu0 0.0
    %420 = vmatprep.subr.mxu0 0.0
    %421 = vmatpush1.msra.mxu0 0.0
    %422 = vmatprep.subr.mxu0 0.0
    %423 = vmatpush1.msra.mxu0 0.0
    %424 = vmatprep.subr.mxu0 0.0
    %425 = vmatpush1.msra.mxu0 0.0
    %426 = vmatprep.subr.mxu0 0.0
    %427 = vmatpush1.msra.mxu0 0.0
    %428 = vmatprep.subr.mxu0 0.0
    %429 = vmatpush1.msra.mxu0 0.0
    %430 = vmatprep.subr.mxu0 0.0
    %431 = vmatpush1.msra.mxu0 0.0
    %432 = vmatprep.subr.mxu0 0.0
    %433 = vmatpush1.msra.mxu0 0.0
    %434 = vmatprep.subr.mxu0 0.0
    %435 = vmatpush1.msra.mxu0 0.0
    %436 = vmatprep.subr.mxu0 0.0
    %437 = vmatpush1.msra.mxu0 0.0
    %438 = vmatprep.mubr.f32.mxu0 0.0
    %439 = vmatmul.mubr.f32.gmra.mrb[0].mxu0 %v372
    %v440 = vpop.f32.mrb[0].mxu0
    %v441 = vadd.f32 %v368, %v440
    %v442 = vpop.f32.mrb[0].mxu0
    %443 = vdwg.mxu0
    %v444 = vld [vmem:[#allocation7] sm:$0xff]
    %v445 = vld [vmem:[#allocation7 + $0x8] sm:$0xff]
    %v446 = vld [vmem:[#allocation7 + $0x10] sm:$0xff]
    %v447 = vld [vmem:[#allocation7 + $0x18] sm:$0xff]
    %v448 = vld [vmem:[#allocation7 + $0x20] sm:$0xff]
    %v449 = vld [vmem:[#allocation7 + $0x28] sm:$0xff]
    %v450 = vld [vmem:[#allocation7 + $0x30] sm:$0xff]
    %v451 = vld [vmem:[#allocation7 + $0x38] sm:$0xff]
    %v452 = vld [vmem:[#allocation7 + $0x40] sm:$0xff]
    %v453 = vld [vmem:[#allocation7 + $0x48] sm:$0xff]
    %v454 = vld [vmem:[#allocation7 + $0x50] sm:$0xff]
    %v455 = vld [vmem:[#allocation7 + $0x58] sm:$0xff]
    %v456 = vld [vmem:[#allocation7 + $0x60] sm:$0xff]
    %v457 = vld [vmem:[#allocation7 + $0x68] sm:$0xff]
    %v458 = vld [vmem:[#allocation7 + $0x70] sm:$0xff]
    %v459 = vld [vmem:[#allocation7 + $0x78] sm:$0xff]
    %v460 = vld [vmem:[#allocation7 + $0x80] sm:$0xff]
    %v461 = vld [vmem:[#allocation7 + $0x88] sm:$0xff]
    %v462 = vld [vmem:[#allocation7 + $0x90] sm:$0xff]
    %v463 = vld [vmem:[#allocation7 + $0x98] sm:$0xff]
    %v464 = vld [vmem:[#allocation7 + $0xa0] sm:$0xff]
    %v465 = vld [vmem:[#allocation7 + $0xa8] sm:$0xff]
    %v466 = vld [vmem:[#allocation7 + $0xb0] sm:$0xff]
    %v467 = vld [vmem:[#allocation7 + $0xb8] sm:$0xff]
    %v468 = vld [vmem:[#allocation7 + $0xc0] sm:$0xff]
    %v469 = vld [vmem:[#allocation7 + $0xc8] sm:$0xff]
    %v470 = vld [vmem:[#allocation7 + $0xd0] sm:$0xff]
    %v471 = vld [vmem:[#allocation7 + $0xd8] sm:$0xff]
    %v472 = vld [vmem:[#allocation7 + $0xe0] sm:$0xff]
    %v473 = vld [vmem:[#allocation7 + $0xe8] sm:$0xff]
    %v474 = vld [vmem:[#allocation7 + $0xf0] sm:$0xff]
    %v475 = vld [vmem:[#allocation7 + $0xf8] sm:$0xff]
    %v476 = vld [vmem:[#allocation7 + $0x100] sm:$0xff]
    %v477 = vld [vmem:[#allocation7 + $0x108] sm:$0xff]
    %v478 = vld [vmem:[#allocation7 + $0x110] sm:$0xff]
    %v479 = vld [vmem:[#allocation7 + $0x118] sm:$0xff]
    %v480 = vld [vmem:[#allocation7 + $0x120] sm:$0xff]
    %v481 = vld [vmem:[#allocation7 + $0x128] sm:$0xff]
    %v482 = vld [vmem:[#allocation7 + $0x130] sm:$0xff]
    %v483 = vld [vmem:[#allocation7 + $0x138] sm:$0xff]
    %v484 = vld [vmem:[#allocation7 + $0x140] sm:$0xff]
    %v485 = vld [vmem:[#allocation7 + $0x148] sm:$0xff]
    %v486 = vld [vmem:[#allocation7 + $0x150] sm:$0xff]
    %v487 = vld [vmem:[#allocation7 + $0x158] sm:$0xff]
    %v488 = vld [vmem:[#allocation7 + $0x160] sm:$0xff]
    %v489 = vld [vmem:[#allocation7 + $0x168] sm:$0xff]
    %v490 = vld [vmem:[#allocation7 + $0x170] sm:$0xff]
    %v491 = vld [vmem:[#allocation7 + $0x178] sm:$0xff]
    %v492 = vld [vmem:[#allocation7 + $0x180] sm:$0xff]
    %v493 = vld [vmem:[#allocation7 + $0x188] sm:$0xff]
    %v494 = vld [vmem:[#allocation7 + $0x190] sm:$0xff]
    %v495 = vld [vmem:[#allocation7 + $0x198] sm:$0xff]
    %v496 = vld [vmem:[#allocation7 + $0x1a0] sm:$0xff]
    %v497 = vld [vmem:[#allocation7 + $0x1a8] sm:$0xff]
    %v498 = vld [vmem:[#allocation7 + $0x1b0] sm:$0xff]
    %v499 = vld [vmem:[#allocation7 + $0x1b8] sm:$0xff]
    %v500 = vld [vmem:[#allocation7 + $0x1c0] sm:$0xff]
    %v501 = vld [vmem:[#allocation7 + $0x1c8] sm:$0xff]
    %v502 = vld [vmem:[#allocation7 + $0x1d0] sm:$0xff]
    %v503 = vld [vmem:[#allocation7 + $0x1d8] sm:$0xff]
    %v504 = vld [vmem:[#allocation7 + $0x1e0] sm:$0xff]
    %v505 = vld [vmem:[#allocation7 + $0x1e8] sm:$0xff]
    %v506 = vld [vmem:[#allocation7 + $0x1f0] sm:$0xff]
    %v507 = vld [vmem:[#allocation7 + $0x1f8] sm:$0xff]
    %v508 = vld [vmem:[%s4] sm:$0xf]
    %v510 = vlaneseq
    %v511 = vshrl.u32 %v510, 7
    %v512 = vsub.s32 0, %v511
    %v513 = vrot.slane %v508, %v512
    %v514 = vlaneseq
    %v515 = vshrl.u32 %v514, 7
    %v516 = vsub.s32 1, %v515
    %v517 = vrot.slane %v508, %v516
    %v518 = vlaneseq
    %v519 = vshrl.u32 %v518, 7
    %v520 = vsub.s32 2, %v519
    %v521 = vrot.slane %v508, %v520
    %v522 = vlaneseq
    %v523 = vshrl.u32 %v522, 7
    %v524 = vsub.s32 3, %v523
    %v525 = vrot.slane %v508, %v524
    %530 = vmatprep.subr.mxu0 %v445
    %531 = vmatpush1.msra.mxu0 %v444
    %532 = vmatprep.subr.mxu0 %v449
    %533 = vmatpush1.msra.mxu0 %v448
    %534 = vmatprep.subr.mxu0 %v453
    %535 = vmatpush1.msra.mxu0 %v452
    %536 = vmatprep.subr.mxu0 %v457
    %537 = vmatpush1.msra.mxu0 %v456
    %538 = vmatprep.subr.mxu0 %v461
    %539 = vmatpush1.msra.mxu0 %v460
    %540 = vmatprep.subr.mxu0 %v465
    %541 = vmatpush1.msra.mxu0 %v464
    %542 = vmatprep.subr.mxu0 %v469
    %543 = vmatpush1.msra.mxu0 %v468
    %544 = vmatprep.subr.mxu0 %v473
    %545 = vmatpush1.msra.mxu0 %v472
    %546 = vmatprep.subr.mxu0 %v477
    %547 = vmatpush1.msra.mxu0 %v476
    %548 = vmatprep.subr.mxu0 %v481
    %549 = vmatpush1.msra.mxu0 %v480
    %550 = vmatprep.subr.mxu0 %v485
    %551 = vmatpush1.msra.mxu0 %v484
    %552 = vmatprep.subr.mxu0 %v489
    %553 = vmatpush1.msra.mxu0 %v488
    %554 = vmatprep.subr.mxu0 %v493
    %555 = vmatpush1.msra.mxu0 %v492
    %556 = vmatprep.subr.mxu0 %v497
    %557 = vmatpush1.msra.mxu0 %v496
    %558 = vmatprep.subr.mxu0 %v501
    %559 = vmatpush1.msra.mxu0 %v500
    %560 = vmatprep.subr.mxu0 %v505
    %561 = vmatpush1.msra.mxu0 %v504
    %562 = vmatprep.subr.mxu0 0.0
    %563 = vmatpush1.msra.mxu0 0.0
    %564 = vmatprep.subr.mxu0 0.0
    %565 = vmatpush1.msra.mxu0 0.0
    %566 = vmatprep.subr.mxu0 0.0
    %567 = vmatpush1.msra.mxu0 0.0
    %568 = vmatprep.subr.mxu0 0.0
    %569 = vmatpush1.msra.mxu0 0.0
    %570 = vmatprep.subr.mxu0 0.0
    %571 = vmatpush1.msra.mxu0 0.0
    %572 = vmatprep.subr.mxu0 0.0
    %573 = vmatpush1.msra.mxu0 0.0
    %574 = vmatprep.subr.mxu0 0.0
    %575 = vmatpush1.msra.mxu0 0.0
    %576 = vmatprep.subr.mxu0 0.0
    %577 = vmatpush1.msra.mxu0 0.0
    %578 = vmatprep.subr.mxu0 0.0
    %579 = vmatpush1.msra.mxu0 0.0
    %580 = vmatprep.subr.mxu0 0.0
    %581 = vmatpush1.msra.mxu0 0.0
    %582 = vmatprep.subr.mxu0 0.0
    %583 = vmatpush1.msra.mxu0 0.0
    %584 = vmatprep.subr.mxu0 0.0
    %585 = vmatpush1.msra.mxu0 0.0
    %586 = vmatprep.subr.mxu0 0.0
    %587 = vmatpush1.msra.mxu0 0.0
    %588 = vmatprep.subr.mxu0 0.0
    %589 = vmatpush1.msra.mxu0 0.0
    %590 = vmatprep.subr.mxu0 0.0
    %591 = vmatpush1.msra.mxu0 0.0
    %592 = vmatprep.subr.mxu0 0.0
    %593 = vmatpush1.msra.mxu0 0.0
    %594 = vmatprep.mubr.f32.mxu0 0.0
    %595 = vmatmul.mubr.f32.gmra.mrb[0].mxu0 %v441
    %v596 = vpop.f32.mrb[0].mxu0
    %v597 = vadd.f32 %v513, %v596
    %v598 = vpop.f32.mrb[0].mxu0
    %v599 = vadd.f32 %v517, %v598
    %600 = vdwg.mxu0
    %601 = vmatprep.subr.mxu0 %v447
    %602 = vmatpush1.msra.mxu0 %v446
    %603 = vmatprep.subr.mxu0 %v451
    %604 = vmatpush1.msra.mxu0 %v450
    %605 = vmatprep.subr.mxu0 %v455
    %606 = vmatpush1.msra.mxu0 %v454
    %607 = vmatprep.subr.mxu0 %v459
    %608 = vmatpush1.msra.mxu0 %v458
    %609 = vmatprep.subr.mxu0 %v463
    %610 = vmatpush1.msra.mxu0 %v462
    %611 = vmatprep.subr.mxu0 %v467
    %612 = vmatpush1.msra.mxu0 %v466
    %613 = vmatprep.subr.mxu0 %v471
    %614 = vmatpush1.msra.mxu0 %v470
    %615 = vmatprep.subr.mxu0 %v475
    %616 = vmatpush1.msra.mxu0 %v474
    %617 = vmatprep.subr.mxu0 %v479
    %618 = vmatpush1.msra.mxu0 %v478
    %619 = vmatprep.subr.mxu0 %v483
    %620 = vmatpush1.msra.mxu0 %v482
    %621 = vmatprep.subr.mxu0 %v487
    %622 = vmatpush1.msra.mxu0 %v486
    %623 = vmatprep.subr.mxu0 %v491
    %624 = vmatpush1.msra.mxu0 %v490
    %625 = vmatprep.subr.mxu0 %v495
    %626 = vmatpush1.msra.mxu0 %v494
    %627 = vmatprep.subr.mxu0 %v499
    %628 = vmatpush1.msra.mxu0 %v498
    %629 = vmatprep.subr.mxu0 %v503
    %630 = vmatpush1.msra.mxu0 %v502
    %631 = vmatprep.subr.mxu0 %v507
    %632 = vmatpush1.msra.mxu0 %v506
    %633 = vmatprep.subr.mxu0 0.0
    %634 = vmatpush1.msra.mxu0 0.0
    %635 = vmatprep.subr.mxu0 0.0
    %636 = vmatpush1.msra.mxu0 0.0
    %637 = vmatprep.subr.mxu0 0.0
    %638 = vmatpush1.msra.mxu0 0.0
    %639 = vmatprep.subr.mxu0 0.0
    %640 = vmatpush1.msra.mxu0 0.0
    %641 = vmatprep.subr.mxu0 0.0
    %642 = vmatpush1.msra.mxu0 0.0
    %643 = vmatprep.subr.mxu0 0.0
    %644 = vmatpush1.msra.mxu0 0.0
    %645 = vmatprep.subr.mxu0 0.0
    %646 = vmatpush1.msra.mxu0 0.0
    %647 = vmatprep.subr.mxu0 0.0
    %648 = vmatpush1.msra.mxu0 0.0
    %649 = vmatprep.subr.mxu0 0.0
    %650 = vmatpush1.msra.mxu0 0.0
    %651 = vmatprep.subr.mxu0 0.0
    %652 = vmatpush1.msra.mxu0 0.0
    %653 = vmatprep.subr.mxu0 0.0
    %654 = vmatpush1.msra.mxu0 0.0
    %655 = vmatprep.subr.mxu0 0.0
    %656 = vmatpush1.msra.mxu0 0.0
    %657 = vmatprep.subr.mxu0 0.0
    %658 = vmatpush1.msra.mxu0 0.0
    %659 = vmatprep.subr.mxu0 0.0
    %660 = vmatpush1.msra.mxu0 0.0
    %661 = vmatprep.subr.mxu0 0.0
    %662 = vmatpush1.msra.mxu0 0.0
    %663 = vmatprep.subr.mxu0 0.0
    %664 = vmatpush1.msra.mxu0 0.0
    %665 = vmatprep.mubr.f32.mxu0 0.0
    %666 = vmatmul.mubr.f32.gmra.mrb[0].mxu0 %v441
    %v667 = vpop.f32.mrb[0].mxu0
    %v668 = vadd.f32 %v521, %v667
    %v669 = vpop.f32.mrb[0].mxu0
    %v670 = vadd.f32 %v525, %v669
    %671 = vdwg.mxu0
    %v672 = vmul.f32 %v597, 0.5
    %v673 = vmul.f32 %v599, 0.5
    %v674 = vmul.f32 %v668, 0.5
    %v675 = vtanh.pop %v672
    %v676 = vtanh.pop %v673
    %v677 = vtanh.pop %v674
    %v678 = vmul.f32 %v675, 0.5
    %v679 = vmul.f32 %v676, 0.5
    %v680 = vmul.f32 %v677, 0.5
    %v681 = vadd.f32 %v678, 0.5
    %v682 = vadd.f32 %v679, 0.5
    %v683 = vadd.f32 %v680, 0.5
    %v684 = vtanh.pop %v670
    %v685 = vmul.f32 %v682, 0.0
    %v686 = vmul.f32 %v681, %v684
    %v687 = vadd.f32 %v685, %v686
    %v688 = vtanh.pop %v687
    %v689 = vmul.f32 %v683, %v688
    %v690 = vlaneseq
    %v691 = vshrl.u32 %v690, 7
    %v692 = vsub.s32 0, %v691
    %v693 = vrot.slane %v354, %v692
    %v694 = vmul.f32 %v689, %v693
    %695 = vadd.xlane.f32.xlu0 %v694
    %v696 = vpop.xlane.xlu0 %695
    %v697 = vlaneseq
    %v698 = vshrl.u32 %v697, 7
    %v699 = vsub.s32 0, %v698
    %v700 = vrot.slane %v355, %v699
    %v701 = vadd.f32 %v696, %v700
    %702 = vmatprep.subr.mxu0 %v99
    %703 = vmatpush1.msra.mxu0 %v98
    %704 = vmatprep.subr.mxu0 %v107
    %705 = vmatpush1.msra.mxu0 %v106
    %706 = vmatprep.subr.mxu0 %v115
    %707 = vmatpush1.msra.mxu0 %v114
    %708 = vmatprep.subr.mxu0 %v123
    %709 = vmatpush1.msra.mxu0 %v122
    %710 = vmatprep.subr.mxu0 %v131
    %711 = vmatpush1.msra.mxu0 %v130
    %712 = vmatprep.subr.mxu0 %v139
    %713 = vmatpush1.msra.mxu0 %v138
    %714 = vmatprep.subr.mxu0 %v147
    %715 = vmatpush1.msra.mxu0 %v146
    %716 = vmatprep.subr.mxu0 %v155
    %717 = vmatpush1.msra.mxu0 %v154
    %718 = vmatprep.subr.mxu0 %v163
    %719 = vmatpush1.msra.mxu0 %v162
    %720 = vmatprep.subr.mxu0 %v171
    %721 = vmatpush1.msra.mxu0 %v170
    %722 = vmatprep.subr.mxu0 %v179
    %723 = vmatpush1.msra.mxu0 %v178
    %724 = vmatprep.subr.mxu0 %v187
    %725 = vmatpush1.msra.mxu0 %v186
    %726 = vmatprep.subr.mxu0 %v195
    %727 = vmatpush1.msra.mxu0 %v194
    %728 = vmatprep.subr.mxu0 %v203
    %729 = vmatpush1.msra.mxu0 %v202
    %730 = vmatprep.subr.mxu0 %v211
    %731 = vmatpush1.msra.mxu0 %v210
    %732 = vmatprep.subr.mxu0 %v219
    %733 = vmatpush1.msra.mxu0 %v218
    %734 = vmatprep.subr.mxu0 %v227
    %735 = vmatpush1.msra.mxu0 %v226
    %736 = vmatprep.subr.mxu0 %v235
    %737 = vmatpush1.msra.mxu0 %v234
    %738 = vmatprep.subr.mxu0 %v243
    %739 = vmatpush1.msra.mxu0 %v242
    %740 = vmatprep.subr.mxu0 %v251
    %741 = vmatpush1.msra.mxu0 %v250
    %742 = vmatprep.subr.mxu0 %v259
    %743 = vmatpush1.msra.mxu0 %v258
    %744 = vmatprep.subr.mxu0 %v267
    %745 = vmatpush1.msra.mxu0 %v266
    %746 = vmatprep.subr.mxu0 %v275
    %747 = vmatpush1.msra.mxu0 %v274
    %748 = vmatprep.subr.mxu0 %v283
    %749 = vmatpush1.msra.mxu0 %v282
    %750 = vmatprep.subr.mxu0 %v291
    %751 = vmatpush1.msra.mxu0 %v290
    %752 = vmatprep.subr.mxu0 %v299
    %753 = vmatpush1.msra.mxu0 %v298
    %754 = vmatprep.subr.mxu0 %v307
    %755 = vmatpush1.msra.mxu0 %v306
    %756 = vmatprep.subr.mxu0 %v315
    %757 = vmatpush1.msra.mxu0 %v314
    %758 = vmatprep.subr.mxu0 %v323
    %759 = vmatpush1.msra.mxu0 %v322
    %760 = vmatprep.subr.mxu0 %v331
    %761 = vmatpush1.msra.mxu0 %v330
    %762 = vmatprep.subr.mxu0 %v339
    %763 = vmatpush1.msra.mxu0 %v338
    %764 = vmatprep.subr.mxu0 %v347
    %765 = vmatpush1.msra.mxu0 %v346
    %766 = vmatprep.mubr.f32.mxu0 0.0
    %767 = vmatmul.mubr.f32.gmra.mrb[0].mxu0 %v689
    %v768 = vpop.f32.mrb[0].mxu0
    %v769 = vadd.f32 0.0, %v768
    %v770 = vpop.f32.mrb[0].mxu0
    %v771 = vadd.f32 0.0, %v770
    %772 = vdwg.mxu0
    %773 = vmatprep.subr.mxu0 %v101
    %774 = vmatpush1.msra.mxu0 %v100
    %775 = vmatprep.subr.mxu0 %v109
    %776 = vmatpush1.msra.mxu0 %v108
    %777 = vmatprep.subr.mxu0 %v117
    %778 = vmatpush1.msra.mxu0 %v116
    %779 = vmatprep.subr.mxu0 %v125
    %780 = vmatpush1.msra.mxu0 %v124
    %781 = vmatprep.subr.mxu0 %v133
    %782 = vmatpush1.msra.mxu0 %v132
    %783 = vmatprep.subr.mxu0 %v141
    %784 = vmatpush1.msra.mxu0 %v140
    %785 = vmatprep.subr.mxu0 %v149
    %786 = vmatpush1.msra.mxu0 %v148
    %787 = vmatprep.subr.mxu0 %v157
    %788 = vmatpush1.msra.mxu0 %v156
    %789 = vmatprep.subr.mxu0 %v165
    %790 = vmatpush1.msra.mxu0 %v164
    %791 = vmatprep.subr.mxu0 %v173
    %792 = vmatpush1.msra.mxu0 %v172
    %793 = vmatprep.subr.mxu0 %v181
    %794 = vmatpush1.msra.mxu0 %v180
    %795 = vmatprep.subr.mxu0 %v189
    %796 = vmatpush1.msra.mxu0 %v188
    %797 = vmatprep.subr.mxu0 %v197
    %798 = vmatpush1.msra.mxu0 %v196
    %799 = vmatprep.subr.mxu0 %v205
    %800 = vmatpush1.msra.mxu0 %v204
    %801 = vmatprep.subr.mxu0 %v213
    %802 = vmatpush1.msra.mxu0 %v212
    %803 = vmatprep.subr.mxu0 %v221
    %804 = vmatpush1.msra.mxu0 %v220
    %805 = vmatprep.subr.mxu0 %v229
    %806 = vmatpush1.msra.mxu0 %v228
    %807 = vmatprep.subr.mxu0 %v237
    %808 = vmatpush1.msra.mxu0 %v236
    %809 = vmatprep.subr.mxu0 %v245
    %810 = vmatpush1.msra.mxu0 %v244
    %811 = vmatprep.subr.mxu0 %v253
    %812 = vmatpush1.msra.mxu0 %v252
    %813 = vmatprep.subr.mxu0 %v261
    %814 = vmatpush1.msra.mxu0 %v260
    %815 = vmatprep.subr.mxu0 %v269
    %816 = vmatpush1.msra.mxu0 %v268
    %817 = vmatprep.subr.mxu0 %v277
    %818 = vmatpush1.msra.mxu0 %v276
    %819 = vmatprep.subr.mxu0 %v285
    %820 = vmatpush1.msra.mxu0 %v284
    %821 = vmatprep.subr.mxu0 %v293
    %822 = vmatpush1.msra.mxu0 %v292
    %823 = vmatprep.subr.mxu0 %v301
    %824 = vmatpush1.msra.mxu0 %v300
    %825 = vmatprep.subr.mxu0 %v309
    %826 = vmatpush1.msra.mxu0 %v308
    %827 = vmatprep.subr.mxu0 %v317
    %828 = vmatpush1.msra.mxu0 %v316
    %829 = vmatprep.subr.mxu0 %v325
    %830 = vmatpush1.msra.mxu0 %v324
    %831 = vmatprep.subr.mxu0 %v333
    %832 = vmatpush1.msra.mxu0 %v332
    %833 = vmatprep.subr.mxu0 %v341
    %834 = vmatpush1.msra.mxu0 %v340
    %835 = vmatprep.subr.mxu0 %v349
    %836 = vmatpush1.msra.mxu0 %v348
    %837 = vmatprep.mubr.f32.mxu0 0.0
    %838 = vmatmul.mubr.f32.gmra.mrb[0].mxu0 %v689
    %v839 = vpop.f32.mrb[0].mxu0
    %v840 = vadd.f32 0.0, %v839
    %v841 = vpop.f32.mrb[0].mxu0
    %v842 = vadd.f32 0.0, %v841
    %843 = vdwg.mxu0
    %844 = vmatprep.subr.mxu0 %v103
    %845 = vmatpush1.msra.mxu0 %v102
    %846 = vmatprep.subr.mxu0 %v111
    %847 = vmatpush1.msra.mxu0 %v110
    %848 = vmatprep.subr.mxu0 %v119
    %849 = vmatpush1.msra.mxu0 %v118
    %850 = vmatprep.subr.mxu0 %v127
    %851 = vmatpush1.msra.mxu0 %v126
    %852 = vmatprep.subr.mxu0 %v135
    %853 = vmatpush1.msra.mxu0 %v134
    %854 = vmatprep.subr.mxu0 %v143
    %855 = vmatpush1.msra.mxu0 %v142
    %856 = vmatprep.subr.mxu0 %v151
    %857 = vmatpush1.msra.mxu0 %v150
    %858 = vmatprep.subr.mxu0 %v159
    %859 = vmatpush1.msra.mxu0 %v158
    %860 = vmatprep.subr.mxu0 %v167
    %861 = vmatpush1.msra.mxu0 %v166
    %862 = vmatprep.subr.mxu0 %v175
    %863 = vmatpush1.msra.mxu0 %v174
    %864 = vmatprep.subr.mxu0 %v183
    %865 = vmatpush1.msra.mxu0 %v182
    %866 = vmatprep.subr.mxu0 %v191
    %867 = vmatpush1.msra.mxu0 %v190
    %868 = vmatprep.subr.mxu0 %v199
    %869 = vmatpush1.msra.mxu0 %v198
    %870 = vmatprep.subr.mxu0 %v207
    %871 = vmatpush1.msra.mxu0 %v206
    %872 = vmatprep.subr.mxu0 %v215
    %873 = vmatpush1.msra.mxu0 %v214
    %874 = vmatprep.subr.mxu0 %v223
    %875 = vmatpush1.msra.mxu0 %v222
    %876 = vmatprep.subr.mxu0 %v231
    %877 = vmatpush1.msra.mxu0 %v230
    %878 = vmatprep.subr.mxu0 %v239
    %879 = vmatpush1.msra.mxu0 %v238
    %880 = vmatprep.subr.mxu0 %v247
    %881 = vmatpush1.msra.mxu0 %v246
    %882 = vmatprep.subr.mxu0 %v255
    %883 = vmatpush1.msra.mxu0 %v254
    %884 = vmatprep.subr.mxu0 %v263
    %885 = vmatpush1.msra.mxu0 %v262
    %886 = vmatprep.subr.mxu0 %v271
    %887 = vmatpush1.msra.mxu0 %v270
    %888 = vmatprep.subr.mxu0 %v279
    %889 = vmatpush1.msra.mxu0 %v278
    %890 = vmatprep.subr.mxu0 %v287
    %891 = vmatpush1.msra.mxu0 %v286
    %892 = vmatprep.subr.mxu0 %v295
    %893 = vmatpush1.msra.mxu0 %v294
    %894 = vmatprep.subr.mxu0 %v303
    %895 = vmatpush1.msra.mxu0 %v302
    %896 = vmatprep.subr.mxu0 %v311
    %897 = vmatpush1.msra.mxu0 %v310
    %898 = vmatprep.subr.mxu0 %v319
    %899 = vmatpush1.msra.mxu0 %v318
    %900 = vmatprep.subr.mxu0 %v327
    %901 = vmatpush1.msra.mxu0 %v326
    %902 = vmatprep.subr.mxu0 %v335
    %903 = vmatpush1.msra.mxu0 %v334
    %904 = vmatprep.subr.mxu0 %v343
    %905 = vmatpush1.msra.mxu0 %v342
    %906 = vmatprep.subr.mxu0 %v351
    %907 = vmatpush1.msra.mxu0 %v350
    %908 = vmatprep.mubr.f32.mxu0 0.0
    %909 = vmatmul.mubr.f32.gmra.mrb[0].mxu0 %v689
    %v910 = vpop.f32.mrb[0].mxu0
    %v911 = vadd.f32 0.0, %v910
    %v912 = vpop.f32.mrb[0].mxu0
    %v913 = vadd.f32 0.0, %v912
    %914 = vdwg.mxu0
    %915 = vmatprep.subr.mxu0 %v105
    %916 = vmatpush1.msra.mxu0 %v104
    %917 = vmatprep.subr.mxu0 %v113
    %918 = vmatpush1.msra.mxu0 %v112
    %919 = vmatprep.subr.mxu0 %v121
    %920 = vmatpush1.msra.mxu0 %v120
    %921 = vmatprep.subr.mxu0 %v129
    %922 = vmatpush1.msra.mxu0 %v128
    %923 = vmatprep.subr.mxu0 %v137
    %924 = vmatpush1.msra.mxu0 %v136
    %925 = vmatprep.subr.mxu0 %v145
    %926 = vmatpush1.msra.mxu0 %v144
    %927 = vmatprep.subr.mxu0 %v153
    %928 = vmatpush1.msra.mxu0 %v152
    %929 = vmatprep.subr.mxu0 %v161
    %930 = vmatpush1.msra.mxu0 %v160
    %931 = vmatprep.subr.mxu0 %v169
    %932 = vmatpush1.msra.mxu0 %v168
    %933 = vmatprep.subr.mxu0 %v177
    %934 = vmatpush1.msra.mxu0 %v176
    %935 = vmatprep.subr.mxu0 %v185
    %936 = vmatpush1.msra.mxu0 %v184
    %937 = vmatprep.subr.mxu0 %v193
    %938 = vmatpush1.msra.mxu0 %v192
    %939 = vmatprep.subr.mxu0 %v201
    %940 = vmatpush1.msra.mxu0 %v200
    %941 = vmatprep.subr.mxu0 %v209
    %942 = vmatpush1.msra.mxu0 %v208
    %943 = vmatprep.subr.mxu0 %v217
    %944 = vmatpush1.msra.mxu0 %v216
    %945 = vmatprep.subr.mxu0 %v225
    %946 = vmatpush1.msra.mxu0 %v224
    %947 = vmatprep.subr.mxu0 %v233
    %948 = vmatpush1.msra.mxu0 %v232
    %949 = vmatprep.subr.mxu0 %v241
    %950 = vmatpush1.msra.mxu0 %v240
    %951 = vmatprep.subr.mxu0 %v249
    %952 = vmatpush1.msra.mxu0 %v248
    %953 = vmatprep.subr.mxu0 %v257
    %954 = vmatpush1.msra.mxu0 %v256
    %955 = vmatprep.subr.mxu0 %v265
    %956 = vmatpush1.msra.mxu0 %v264
    %957 = vmatprep.subr.mxu0 %v273
    %958 = vmatpush1.msra.mxu0 %v272
    %959 = vmatprep.subr.mxu0 %v281
    %960 = vmatpush1.msra.mxu0 %v280
    %961 = vmatprep.subr.mxu0 %v289
    %962 = vmatpush1.msra.mxu0 %v288
    %963 = vmatprep.subr.mxu0 %v297
    %964 = vmatpush1.msra.mxu0 %v296
    %965 = vmatprep.subr.mxu0 %v305
    %966 = vmatpush1.msra.mxu0 %v304
    %967 = vmatprep.subr.mxu0 %v313
    %968 = vmatpush1.msra.mxu0 %v312
    %969 = vmatprep.subr.mxu0 %v321
    %970 = vmatpush1.msra.mxu0 %v320
    %971 = vmatprep.subr.mxu0 %v329
    %972 = vmatpush1.msra.mxu0 %v328
    %973 = vmatprep.subr.mxu0 %v337
    %974 = vmatpush1.msra.mxu0 %v336
    %975 = vmatprep.subr.mxu0 %v345
    %976 = vmatpush1.msra.mxu0 %v344
    %977 = vmatprep.subr.mxu0 %v353
    %978 = vmatpush1.msra.mxu0 %v352
    %979 = vmatprep.mubr.f32.mxu0 0.0
    %980 = vmatmul.mubr.f32.gmra.mrb[0].mxu0 %v689
    %v981 = vpop.f32.mrb[0].mxu0
    %v982 = vadd.f32 0.0, %v981
    %v983 = vpop.f32.mrb[0].mxu0
    %v984 = vadd.f32 0.0, %v983
    %985 = vdwg.mxu0
    %v986 = vadd.f32 %v597, %v769
    %v987 = vadd.f32 %v599, %v771
    %v988 = vadd.f32 %v668, %v840
    %v989 = vadd.f32 %v670, %v842
    %991 = vset.pattern.permute.xlu0 0
    %992 = vperm.xlu0 %991, %v701
    %v993 = vpop.permute.xlu0 %992
    %v996 = vlaneseq
    %v997 = vshrl.u32 %v996, 7
    %v998 = vsub.s32 0, %v997
    %v999 = vrot.slane %v356, %v998
    %v1000 = vlaneseq
    %v1001 = vshrl.u32 %v1000, 7
    %v1002 = vsub.s32 1, %v1001
    %v1003 = vrot.slane %v356, %v1002
    %v1004 = vlaneseq
    %v1005 = vshrl.u32 %v1004, 7
    %v1006 = vsub.s32 2, %v1005
    %v1007 = vrot.slane %v356, %v1006
    %v1008 = vlaneseq
    %v1009 = vshrl.u32 %v1008, 7
    %v1010 = vsub.s32 3, %v1009
    %v1011 = vrot.slane %v356, %v1010
    %v1016 = vmul.f32 %v993, %v999
    %v1017 = vmul.f32 %v993, %v1003
    %v1018 = vmul.f32 %v993, %v1007
    %v1019 = vmul.f32 %v993, %v1011
    %v1021 = vlaneseq
    %v1022 = vshrl.u32 %v1021, 7
    %v1023 = vsub.s32 0, %v1022
    %v1024 = vrot.slane %v357, %v1023
    %v1025 = vlaneseq
    %v1026 = vshrl.u32 %v1025, 7
    %v1027 = vsub.s32 1, %v1026
    %v1028 = vrot.slane %v357, %v1027
    %v1029 = vlaneseq
    %v1030 = vshrl.u32 %v1029, 7
    %v1031 = vsub.s32 2, %v1030
    %v1032 = vrot.slane %v357, %v1031
    %v1033 = vlaneseq
    %v1034 = vshrl.u32 %v1033, 7
    %v1035 = vsub.s32 3, %v1034
    %v1036 = vrot.slane %v357, %v1035
    %v1041 = vadd.f32 %v1016, %v1024
    %v1042 = vadd.f32 %v1017, %v1028
    %v1043 = vadd.f32 %v1018, %v1032
    %v1044 = vadd.f32 %v1019, %v1036
    %v1045 = vadd.f32 %v1041, %v911
    %v1046 = vadd.f32 %v1042, %v913
    %v1047 = vadd.f32 %v1043, %v982
    %v1048 = vadd.f32 %v1044, %v984
    %v1049 = vmul.f32 %v1045, 0.5
    %v1050 = vmul.f32 %v1046, 0.5
    %v1051 = vmul.f32 %v1047, 0.5
    %v1052 = vtanh.pop %v1049
    %v1053 = vtanh.pop %v1050
    %v1054 = vtanh.pop %v1051
    %v1055 = vmul.f32 %v1052, 0.5
    %v1056 = vmul.f32 %v1053, 0.5
    %v1057 = vmul.f32 %v1054, 0.5
    %v1058 = vadd.f32 %v1055, 0.5
    %v1059 = vadd.f32 %v1056, 0.5
    %v1060 = vadd.f32 %v1057, 0.5
    %v1061 = vtanh.pop %v1048
    %v1062 = vmul.f32 %v1059, 0.0
    %v1063 = vmul.f32 %v1058, %v1061
    %v1064 = vadd.f32 %v1062, %v1063
    %v1065 = vtanh.pop %v1064
    %v1066 = vmul.f32 %v1060, %v1065
    %v1067 = vmul.f32 %v986, 0.5
    %v1068 = vmul.f32 %v987, 0.5
    %v1069 = vmul.f32 %v988, 0.5
    %v1070 = vtanh.pop %v1067
    %v1071 = vtanh.pop %v1068
    %v1072 = vtanh.pop %v1069
    %v1073 = vmul.f32 %v1070, 0.5
    %v1074 = vmul.f32 %v1071, 0.5
    %v1075 = vmul.f32 %v1072, 0.5
    %v1076 = vadd.f32 %v1073, 0.5
    %v1077 = vadd.f32 %v1074, 0.5
    %v1078 = vadd.f32 %v1075, 0.5
    %v1079 = vtanh.pop %v989
    %v1080 = vmul.f32 %v1077, %v687
    %v1081 = vmul.f32 %v1076, %v1079
    %v1082 = vadd.f32 %v1080, %v1081
    %v1083 = vtanh.pop %v1082
    %v1084 = vmul.f32 %v1078, %v1083
    %v1085 = vlaneseq
    %v1086 = vshrl.u32 %v1085, 7
    %v1087 = vsub.s32 1, %v1086
    %v1088 = vrot.slane %v354, %v1087
    %v1089 = vmul.f32 %v1084, %v1088
    %1090 = vadd.xlane.f32.xlu0 %v1089
    %v1091 = vpop.xlane.xlu0 %1090
    %v1092 = vlaneseq
    %v1093 = vshrl.u32 %v1092, 7
    %v1094 = vsub.s32 1, %v1093
    %v1095 = vrot.slane %v355, %v1094
    %v1096 = vadd.f32 %v1091, %v1095
    %1097 = vmatprep.subr.mxu0 %v99
    %1098 = vmatpush1.msra.mxu0 %v98
    %1099 = vmatprep.subr.mxu0 %v107
    %1100 = vmatpush1.msra.mxu0 %v106
    %1101 = vmatprep.subr.mxu0 %v115
    %1102 = vmatpush1.msra.mxu0 %v114
    %1103 = vmatprep.subr.mxu0 %v123
    %1104 = vmatpush1.msra.mxu0 %v122
    %1105 = vmatprep.subr.mxu0 %v131
    %1106 = vmatpush1.msra.mxu0 %v130
    %1107 = vmatprep.subr.mxu0 %v139
    %1108 = vmatpush1.msra.mxu0 %v138
    %1109 = vmatprep.subr.mxu0 %v147
    %1110 = vmatpush1.msra.mxu0 %v146
    %1111 = vmatprep.subr.mxu0 %v155
    %1112 = vmatpush1.msra.mxu0 %v154
    %1113 = vmatprep.subr.mxu0 %v163
    %1114 = vmatpush1.msra.mxu0 %v162
    %1115 = vmatprep.subr.mxu0 %v171
    %1116 = vmatpush1.msra.mxu0 %v170
    %1117 = vmatprep.subr.mxu0 %v179
    %1118 = vmatpush1.msra.mxu0 %v178
    %1119 = vmatprep.subr.mxu0 %v187
    %1120 = vmatpush1.msra.mxu0 %v186
    %1121 = vmatprep.subr.mxu0 %v195
    %1122 = vmatpush1.msra.mxu0 %v194
    %1123 = vmatprep.subr.mxu0 %v203
    %1124 = vmatpush1.msra.mxu0 %v202
    %1125 = vmatprep.subr.mxu0 %v211
    %1126 = vmatpush1.msra.mxu0 %v210
    %1127 = vmatprep.subr.mxu0 %v219
    %1128 = vmatpush1.msra.mxu0 %v218
    %1129 = vmatprep.subr.mxu0 %v227
    %1130 = vmatpush1.msra.mxu0 %v226
    %1131 = vmatprep.subr.mxu0 %v235
    %1132 = vmatpush1.msra.mxu0 %v234
    %1133 = vmatprep.subr.mxu0 %v243
    %1134 = vmatpush1.msra.mxu0 %v242
    %1135 = vmatprep.subr.mxu0 %v251
    %1136 = vmatpush1.msra.mxu0 %v250
    %1137 = vmatprep.subr.mxu0 %v259
    %1138 = vmatpush1.msra.mxu0 %v258
    %1139 = vmatprep.subr.mxu0 %v267
    %1140 = vmatpush1.msra.mxu0 %v266
    %1141 = vmatprep.subr.mxu0 %v275
    %1142 = vmatpush1.msra.mxu0 %v274
    %1143 = vmatprep.subr.mxu0 %v283
    %1144 = vmatpush1.msra.mxu0 %v282
    %1145 = vmatprep.subr.mxu0 %v291
    %1146 = vmatpush1.msra.mxu0 %v290
    %1147 = vmatprep.subr.mxu0 %v299
    %1148 = vmatpush1.msra.mxu0 %v298
    %1149 = vmatprep.subr.mxu0 %v307
    %1150 = vmatpush1.msra.mxu0 %v306
    %1151 = vmatprep.subr.mxu0 %v315
    %1152 = vmatpush1.msra.mxu0 %v314
    %1153 = vmatprep.subr.mxu0 %v323
    %1154 = vmatpush1.msra.mxu0 %v322
    %1155 = vmatprep.subr.mxu0 %v331
    %1156 = vmatpush1.msra.mxu0 %v330
    %1157 = vmatprep.subr.mxu0 %v339
    %1158 = vmatpush1.msra.mxu0 %v338
    %1159 = vmatprep.subr.mxu0 %v347
    %1160 = vmatpush1.msra.mxu0 %v346
    %1161 = vmatprep.mubr.f32.mxu0 %v1066
    %1162 = vmatmul.mubr.f32.gmra.mrb[0].mxu0 %v1084
    %v1163 = vpop.f32.mrb[0].mxu0
    %v1164 = vadd.f32 0.0, %v1163
    %v1165 = vpop.f32.mrb[0].mxu0
    %v1166 = vadd.f32 0.0, %v1165
    %1167 = vdwg.mxu0
    %1168 = vmatprep.subr.mxu0 %v101
    %1169 = vmatpush1.msra.mxu0 %v100
    %1170 = vmatprep.subr.mxu0 %v109
    %1171 = vmatpush1.msra.mxu0 %v108
    %1172 = vmatprep.subr.mxu0 %v117
    %1173 = vmatpush1.msra.mxu0 %v116
    %1174 = vmatprep.subr.mxu0 %v125
    %1175 = vmatpush1.msra.mxu0 %v124
    %1176 = vmatprep.subr.mxu0 %v133
    %1177 = vmatpush1.msra.mxu0 %v132
    %1178 = vmatprep.subr.mxu0 %v141
    %1179 = vmatpush1.msra.mxu0 %v140
    %1180 = vmatprep.subr.mxu0 %v149
    %1181 = vmatpush1.msra.mxu0 %v148
    %1182 = vmatprep.subr.mxu0 %v157
    %1183 = vmatpush1.msra.mxu0 %v156
    %1184 = vmatprep.subr.mxu0 %v165
    %1185 = vmatpush1.msra.mxu0 %v164
    %1186 = vmatprep.subr.mxu0 %v173
    %1187 = vmatpush1.msra.mxu0 %v172
    %1188 = vmatprep.subr.mxu0 %v181
    %1189 = vmatpush1.msra.mxu0 %v180
    %1190 = vmatprep.subr.mxu0 %v189
    %1191 = vmatpush1.msra.mxu0 %v188
    %1192 = vmatprep.subr.mxu0 %v197
    %1193 = vmatpush1.msra.mxu0 %v196
    %1194 = vmatprep.subr.mxu0 %v205
    %1195 = vmatpush1.msra.mxu0 %v204
    %1196 = vmatprep.subr.mxu0 %v213
    %1197 = vmatpush1.msra.mxu0 %v212
    %1198 = vmatprep.subr.mxu0 %v221
    %1199 = vmatpush1.msra.mxu0 %v220
    %1200 = vmatprep.subr.mxu0 %v229
    %1201 = vmatpush1.msra.mxu0 %v228
    %1202 = vmatprep.subr.mxu0 %v237
    %1203 = vmatpush1.msra.mxu0 %v236
    %1204 = vmatprep.subr.mxu0 %v245
    %1205 = vmatpush1.msra.mxu0 %v244
    %1206 = vmatprep.subr.mxu0 %v253
    %1207 = vmatpush1.msra.mxu0 %v252
    %1208 = vmatprep.subr.mxu0 %v261
    %1209 = vmatpush1.msra.mxu0 %v260
    %1210 = vmatprep.subr.mxu0 %v269
    %1211 = vmatpush1.msra.mxu0 %v268
    %1212 = vmatprep.subr.mxu0 %v277
    %1213 = vmatpush1.msra.mxu0 %v276
    %1214 = vmatprep.subr.mxu0 %v285
    %1215 = vmatpush1.msra.mxu0 %v284
    %1216 = vmatprep.subr.mxu0 %v293
    %1217 = vmatpush1.msra.mxu0 %v292
    %1218 = vmatprep.subr.mxu0 %v301
    %1219 = vmatpush1.msra.mxu0 %v300
    %1220 = vmatprep.subr.mxu0 %v309
    %1221 = vmatpush1.msra.mxu0 %v308
    %1222 = vmatprep.subr.mxu0 %v317
    %1223 = vmatpush1.msra.mxu0 %v316
    %1224 = vmatprep.subr.mxu0 %v325
    %1225 = vmatpush1.msra.mxu0 %v324
    %1226 = vmatprep.subr.mxu0 %v333
    %1227 = vmatpush1.msra.mxu0 %v332
    %1228 = vmatprep.subr.mxu0 %v341
    %1229 = vmatpush1.msra.mxu0 %v340
    %1230 = vmatprep.subr.mxu0 %v349
    %1231 = vmatpush1.msra.mxu0 %v348
    %1232 = vmatprep.mubr.f32.mxu0 %v1066
    %1233 = vmatmul.mubr.f32.gmra.mrb[0].mxu0 %v1084
    %v1234 = vpop.f32.mrb[0].mxu0
    %v1235 = vadd.f32 0.0, %v1234
    %v1236 = vpop.f32.mrb[0].mxu0
    %v1237 = vadd.f32 0.0, %v1236
    %1238 = vdwg.mxu0
    %1239 = vmatprep.subr.mxu0 %v103
    %1240 = vmatpush1.msra.mxu0 %v102
    %1241 = vmatprep.subr.mxu0 %v111
    %1242 = vmatpush1.msra.mxu0 %v110
    %1243 = vmatprep.subr.mxu0 %v119
    %1244 = vmatpush1.msra.mxu0 %v118
    %1245 = vmatprep.subr.mxu0 %v127
    %1246 = vmatpush1.msra.mxu0 %v126
    %1247 = vmatprep.subr.mxu0 %v135
    %1248 = vmatpush1.msra.mxu0 %v134
    %1249 = vmatprep.subr.mxu0 %v143
    %1250 = vmatpush1.msra.mxu0 %v142
    %1251 = vmatprep.subr.mxu0 %v151
    %1252 = vmatpush1.msra.mxu0 %v150
    %1253 = vmatprep.subr.mxu0 %v159
    %1254 = vmatpush1.msra.mxu0 %v158
    %1255 = vmatprep.subr.mxu0 %v167
    %1256 = vmatpush1.msra.mxu0 %v166
    %1257 = vmatprep.subr.mxu0 %v175
    %1258 = vmatpush1.msra.mxu0 %v174
    %1259 = vmatprep.subr.mxu0 %v183
    %1260 = vmatpush1.msra.mxu0 %v182
    %1261 = vmatprep.subr.mxu0 %v191
    %1262 = vmatpush1.msra.mxu0 %v190
    %1263 = vmatprep.subr.mxu0 %v199
    %1264 = vmatpush1.msra.mxu0 %v198
    %1265 = vmatprep.subr.mxu0 %v207
    %1266 = vmatpush1.msra.mxu0 %v206
    %1267 = vmatprep.subr.mxu0 %v215
    %1268 = vmatpush1.msra.mxu0 %v214
    %1269 = vmatprep.subr.mxu0 %v223
    %1270 = vmatpush1.msra.mxu0 %v222
    %1271 = vmatprep.subr.mxu0 %v231
    %1272 = vmatpush1.msra.mxu0 %v230
    %1273 = vmatprep.subr.mxu0 %v239
    %1274 = vmatpush1.msra.mxu0 %v238
    %1275 = vmatprep.subr.mxu0 %v247
    %1276 = vmatpush1.msra.mxu0 %v246
    %1277 = vmatprep.subr.mxu0 %v255
    %1278 = vmatpush1.msra.mxu0 %v254
    %1279 = vmatprep.subr.mxu0 %v263
    %1280 = vmatpush1.msra.mxu0 %v262
    %1281 = vmatprep.subr.mxu0 %v271
    %1282 = vmatpush1.msra.mxu0 %v270
    %1283 = vmatprep.subr.mxu0 %v279
    %1284 = vmatpush1.msra.mxu0 %v278
    %1285 = vmatprep.subr.mxu0 %v287
    %1286 = vmatpush1.msra.mxu0 %v286
    %1287 = vmatprep.subr.mxu0 %v295
    %1288 = vmatpush1.msra.mxu0 %v294
    %1289 = vmatprep.subr.mxu0 %v303
    %1290 = vmatpush1.msra.mxu0 %v302
    %1291 = vmatprep.subr.mxu0 %v311
    %1292 = vmatpush1.msra.mxu0 %v310
    %1293 = vmatprep.subr.mxu0 %v319
    %1294 = vmatpush1.msra.mxu0 %v318
    %1295 = vmatprep.subr.mxu0 %v327
    %1296 = vmatpush1.msra.mxu0 %v326
    %1297 = vmatprep.subr.mxu0 %v335
    %1298 = vmatpush1.msra.mxu0 %v334
    %1299 = vmatprep.subr.mxu0 %v343
    %1300 = vmatpush1.msra.mxu0 %v342
    %1301 = vmatprep.subr.mxu0 %v351
    %1302 = vmatpush1.msra.mxu0 %v350
    %1303 = vmatprep.mubr.f32.mxu0 %v1066
    %1304 = vmatmul.mubr.f32.gmra.mrb[0].mxu0 %v1084
    %v1305 = vpop.f32.mrb[0].mxu0
    %v1306 = vadd.f32 0.0, %v1305
    %v1307 = vpop.f32.mrb[0].mxu0
    %v1308 = vadd.f32 0.0, %v1307
    %1309 = vdwg.mxu0
    %1310 = vmatprep.subr.mxu0 %v105
    %1311 = vmatpush1.msra.mxu0 %v104
    %1312 = vmatprep.subr.mxu0 %v113
    %1313 = vmatpush1.msra.mxu0 %v112
    %1314 = vmatprep.subr.mxu0 %v121
    %1315 = vmatpush1.msra.mxu0 %v120
    %1316 = vmatprep.subr.mxu0 %v129
    %1317 = vmatpush1.msra.mxu0 %v128
    %1318 = vmatprep.subr.mxu0 %v137
    %1319 = vmatpush1.msra.mxu0 %v136
    %1320 = vmatprep.subr.mxu0 %v145
    %1321 = vmatpush1.msra.mxu0 %v144
    %1322 = vmatprep.subr.mxu0 %v153
    %1323 = vmatpush1.msra.mxu0 %v152
    %1324 = vmatprep.subr.mxu0 %v161
    %1325 = vmatpush1.msra.mxu0 %v160
    %1326 = vmatprep.subr.mxu0 %v169
    %1327 = vmatpush1.msra.mxu0 %v168
    %1328 = vmatprep.subr.mxu0 %v177
    %1329 = vmatpush1.msra.mxu0 %v176
    %1330 = vmatprep.subr.mxu0 %v185
    %1331 = vmatpush1.msra.mxu0 %v184
    %1332 = vmatprep.subr.mxu0 %v193
    %1333 = vmatpush1.msra.mxu0 %v192
    %1334 = vmatprep.subr.mxu0 %v201
    %1335 = vmatpush1.msra.mxu0 %v200
    %1336 = vmatprep.subr.mxu0 %v209
    %1337 = vmatpush1.msra.mxu0 %v208
    %1338 = vmatprep.subr.mxu0 %v217
    %1339 = vmatpush1.msra.mxu0 %v216
    %1340 = vmatprep.subr.mxu0 %v225
    %1341 = vmatpush1.msra.mxu0 %v224
    %1342 = vmatprep.subr.mxu0 %v233
    %1343 = vmatpush1.msra.mxu0 %v232
    %1344 = vmatprep.subr.mxu0 %v241
    %1345 = vmatpush1.msra.mxu0 %v240
    %1346 = vmatprep.subr.mxu0 %v249
    %1347 = vmatpush1.msra.mxu0 %v248
    %1348 = vmatprep.subr.mxu0 %v257
    %1349 = vmatpush1.msra.mxu0 %v256
    %1350 = vmatprep.subr.mxu0 %v265
    %1351 = vmatpush1.msra.mxu0 %v264
    %1352 = vmatprep.subr.mxu0 %v273
    %1353 = vmatpush1.msra.mxu0 %v272
    %1354 = vmatprep.subr.mxu0 %v281
    %1355 = vmatpush1.msra.mxu0 %v280
    %1356 = vmatprep.subr.mxu0 %v289
    %1357 = vmatpush1.msra.mxu0 %v288
    %1358 = vmatprep.subr.mxu0 %v297
    %1359 = vmatpush1.msra.mxu0 %v296
    %1360 = vmatprep.subr.mxu0 %v305
    %1361 = vmatpush1.msra.mxu0 %v304
    %1362 = vmatprep.subr.mxu0 %v313
    %1363 = vmatpush1.msra.mxu0 %v312
    %1364 = vmatprep.subr.mxu0 %v321
    %1365 = vmatpush1.msra.mxu0 %v320
    %1366 = vmatprep.subr.mxu0 %v329
    %1367 = vmatpush1.msra.mxu0 %v328
    %1368 = vmatprep.subr.mxu0 %v337
    %1369 = vmatpush1.msra.mxu0 %v336
    %1370 = vmatprep.subr.mxu0 %v345
    %1371 = vmatpush1.msra.mxu0 %v344
    %1372 = vmatprep.subr.mxu0 %v353
    %1373 = vmatpush1.msra.mxu0 %v352
    %1374 = vmatprep.mubr.f32.mxu0 %v1066
    %1375 = vmatmul.mubr.f32.gmra.mrb[0].mxu0 %v1084
    %v1376 = vpop.f32.mrb[0].mxu0
    %v1377 = vadd.f32 0.0, %v1376
    %v1378 = vpop.f32.mrb[0].mxu0
    %v1379 = vadd.f32 0.0, %v1378
    %1380 = vdwg.mxu0
    %v1381 = vadd.f32 %v597, %v1164
    %v1382 = vadd.f32 %v599, %v1166
    %v1383 = vadd.f32 %v668, %v1235
    %v1384 = vadd.f32 %v670, %v1237
    %1386 = vset.pattern.permute.xlu0 0
    %1387 = vperm.xlu0 %1386, %v1096
    %v1388 = vpop.permute.xlu0 %1387
    %v1390 = vmul.f32 %v1388, %v999
    %v1391 = vmul.f32 %v1388, %v1003
    %v1392 = vmul.f32 %v1388, %v1007
    %v1393 = vmul.f32 %v1388, %v1011
    %v1394 = vadd.f32 %v1390, %v1024
    %v1395 = vadd.f32 %v1391, %v1028
    %v1396 = vadd.f32 %v1392, %v1032
    %v1397 = vadd.f32 %v1393, %v1036
    %v1398 = vadd.f32 %v1394, %v1306
    %v1399 = vadd.f32 %v1395, %v1308
    %v1400 = vadd.f32 %v1396, %v1377
    %v1401 = vadd.f32 %v1397, %v1379
    %v1402 = vmul.f32 %v1398, 0.5
    %v1403 = vmul.f32 %v1399, 0.5
    %v1404 = vmul.f32 %v1400, 0.5
    %v1405 = vtanh.pop %v1402
    %v1406 = vtanh.pop %v1403
    %v1407 = vtanh.pop %v1404
    %v1408 = vmul.f32 %v1405, 0.5
    %v1409 = vmul.f32 %v1406, 0.5
    %v1410 = vmul.f32 %v1407, 0.5
    %v1411 = vadd.f32 %v1408, 0.5
    %v1412 = vadd.f32 %v1409, 0.5
    %v1413 = vadd.f32 %v1410, 0.5
    %v1414 = vtanh.pop %v1401
    %v1415 = vmul.f32 %v1412, %v1064
    %v1416 = vmul.f32 %v1411, %v1414
    %v1417 = vadd.f32 %v1415, %v1416
    %v1418 = vtanh.pop %v1417
    %v1419 = vmul.f32 %v1413, %v1418
    %v1420 = vmul.f32 %v1381, 0.5
    %v1421 = vmul.f32 %v1382, 0.5
    %v1422 = vmul.f32 %v1383, 0.5
    %v1423 = vtanh.pop %v1420
    %v1424 = vtanh.pop %v1421
    %v1425 = vtanh.pop %v1422
    %v1426 = vmul.f32 %v1423, 0.5
    %v1427 = vmul.f32 %v1424, 0.5
    %v1428 = vmul.f32 %v1425, 0.5
    %v1429 = vadd.f32 %v1426, 0.5
    %v1430 = vadd.f32 %v1427, 0.5
    %v1431 = vadd.f32 %v1428, 0.5
    %v1432 = vtanh.pop %v1384
    %v1433 = vmul.f32 %v1430, %v1082
    %v1434 = vmul.f32 %v1429, %v1432
    %v1435 = vadd.f32 %v1433, %v1434
    %v1436 = vtanh.pop %v1435
    %v1437 = vmul.f32 %v1431, %v1436
    %v1438 = vlaneseq
    %v1439 = vshrl.u32 %v1438, 7
    %v1440 = vsub.s32 2, %v1439
    %v1441 = vrot.slane %v354, %v1440
    %v1442 = vmul.f32 %v1437, %v1441
    %1443 = vadd.xlane.f32.xlu0 %v1442
    %v1444 = vpop.xlane.xlu0 %1443
    %v1445 = vlaneseq
    %v1446 = vshrl.u32 %v1445, 7
    %v1447 = vsub.s32 2, %v1446
    %v1448 = vrot.slane %v355, %v1447
    %v1449 = vadd.f32 %v1444, %v1448
    %1450 = vmatprep.subr.mxu0 %v99
    %1451 = vmatpush1.msra.mxu0 %v98
    %1452 = vmatprep.subr.mxu0 %v107
    %1453 = vmatpush1.msra.mxu0 %v106
    %1454 = vmatprep.subr.mxu0 %v115
    %1455 = vmatpush1.msra.mxu0 %v114
    %1456 = vmatprep.subr.mxu0 %v123
    %1457 = vmatpush1.msra.mxu0 %v122
    %1458 = vmatprep.subr.mxu0 %v131
    %1459 = vmatpush1.msra.mxu0 %v130
    %1460 = vmatprep.subr.mxu0 %v139
    %1461 = vmatpush1.msra.mxu0 %v138
    %1462 = vmatprep.subr.mxu0 %v147
    %1463 = vmatpush1.msra.mxu0 %v146
    %1464 = vmatprep.subr.mxu0 %v155
    %1465 = vmatpush1.msra.mxu0 %v154
    %1466 = vmatprep.subr.mxu0 %v163
    %1467 = vmatpush1.msra.mxu0 %v162
    %1468 = vmatprep.subr.mxu0 %v171
    %1469 = vmatpush1.msra.mxu0 %v170
    %1470 = vmatprep.subr.mxu0 %v179
    %1471 = vmatpush1.msra.mxu0 %v178
    %1472 = vmatprep.subr.mxu0 %v187
    %1473 = vmatpush1.msra.mxu0 %v186
    %1474 = vmatprep.subr.mxu0 %v195
    %1475 = vmatpush1.msra.mxu0 %v194
    %1476 = vmatprep.subr.mxu0 %v203
    %1477 = vmatpush1.msra.mxu0 %v202
    %1478 = vmatprep.subr.mxu0 %v211
    %1479 = vmatpush1.msra.mxu0 %v210
    %1480 = vmatprep.subr.mxu0 %v219
    %1481 = vmatpush1.msra.mxu0 %v218
    %1482 = vmatprep.subr.mxu0 %v227
    %1483 = vmatpush1.msra.mxu0 %v226
    %1484 = vmatprep.subr.mxu0 %v235
    %1485 = vmatpush1.msra.mxu0 %v234
    %1486 = vmatprep.subr.mxu0 %v243
    %1487 = vmatpush1.msra.mxu0 %v242
    %1488 = vmatprep.subr.mxu0 %v251
    %1489 = vmatpush1.msra.mxu0 %v250
    %1490 = vmatprep.subr.mxu0 %v259
    %1491 = vmatpush1.msra.mxu0 %v258
    %1492 = vmatprep.subr.mxu0 %v267
    %1493 = vmatpush1.msra.mxu0 %v266
    %1494 = vmatprep.subr.mxu0 %v275
    %1495 = vmatpush1.msra.mxu0 %v274
    %1496 = vmatprep.subr.mxu0 %v283
    %1497 = vmatpush1.msra.mxu0 %v282
    %1498 = vmatprep.subr.mxu0 %v291
    %1499 = vmatpush1.msra.mxu0 %v290
    %1500 = vmatprep.subr.mxu0 %v299
    %1501 = vmatpush1.msra.mxu0 %v298
    %1502 = vmatprep.subr.mxu0 %v307
    %1503 = vmatpush1.msra.mxu0 %v306
    %1504 = vmatprep.subr.mxu0 %v315
    %1505 = vmatpush1.msra.mxu0 %v314
    %1506 = vmatprep.subr.mxu0 %v323
    %1507 = vmatpush1.msra.mxu0 %v322
    %1508 = vmatprep.subr.mxu0 %v331
    %1509 = vmatpush1.msra.mxu0 %v330
    %1510 = vmatprep.subr.mxu0 %v339
    %1511 = vmatpush1.msra.mxu0 %v338
    %1512 = vmatprep.subr.mxu0 %v347
    %1513 = vmatpush1.msra.mxu0 %v346
    %1514 = vmatprep.mubr.f32.mxu0 %v1419
    %1515 = vmatmul.mubr.f32.gmra.mrb[0].mxu0 %v1437
    %v1516 = vpop.f32.mrb[0].mxu0
    %v1517 = vadd.f32 0.0, %v1516
    %v1518 = vpop.f32.mrb[0].mxu0
    %v1519 = vadd.f32 0.0, %v1518
    %1520 = vdwg.mxu0
    %1521 = vmatprep.subr.mxu0 %v101
    %1522 = vmatpush1.msra.mxu0 %v100
    %1523 = vmatprep.subr.mxu0 %v109
    %1524 = vmatpush1.msra.mxu0 %v108
    %1525 = vmatprep.subr.mxu0 %v117
    %1526 = vmatpush1.msra.mxu0 %v116
    %1527 = vmatprep.subr.mxu0 %v125
    %1528 = vmatpush1.msra.mxu0 %v124
    %1529 = vmatprep.subr.mxu0 %v133
    %1530 = vmatpush1.msra.mxu0 %v132
    %1531 = vmatprep.subr.mxu0 %v141
    %1532 = vmatpush1.msra.mxu0 %v140
    %1533 = vmatprep.subr.mxu0 %v149
    %1534 = vmatpush1.msra.mxu0 %v148
    %1535 = vmatprep.subr.mxu0 %v157
    %1536 = vmatpush1.msra.mxu0 %v156
    %1537 = vmatprep.subr.mxu0 %v165
    %1538 = vmatpush1.msra.mxu0 %v164
    %1539 = vmatprep.subr.mxu0 %v173
    %1540 = vmatpush1.msra.mxu0 %v172
    %1541 = vmatprep.subr.mxu0 %v181
    %1542 = vmatpush1.msra.mxu0 %v180
    %1543 = vmatprep.subr.mxu0 %v189
    %1544 = vmatpush1.msra.mxu0 %v188
    %1545 = vmatprep.subr.mxu0 %v197
    %1546 = vmatpush1.msra.mxu0 %v196
    %1547 = vmatprep.subr.mxu0 %v205
    %1548 = vmatpush1.msra.mxu0 %v204
    %1549 = vmatprep.subr.mxu0 %v213
    %1550 = vmatpush1.msra.mxu0 %v212
    %1551 = vmatprep.subr.mxu0 %v221
    %1552 = vmatpush1.msra.mxu0 %v220
    %1553 = vmatprep.subr.mxu0 %v229
    %1554 = vmatpush1.msra.mxu0 %v228
    %1555 = vmatprep.subr.mxu0 %v237
    %1556 = vmatpush1.msra.mxu0 %v236
    %1557 = vmatprep.subr.mxu0 %v245
    %1558 = vmatpush1.msra.mxu0 %v244
    %1559 = vmatprep.subr.mxu0 %v253
    %1560 = vmatpush1.msra.mxu0 %v252
    %1561 = vmatprep.subr.mxu0 %v261
    %1562 = vmatpush1.msra.mxu0 %v260
    %1563 = vmatprep.subr.mxu0 %v269
    %1564 = vmatpush1.msra.mxu0 %v268
    %1565 = vmatprep.subr.mxu0 %v277
    %1566 = vmatpush1.msra.mxu0 %v276
    %1567 = vmatprep.subr.mxu0 %v285
    %1568 = vmatpush1.msra.mxu0 %v284
    %1569 = vmatprep.subr.mxu0 %v293
    %1570 = vmatpush1.msra.mxu0 %v292
    %1571 = vmatprep.subr.mxu0 %v301
    %1572 = vmatpush1.msra.mxu0 %v300
    %1573 = vmatprep.subr.mxu0 %v309
    %1574 = vmatpush1.msra.mxu0 %v308
    %1575 = vmatprep.subr.mxu0 %v317
    %1576 = vmatpush1.msra.mxu0 %v316
    %1577 = vmatprep.subr.mxu0 %v325
    %1578 = vmatpush1.msra.mxu0 %v324
    %1579 = vmatprep.subr.mxu0 %v333
    %1580 = vmatpush1.msra.mxu0 %v332
    %1581 = vmatprep.subr.mxu0 %v341
    %1582 = vmatpush1.msra.mxu0 %v340
    %1583 = vmatprep.subr.mxu0 %v349
    %1584 = vmatpush1.msra.mxu0 %v348
    %1585 = vmatprep.mubr.f32.mxu0 %v1419
    %1586 = vmatmul.mubr.f32.gmra.mrb[0].mxu0 %v1437
    %v1587 = vpop.f32.mrb[0].mxu0
    %v1588 = vadd.f32 0.0, %v1587
    %v1589 = vpop.f32.mrb[0].mxu0
    %v1590 = vadd.f32 0.0, %v1589
    %1591 = vdwg.mxu0
    %1592 = vmatprep.subr.mxu0 %v103
    %1593 = vmatpush1.msra.mxu0 %v102
    %1594 = vmatprep.subr.mxu0 %v111
    %1595 = vmatpush1.msra.mxu0 %v110
    %1596 = vmatprep.subr.mxu0 %v119
    %1597 = vmatpush1.msra.mxu0 %v118
    %1598 = vmatprep.subr.mxu0 %v127
    %1599 = vmatpush1.msra.mxu0 %v126
    %1600 = vmatprep.subr.mxu0 %v135
    %1601 = vmatpush1.msra.mxu0 %v134
    %1602 = vmatprep.subr.mxu0 %v143
    %1603 = vmatpush1.msra.mxu0 %v142
    %1604 = vmatprep.subr.mxu0 %v151
    %1605 = vmatpush1.msra.mxu0 %v150
    %1606 = vmatprep.subr.mxu0 %v159
    %1607 = vmatpush1.msra.mxu0 %v158
    %1608 = vmatprep.subr.mxu0 %v167
    %1609 = vmatpush1.msra.mxu0 %v166
    %1610 = vmatprep.subr.mxu0 %v175
    %1611 = vmatpush1.msra.mxu0 %v174
    %1612 = vmatprep.subr.mxu0 %v183
    %1613 = vmatpush1.msra.mxu0 %v182
    %1614 = vmatprep.subr.mxu0 %v191
    %1615 = vmatpush1.msra.mxu0 %v190
    %1616 = vmatprep.subr.mxu0 %v199
    %1617 = vmatpush1.msra.mxu0 %v198
    %1618 = vmatprep.subr.mxu0 %v207
    %1619 = vmatpush1.msra.mxu0 %v206
    %1620 = vmatprep.subr.mxu0 %v215
    %1621 = vmatpush1.msra.mxu0 %v214
    %1622 = vmatprep.subr.mxu0 %v223
    %1623 = vmatpush1.msra.mxu0 %v222
    %1624 = vmatprep.subr.mxu0 %v231
    %1625 = vmatpush1.msra.mxu0 %v230
    %1626 = vmatprep.subr.mxu0 %v239
    %1627 = vmatpush1.msra.mxu0 %v238
    %1628 = vmatprep.subr.mxu0 %v247
    %1629 = vmatpush1.msra.mxu0 %v246
    %1630 = vmatprep.subr.mxu0 %v255
    %1631 = vmatpush1.msra.mxu0 %v254
    %1632 = vmatprep.subr.mxu0 %v263
    %1633 = vmatpush1.msra.mxu0 %v262
    %1634 = vmatprep.subr.mxu0 %v271
    %1635 = vmatpush1.msra.mxu0 %v270
    %1636 = vmatprep.subr.mxu0 %v279
    %1637 = vmatpush1.msra.mxu0 %v278
    %1638 = vmatprep.subr.mxu0 %v287
    %1639 = vmatpush1.msra.mxu0 %v286
    %1640 = vmatprep.subr.mxu0 %v295
    %1641 = vmatpush1.msra.mxu0 %v294
    %1642 = vmatprep.subr.mxu0 %v303
    %1643 = vmatpush1.msra.mxu0 %v302
    %1644 = vmatprep.subr.mxu0 %v311
    %1645 = vmatpush1.msra.mxu0 %v310
    %1646 = vmatprep.subr.mxu0 %v319
    %1647 = vmatpush1.msra.mxu0 %v318
    %1648 = vmatprep.subr.mxu0 %v327
    %1649 = vmatpush1.msra.mxu0 %v326
    %1650 = vmatprep.subr.mxu0 %v335
    %1651 = vmatpush1.msra.mxu0 %v334
    %1652 = vmatprep.subr.mxu0 %v343
    %1653 = vmatpush1.msra.mxu0 %v342
    %1654 = vmatprep.subr.mxu0 %v351
    %1655 = vmatpush1.msra.mxu0 %v350
    %1656 = vmatprep.mubr.f32.mxu0 %v1419
    %1657 = vmatmul.mubr.f32.gmra.mrb[0].mxu0 %v1437
    %v1658 = vpop.f32.mrb[0].mxu0
    %v1659 = vadd.f32 0.0, %v1658
    %v1660 = vpop.f32.mrb[0].mxu0
    %v1661 = vadd.f32 0.0, %v1660
    %1662 = vdwg.mxu0
    %1663 = vmatprep.subr.mxu0 %v105
    %1664 = vmatpush1.msra.mxu0 %v104
    %1665 = vmatprep.subr.mxu0 %v113
    %1666 = vmatpush1.msra.mxu0 %v112
    %1667 = vmatprep.subr.mxu0 %v121
    %1668 = vmatpush1.msra.mxu0 %v120
    %1669 = vmatprep.subr.mxu0 %v129
    %1670 = vmatpush1.msra.mxu0 %v128
    %1671 = vmatprep.subr.mxu0 %v137
    %1672 = vmatpush1.msra.mxu0 %v136
    %1673 = vmatprep.subr.mxu0 %v145
    %1674 = vmatpush1.msra.mxu0 %v144
    %1675 = vmatprep.subr.mxu0 %v153
    %1676 = vmatpush1.msra.mxu0 %v152
    %1677 = vmatprep.subr.mxu0 %v161
    %1678 = vmatpush1.msra.mxu0 %v160
    %1679 = vmatprep.subr.mxu0 %v169
    %1680 = vmatpush1.msra.mxu0 %v168
    %1681 = vmatprep.subr.mxu0 %v177
    %1682 = vmatpush1.msra.mxu0 %v176
    %1683 = vmatprep.subr.mxu0 %v185
    %1684 = vmatpush1.msra.mxu0 %v184
    %1685 = vmatprep.subr.mxu0 %v193
    %1686 = vmatpush1.msra.mxu0 %v192
    %1687 = vmatprep.subr.mxu0 %v201
    %1688 = vmatpush1.msra.mxu0 %v200
    %1689 = vmatprep.subr.mxu0 %v209
    %1690 = vmatpush1.msra.mxu0 %v208
    %1691 = vmatprep.subr.mxu0 %v217
    %1692 = vmatpush1.msra.mxu0 %v216
    %1693 = vmatprep.subr.mxu0 %v225
    %1694 = vmatpush1.msra.mxu0 %v224
    %1695 = vmatprep.subr.mxu0 %v233
    %1696 = vmatpush1.msra.mxu0 %v232
    %1697 = vmatprep.subr.mxu0 %v241
    %1698 = vmatpush1.msra.mxu0 %v240
    %1699 = vmatprep.subr.mxu0 %v249
    %1700 = vmatpush1.msra.mxu0 %v248
    %1701 = vmatprep.subr.mxu0 %v257
    %1702 = vmatpush1.msra.mxu0 %v256
    %1703 = vmatprep.subr.mxu0 %v265
    %1704 = vmatpush1.msra.mxu0 %v264
    %1705 = vmatprep.subr.mxu0 %v273
    %1706 = vmatpush1.msra.mxu0 %v272
    %1707 = vmatprep.subr.mxu0 %v281
    %1708 = vmatpush1.msra.mxu0 %v280
    %1709 = vmatprep.subr.mxu0 %v289
    %1710 = vmatpush1.msra.mxu0 %v288
    %1711 = vmatprep.subr.mxu0 %v297
    %1712 = vmatpush1.msra.mxu0 %v296
    %1713 = vmatprep.subr.mxu0 %v305
    %1714 = vmatpush1.msra.mxu0 %v304
    %1715 = vmatprep.subr.mxu0 %v313
    %1716 = vmatpush1.msra.mxu0 %v312
    %1717 = vmatprep.subr.mxu0 %v321
    %1718 = vmatpush1.msra.mxu0 %v320
    %1719 = vmatprep.subr.mxu0 %v329
    %1720 = vmatpush1.msra.mxu0 %v328
    %1721 = vmatprep.subr.mxu0 %v337
    %1722 = vmatpush1.msra.mxu0 %v336
    %1723 = vmatprep.subr.mxu0 %v345
    %1724 = vmatpush1.msra.mxu0 %v344
    %1725 = vmatprep.subr.mxu0 %v353
    %1726 = vmatpush1.msra.mxu0 %v352
    %1727 = vmatprep.mubr.f32.mxu0 %v1419
    %1728 = vmatmul.mubr.f32.gmra.mrb[0].mxu0 %v1437
    %v1729 = vpop.f32.mrb[0].mxu0
    %v1730 = vadd.f32 0.0, %v1729
    %v1731 = vpop.f32.mrb[0].mxu0
    %v1732 = vadd.f32 0.0, %v1731
    %1733 = vdwg.mxu0
    %v1734 = vadd.f32 %v597, %v1517
    %v1735 = vadd.f32 %v599, %v1519
    %v1736 = vadd.f32 %v668, %v1588
    %v1737 = vadd.f32 %v670, %v1590
    %1739 = vset.pattern.permute.xlu0 0
    %1740 = vperm.xlu0 %1739, %v1449
    %v1741 = vpop.permute.xlu0 %1740
    %v1743 = vmul.f32 %v1741, %v999
    %v1744 = vmul.f32 %v1741, %v1003
    %v1745 = vmul.f32 %v1741, %v1007
    %v1746 = vmul.f32 %v1741, %v1011
    %v1747 = vadd.f32 %v1743, %v1024
    %v1748 = vadd.f32 %v1744, %v1028
    %v1749 = vadd.f32 %v1745, %v1032
    %v1750 = vadd.f32 %v1746, %v1036
    %v1751 = vadd.f32 %v1747, %v1659
    %v1752 = vadd.f32 %v1748, %v1661
    %v1753 = vadd.f32 %v1749, %v1730
    %v1754 = vadd.f32 %v1750, %v1732
    %v1755 = vmul.f32 %v1751, 0.5
    %v1756 = vmul.f32 %v1752, 0.5
    %v1757 = vmul.f32 %v1753, 0.5
    %v1758 = vtanh.pop %v1755
    %v1759 = vtanh.pop %v1756
    %v1760 = vtanh.pop %v1757
    %v1761 = vmul.f32 %v1758, 0.5
    %v1762 = vmul.f32 %v1759, 0.5
    %v1763 = vmul.f32 %v1760, 0.5
    %v1764 = vadd.f32 %v1761, 0.5
    %v1765 = vadd.f32 %v1762, 0.5
    %v1766 = vadd.f32 %v1763, 0.5
    %v1767 = vtanh.pop %v1754
    %v1768 = vmul.f32 %v1765, %v1417
    %v1769 = vmul.f32 %v1764, %v1767
    %v1770 = vadd.f32 %v1768, %v1769
    %v1771 = vtanh.pop %v1770
    %v1772 = vmul.f32 %v1766, %v1771
    %v1773 = vmul.f32 %v1734, 0.5
    %v1774 = vmul.f32 %v1735, 0.5
    %v1775 = vmul.f32 %v1736, 0.5
    %v1776 = vtanh.pop %v1773
    %v1777 = vtanh.pop %v1774
    %v1778 = vtanh.pop %v1775
    %v1779 = vmul.f32 %v1776, 0.5
    %v1780 = vmul.f32 %v1777, 0.5
    %v1781 = vmul.f32 %v1778, 0.5
    %v1782 = vadd.f32 %v1779, 0.5
    %v1783 = vadd.f32 %v1780, 0.5
    %v1784 = vadd.f32 %v1781, 0.5
    %v1785 = vtanh.pop %v1737
    %v1786 = vmul.f32 %v1783, %v1435
    %v1787 = vmul.f32 %v1782, %v1785
    %v1788 = vadd.f32 %v1786, %v1787
    %v1789 = vtanh.pop %v1788
    %v1790 = vmul.f32 %v1784, %v1789
    %v1791 = vlaneseq
    %v1792 = vshrl.u32 %v1791, 7
    %v1793 = vsub.s32 3, %v1792
    %v1794 = vrot.slane %v354, %v1793
    %v1795 = vmul.f32 %v1790, %v1794
    %1796 = vadd.xlane.f32.xlu0 %v1795
    %v1797 = vpop.xlane.xlu0 %1796
    %v1798 = vlaneseq
    %v1799 = vshrl.u32 %v1798, 7
    %v1800 = vsub.s32 3, %v1799
    %v1801 = vrot.slane %v355, %v1800
    %v1802 = vadd.f32 %v1797, %v1801
    %1803 = vmatprep.subr.mxu0 %v99
    %1804 = vmatpush1.msra.mxu0 %v98
    %1805 = vmatprep.subr.mxu0 %v107
    %1806 = vmatpush1.msra.mxu0 %v106
    %1807 = vmatprep.subr.mxu0 %v115
    %1808 = vmatpush1.msra.mxu0 %v114
    %1809 = vmatprep.subr.mxu0 %v123
    %1810 = vmatpush1.msra.mxu0 %v122
    %1811 = vmatprep.subr.mxu0 %v131
    %1812 = vmatpush1.msra.mxu0 %v130
    %1813 = vmatprep.subr.mxu0 %v139
    %1814 = vmatpush1.msra.mxu0 %v138
    %1815 = vmatprep.subr.mxu0 %v147
    %1816 = vmatpush1.msra.mxu0 %v146
    %1817 = vmatprep.subr.mxu0 %v155
    %1818 = vmatpush1.msra.mxu0 %v154
    %1819 = vmatprep.subr.mxu0 %v163
    %1820 = vmatpush1.msra.mxu0 %v162
    %1821 = vmatprep.subr.mxu0 %v171
    %1822 = vmatpush1.msra.mxu0 %v170
    %1823 = vmatprep.subr.mxu0 %v179
    %1824 = vmatpush1.msra.mxu0 %v178
    %1825 = vmatprep.subr.mxu0 %v187
    %1826 = vmatpush1.msra.mxu0 %v186
    %1827 = vmatprep.subr.mxu0 %v195
    %1828 = vmatpush1.msra.mxu0 %v194
    %1829 = vmatprep.subr.mxu0 %v203
    %1830 = vmatpush1.msra.mxu0 %v202
    %1831 = vmatprep.subr.mxu0 %v211
    %1832 = vmatpush1.msra.mxu0 %v210
    %1833 = vmatprep.subr.mxu0 %v219
    %1834 = vmatpush1.msra.mxu0 %v218
    %1835 = vmatprep.subr.mxu0 %v227
    %1836 = vmatpush1.msra.mxu0 %v226
    %1837 = vmatprep.subr.mxu0 %v235
    %1838 = vmatpush1.msra.mxu0 %v234
    %1839 = vmatprep.subr.mxu0 %v243
    %1840 = vmatpush1.msra.mxu0 %v242
    %1841 = vmatprep.subr.mxu0 %v251
    %1842 = vmatpush1.msra.mxu0 %v250
    %1843 = vmatprep.subr.mxu0 %v259
    %1844 = vmatpush1.msra.mxu0 %v258
    %1845 = vmatprep.subr.mxu0 %v267
    %1846 = vmatpush1.msra.mxu0 %v266
    %1847 = vmatprep.subr.mxu0 %v275
    %1848 = vmatpush1.msra.mxu0 %v274
    %1849 = vmatprep.subr.mxu0 %v283
    %1850 = vmatpush1.msra.mxu0 %v282
    %1851 = vmatprep.subr.mxu0 %v291
    %1852 = vmatpush1.msra.mxu0 %v290
    %1853 = vmatprep.subr.mxu0 %v299
    %1854 = vmatpush1.msra.mxu0 %v298
    %1855 = vmatprep.subr.mxu0 %v307
    %1856 = vmatpush1.msra.mxu0 %v306
    %1857 = vmatprep.subr.mxu0 %v315
    %1858 = vmatpush1.msra.mxu0 %v314
    %1859 = vmatprep.subr.mxu0 %v323
    %1860 = vmatpush1.msra.mxu0 %v322
    %1861 = vmatprep.subr.mxu0 %v331
    %1862 = vmatpush1.msra.mxu0 %v330
    %1863 = vmatprep.subr.mxu0 %v339
    %1864 = vmatpush1.msra.mxu0 %v338
    %1865 = vmatprep.subr.mxu0 %v347
    %1866 = vmatpush1.msra.mxu0 %v346
    %1867 = vmatprep.mubr.f32.mxu0 %v1772
    %1868 = vmatmul.mubr.f32.gmra.mrb[0].mxu0 %v1790
    %v1869 = vpop.f32.mrb[0].mxu0
    %v1870 = vadd.f32 0.0, %v1869
    %v1871 = vpop.f32.mrb[0].mxu0
    %v1872 = vadd.f32 0.0, %v1871
    %1873 = vdwg.mxu0
    %1874 = vmatprep.subr.mxu0 %v101
    %1875 = vmatpush1.msra.mxu0 %v100
    %1876 = vmatprep.subr.mxu0 %v109
    %1877 = vmatpush1.msra.mxu0 %v108
    %1878 = vmatprep.subr.mxu0 %v117
    %1879 = vmatpush1.msra.mxu0 %v116
    %1880 = vmatprep.subr.mxu0 %v125
    %1881 = vmatpush1.msra.mxu0 %v124
    %1882 = vmatprep.subr.mxu0 %v133
    %1883 = vmatpush1.msra.mxu0 %v132
    %1884 = vmatprep.subr.mxu0 %v141
    %1885 = vmatpush1.msra.mxu0 %v140
    %1886 = vmatprep.subr.mxu0 %v149
    %1887 = vmatpush1.msra.mxu0 %v148
    %1888 = vmatprep.subr.mxu0 %v157
    %1889 = vmatpush1.msra.mxu0 %v156
    %1890 = vmatprep.subr.mxu0 %v165
    %1891 = vmatpush1.msra.mxu0 %v164
    %1892 = vmatprep.subr.mxu0 %v173
    %1893 = vmatpush1.msra.mxu0 %v172
    %1894 = vmatprep.subr.mxu0 %v181
    %1895 = vmatpush1.msra.mxu0 %v180
    %1896 = vmatprep.subr.mxu0 %v189
    %1897 = vmatpush1.msra.mxu0 %v188
    %1898 = vmatprep.subr.mxu0 %v197
    %1899 = vmatpush1.msra.mxu0 %v196
    %1900 = vmatprep.subr.mxu0 %v205
    %1901 = vmatpush1.msra.mxu0 %v204
    %1902 = vmatprep.subr.mxu0 %v213
    %1903 = vmatpush1.msra.mxu0 %v212
    %1904 = vmatprep.subr.mxu0 %v221
    %1905 = vmatpush1.msra.mxu0 %v220
    %1906 = vmatprep.subr.mxu0 %v229
    %1907 = vmatpush1.msra.mxu0 %v228
    %1908 = vmatprep.subr.mxu0 %v237
    %1909 = vmatpush1.msra.mxu0 %v236
    %1910 = vmatprep.subr.mxu0 %v245
    %1911 = vmatpush1.msra.mxu0 %v244
    %1912 = vmatprep.subr.mxu0 %v253
    %1913 = vmatpush1.msra.mxu0 %v252
    %1914 = vmatprep.subr.mxu0 %v261
    %1915 = vmatpush1.msra.mxu0 %v260
    %1916 = vmatprep.subr.mxu0 %v269
    %1917 = vmatpush1.msra.mxu0 %v268
    %1918 = vmatprep.subr.mxu0 %v277
    %1919 = vmatpush1.msra.mxu0 %v276
    %1920 = vmatprep.subr.mxu0 %v285
    %1921 = vmatpush1.msra.mxu0 %v284
    %1922 = vmatprep.subr.mxu0 %v293
    %1923 = vmatpush1.msra.mxu0 %v292
    %1924 = vmatprep.subr.mxu0 %v301
    %1925 = vmatpush1.msra.mxu0 %v300
    %1926 = vmatprep.subr.mxu0 %v309
    %1927 = vmatpush1.msra.mxu0 %v308
    %1928 = vmatprep.subr.mxu0 %v317
    %1929 = vmatpush1.msra.mxu0 %v316
    %1930 = vmatprep.subr.mxu0 %v325
    %1931 = vmatpush1.msra.mxu0 %v324
    %1932 = vmatprep.subr.mxu0 %v333
    %1933 = vmatpush1.msra.mxu0 %v332
    %1934 = vmatprep.subr.mxu0 %v341
    %1935 = vmatpush1.msra.mxu0 %v340
    %1936 = vmatprep.subr.mxu0 %v349
    %1937 = vmatpush1.msra.mxu0 %v348
    %1938 = vmatprep.mubr.f32.mxu0 %v1772
    %1939 = vmatmul.mubr.f32.gmra.mrb[0].mxu0 %v1790
    %v1940 = vpop.f32.mrb[0].mxu0
    %v1941 = vadd.f32 0.0, %v1940
    %v1942 = vpop.f32.mrb[0].mxu0
    %v1943 = vadd.f32 0.0, %v1942
    %1944 = vdwg.mxu0
    %1945 = vmatprep.subr.mxu0 %v103
    %1946 = vmatpush1.msra.mxu0 %v102
    %1947 = vmatprep.subr.mxu0 %v111
    %1948 = vmatpush1.msra.mxu0 %v110
    %1949 = vmatprep.subr.mxu0 %v119
    %1950 = vmatpush1.msra.mxu0 %v118
    %1951 = vmatprep.subr.mxu0 %v127
    %1952 = vmatpush1.msra.mxu0 %v126
    %1953 = vmatprep.subr.mxu0 %v135
    %1954 = vmatpush1.msra.mxu0 %v134
    %1955 = vmatprep.subr.mxu0 %v143
    %1956 = vmatpush1.msra.mxu0 %v142
    %1957 = vmatprep.subr.mxu0 %v151
    %1958 = vmatpush1.msra.mxu0 %v150
    %1959 = vmatprep.subr.mxu0 %v159
    %1960 = vmatpush1.msra.mxu0 %v158
    %1961 = vmatprep.subr.mxu0 %v167
    %1962 = vmatpush1.msra.mxu0 %v166
    %1963 = vmatprep.subr.mxu0 %v175
    %1964 = vmatpush1.msra.mxu0 %v174
    %1965 = vmatprep.subr.mxu0 %v183
    %1966 = vmatpush1.msra.mxu0 %v182
    %1967 = vmatprep.subr.mxu0 %v191
    %1968 = vmatpush1.msra.mxu0 %v190
    %1969 = vmatprep.subr.mxu0 %v199
    %1970 = vmatpush1.msra.mxu0 %v198
    %1971 = vmatprep.subr.mxu0 %v207
    %1972 = vmatpush1.msra.mxu0 %v206
    %1973 = vmatprep.subr.mxu0 %v215
    %1974 = vmatpush1.msra.mxu0 %v214
    %1975 = vmatprep.subr.mxu0 %v223
    %1976 = vmatpush1.msra.mxu0 %v222
    %1977 = vmatprep.subr.mxu0 %v231
    %1978 = vmatpush1.msra.mxu0 %v230
    %1979 = vmatprep.subr.mxu0 %v239
    %1980 = vmatpush1.msra.mxu0 %v238
    %1981 = vmatprep.subr.mxu0 %v247
    %1982 = vmatpush1.msra.mxu0 %v246
    %1983 = vmatprep.subr.mxu0 %v255
    %1984 = vmatpush1.msra.mxu0 %v254
    %1985 = vmatprep.subr.mxu0 %v263
    %1986 = vmatpush1.msra.mxu0 %v262
    %1987 = vmatprep.subr.mxu0 %v271
    %1988 = vmatpush1.msra.mxu0 %v270
    %1989 = vmatprep.subr.mxu0 %v279
    %1990 = vmatpush1.msra.mxu0 %v278
    %1991 = vmatprep.subr.mxu0 %v287
    %1992 = vmatpush1.msra.mxu0 %v286
    %1993 = vmatprep.subr.mxu0 %v295
    %1994 = vmatpush1.msra.mxu0 %v294
    %1995 = vmatprep.subr.mxu0 %v303
    %1996 = vmatpush1.msra.mxu0 %v302
    %1997 = vmatprep.subr.mxu0 %v311
    %1998 = vmatpush1.msra.mxu0 %v310
    %1999 = vmatprep.subr.mxu0 %v319
    %2000 = vmatpush1.msra.mxu0 %v318
    %2001 = vmatprep.subr.mxu0 %v327
    %2002 = vmatpush1.msra.mxu0 %v326
    %2003 = vmatprep.subr.mxu0 %v335
    %2004 = vmatpush1.msra.mxu0 %v334
    %2005 = vmatprep.subr.mxu0 %v343
    %2006 = vmatpush1.msra.mxu0 %v342
    %2007 = vmatprep.subr.mxu0 %v351
    %2008 = vmatpush1.msra.mxu0 %v350
    %2009 = vmatprep.mubr.f32.mxu0 %v1772
    %2010 = vmatmul.mubr.f32.gmra.mrb[0].mxu0 %v1790
    %v2011 = vpop.f32.mrb[0].mxu0
    %v2012 = vadd.f32 0.0, %v2011
    %v2013 = vpop.f32.mrb[0].mxu0
    %v2014 = vadd.f32 0.0, %v2013
    %2015 = vdwg.mxu0
    %2016 = vmatprep.subr.mxu0 %v105
    %2017 = vmatpush1.msra.mxu0 %v104
    %2018 = vmatprep.subr.mxu0 %v113
    %2019 = vmatpush1.msra.mxu0 %v112
    %2020 = vmatprep.subr.mxu0 %v121
    %2021 = vmatpush1.msra.mxu0 %v120
    %2022 = vmatprep.subr.mxu0 %v129
    %2023 = vmatpush1.msra.mxu0 %v128
    %2024 = vmatprep.subr.mxu0 %v137
    %2025 = vmatpush1.msra.mxu0 %v136
    %2026 = vmatprep.subr.mxu0 %v145
    %2027 = vmatpush1.msra.mxu0 %v144
    %2028 = vmatprep.subr.mxu0 %v153
    %2029 = vmatpush1.msra.mxu0 %v152
    %2030 = vmatprep.subr.mxu0 %v161
    %2031 = vmatpush1.msra.mxu0 %v160
    %2032 = vmatprep.subr.mxu0 %v169
    %2033 = vmatpush1.msra.mxu0 %v168
    %2034 = vmatprep.subr.mxu0 %v177
    %2035 = vmatpush1.msra.mxu0 %v176
    %2036 = vmatprep.subr.mxu0 %v185
    %2037 = vmatpush1.msra.mxu0 %v184
    %2038 = vmatprep.subr.mxu0 %v193
    %2039 = vmatpush1.msra.mxu0 %v192
    %2040 = vmatprep.subr.mxu0 %v201
    %2041 = vmatpush1.msra.mxu0 %v200
    %2042 = vmatprep.subr.mxu0 %v209
    %2043 = vmatpush1.msra.mxu0 %v208
    %2044 = vmatprep.subr.mxu0 %v217
    %2045 = vmatpush1.msra.mxu0 %v216
    %2046 = vmatprep.subr.mxu0 %v225
    %2047 = vmatpush1.msra.mxu0 %v224
    %2048 = vmatprep.subr.mxu0 %v233
    %2049 = vmatpush1.msra.mxu0 %v232
    %2050 = vmatprep.subr.mxu0 %v241
    %2051 = vmatpush1.msra.mxu0 %v240
    %2052 = vmatprep.subr.mxu0 %v249
    %2053 = vmatpush1.msra.mxu0 %v248
    %2054 = vmatprep.subr.mxu0 %v257
    %2055 = vmatpush1.msra.mxu0 %v256
    %2056 = vmatprep.subr.mxu0 %v265
    %2057 = vmatpush1.msra.mxu0 %v264
    %2058 = vmatprep.subr.mxu0 %v273
    %2059 = vmatpush1.msra.mxu0 %v272
    %2060 = vmatprep.subr.mxu0 %v281
    %2061 = vmatpush1.msra.mxu0 %v280
    %2062 = vmatprep.subr.mxu0 %v289
    %2063 = vmatpush1.msra.mxu0 %v288
    %2064 = vmatprep.subr.mxu0 %v297
    %2065 = vmatpush1.msra.mxu0 %v296
    %2066 = vmatprep.subr.mxu0 %v305
    %2067 = vmatpush1.msra.mxu0 %v304
    %2068 = vmatprep.subr.mxu0 %v313
    %2069 = vmatpush1.msra.mxu0 %v312
    %2070 = vmatprep.subr.mxu0 %v321
    %2071 = vmatpush1.msra.mxu0 %v320
    %2072 = vmatprep.subr.mxu0 %v329
    %2073 = vmatpush1.msra.mxu0 %v328
    %2074 = vmatprep.subr.mxu0 %v337
    %2075 = vmatpush1.msra.mxu0 %v336
    %2076 = vmatprep.subr.mxu0 %v345
    %2077 = vmatpush1.msra.mxu0 %v344
    %2078 = vmatprep.subr.mxu0 %v353
    %2079 = vmatpush1.msra.mxu0 %v352
    %2080 = vmatprep.mubr.f32.mxu0 %v1772
    %2081 = vmatmul.mubr.f32.gmra.mrb[0].mxu0 %v1790
    %v2082 = vpop.f32.mrb[0].mxu0
    %v2083 = vadd.f32 0.0, %v2082
    %v2084 = vpop.f32.mrb[0].mxu0
    %v2085 = vadd.f32 0.0, %v2084
    %2086 = vdwg.mxu0
    %v2087 = vadd.f32 %v597, %v1870
    %v2088 = vadd.f32 %v599, %v1872
    %v2089 = vadd.f32 %v668, %v1941
    %v2090 = vadd.f32 %v670, %v1943
    %2092 = vset.pattern.permute.xlu0 0
    %2093 = vperm.xlu0 %2092, %v1802
    %v2094 = vpop.permute.xlu0 %2093
    %v2096 = vmul.f32 %v2094, %v999
    %v2097 = vmul.f32 %v2094, %v1003
    %v2098 = vmul.f32 %v2094, %v1007
    %v2099 = vmul.f32 %v2094, %v1011
    %v2100 = vadd.f32 %v2096, %v1024
    %v2101 = vadd.f32 %v2097, %v1028
    %v2102 = vadd.f32 %v2098, %v1032
    %v2103 = vadd.f32 %v2099, %v1036
    %v2104 = vadd.f32 %v2100, %v2012
    %v2105 = vadd.f32 %v2101, %v2014
    %v2106 = vadd.f32 %v2102, %v2083
    %v2107 = vadd.f32 %v2103, %v2085
    %v2108 = vmul.f32 %v2104, 0.5
    %v2109 = vmul.f32 %v2105, 0.5
    %v2110 = vmul.f32 %v2106, 0.5
    %v2111 = vtanh.pop %v2108
    %v2112 = vtanh.pop %v2109
    %v2113 = vtanh.pop %v2110
    %v2114 = vmul.f32 %v2111, 0.5
    %v2115 = vmul.f32 %v2112, 0.5
    %v2116 = vmul.f32 %v2113, 0.5
    %v2117 = vadd.f32 %v2114, 0.5
    %v2118 = vadd.f32 %v2115, 0.5
    %v2119 = vadd.f32 %v2116, 0.5
    %v2120 = vtanh.pop %v2107
    %v2121 = vmul.f32 %v2118, %v1770
    %v2122 = vmul.f32 %v2117, %v2120
    %v2123 = vadd.f32 %v2121, %v2122
    %v2124 = vtanh.pop %v2123
    %v2125 = vmul.f32 %v2119, %v2124
    %v2126 = vmul.f32 %v2087, 0.5
    %v2127 = vmul.f32 %v2088, 0.5
    %v2128 = vmul.f32 %v2089, 0.5
    %v2129 = vtanh.pop %v2126
    %v2130 = vtanh.pop %v2127
    %v2131 = vtanh.pop %v2128
    %v2132 = vmul.f32 %v2129, 0.5
    %v2133 = vmul.f32 %v2130, 0.5
    %v2134 = vmul.f32 %v2131, 0.5
    %v2135 = vadd.f32 %v2132, 0.5
    %v2136 = vadd.f32 %v2133, 0.5
    %v2137 = vadd.f32 %v2134, 0.5
    %v2138 = vtanh.pop %v2090
    %v2139 = vmul.f32 %v2136, %v1788
    %v2140 = vmul.f32 %v2135, %v2138
    %v2141 = vadd.f32 %v2139, %v2140
    %v2142 = vtanh.pop %v2141
    %v2143 = vmul.f32 %v2137, %v2142
    %v2144 = vlaneseq
    %v2145 = vshrl.u32 %v2144, 7
    %v2146 = vsub.s32 4, %v2145
    %v2147 = vrot.slane %v354, %v2146
    %v2148 = vmul.f32 %v2143, %v2147
    %2149 = vadd.xlane.f32.xlu0 %v2148
    %v2150 = vpop.xlane.xlu0 %2149
    %v2151 = vlaneseq
    %v2152 = vshrl.u32 %v2151, 7
    %v2153 = vsub.s32 4, %v2152
    %v2154 = vrot.slane %v355, %v2153
    %v2155 = vadd.f32 %v2150, %v2154
    %2156 = vmatprep.subr.mxu0 %v99
    %2157 = vmatpush1.msra.mxu0 %v98
    %2158 = vmatprep.subr.mxu0 %v107
    %2159 = vmatpush1.msra.mxu0 %v106
    %2160 = vmatprep.subr.mxu0 %v115
    %2161 = vmatpush1.msra.mxu0 %v114
    %2162 = vmatprep.subr.mxu0 %v123
    %2163 = vmatpush1.msra.mxu0 %v122
    %2164 = vmatprep.subr.mxu0 %v131
    %2165 = vmatpush1.msra.mxu0 %v130
    %2166 = vmatprep.subr.mxu0 %v139
    %2167 = vmatpush1.msra.mxu0 %v138
    %2168 = vmatprep.subr.mxu0 %v147
    %2169 = vmatpush1.msra.mxu0 %v146
    %2170 = vmatprep.subr.mxu0 %v155
    %2171 = vmatpush1.msra.mxu0 %v154
    %2172 = vmatprep.subr.mxu0 %v163
    %2173 = vmatpush1.msra.mxu0 %v162
    %2174 = vmatprep.subr.mxu0 %v171
    %2175 = vmatpush1.msra.mxu0 %v170
    %2176 = vmatprep.subr.mxu0 %v179
    %2177 = vmatpush1.msra.mxu0 %v178
    %2178 = vmatprep.subr.mxu0 %v187
    %2179 = vmatpush1.msra.mxu0 %v186
    %2180 = vmatprep.subr.mxu0 %v195
    %2181 = vmatpush1.msra.mxu0 %v194
    %2182 = vmatprep.subr.mxu0 %v203
    %2183 = vmatpush1.msra.mxu0 %v202
    %2184 = vmatprep.subr.mxu0 %v211
    %2185 = vmatpush1.msra.mxu0 %v210
    %2186 = vmatprep.subr.mxu0 %v219
    %2187 = vmatpush1.msra.mxu0 %v218
    %2188 = vmatprep.subr.mxu0 %v227
    %2189 = vmatpush1.msra.mxu0 %v226
    %2190 = vmatprep.subr.mxu0 %v235
    %2191 = vmatpush1.msra.mxu0 %v234
    %2192 = vmatprep.subr.mxu0 %v243
    %2193 = vmatpush1.msra.mxu0 %v242
    %2194 = vmatprep.subr.mxu0 %v251
    %2195 = vmatpush1.msra.mxu0 %v250
    %2196 = vmatprep.subr.mxu0 %v259
    %2197 = vmatpush1.msra.mxu0 %v258
    %2198 = vmatprep.subr.mxu0 %v267
    %2199 = vmatpush1.msra.mxu0 %v266
    %2200 = vmatprep.subr.mxu0 %v275
    %2201 = vmatpush1.msra.mxu0 %v274
    %2202 = vmatprep.subr.mxu0 %v283
    %2203 = vmatpush1.msra.mxu0 %v282
    %2204 = vmatprep.subr.mxu0 %v291
    %2205 = vmatpush1.msra.mxu0 %v290
    %2206 = vmatprep.subr.mxu0 %v299
    %2207 = vmatpush1.msra.mxu0 %v298
    %2208 = vmatprep.subr.mxu0 %v307
    %2209 = vmatpush1.msra.mxu0 %v306
    %2210 = vmatprep.subr.mxu0 %v315
    %2211 = vmatpush1.msra.mxu0 %v314
    %2212 = vmatprep.subr.mxu0 %v323
    %2213 = vmatpush1.msra.mxu0 %v322
    %2214 = vmatprep.subr.mxu0 %v331
    %2215 = vmatpush1.msra.mxu0 %v330
    %2216 = vmatprep.subr.mxu0 %v339
    %2217 = vmatpush1.msra.mxu0 %v338
    %2218 = vmatprep.subr.mxu0 %v347
    %2219 = vmatpush1.msra.mxu0 %v346
    %2220 = vmatprep.mubr.f32.mxu0 %v2125
    %2221 = vmatmul.mubr.f32.gmra.mrb[0].mxu0 %v2143
    %v2222 = vpop.f32.mrb[0].mxu0
    %v2223 = vadd.f32 0.0, %v2222
    %v2224 = vpop.f32.mrb[0].mxu0
    %v2225 = vadd.f32 0.0, %v2224
    %2226 = vdwg.mxu0
    %2227 = vmatprep.subr.mxu0 %v101
    %2228 = vmatpush1.msra.mxu0 %v100
    %2229 = vmatprep.subr.mxu0 %v109
    %2230 = vmatpush1.msra.mxu0 %v108
    %2231 = vmatprep.subr.mxu0 %v117
    %2232 = vmatpush1.msra.mxu0 %v116
    %2233 = vmatprep.subr.mxu0 %v125
    %2234 = vmatpush1.msra.mxu0 %v124
    %2235 = vmatprep.subr.mxu0 %v133
    %2236 = vmatpush1.msra.mxu0 %v132
    %2237 = vmatprep.subr.mxu0 %v141
    %2238 = vmatpush1.msra.mxu0 %v140
    %2239 = vmatprep.subr.mxu0 %v149
    %2240 = vmatpush1.msra.mxu0 %v148
    %2241 = vmatprep.subr.mxu0 %v157
    %2242 = vmatpush1.msra.mxu0 %v156
    %2243 = vmatprep.subr.mxu0 %v165
    %2244 = vmatpush1.msra.mxu0 %v164
    %2245 = vmatprep.subr.mxu0 %v173
    %2246 = vmatpush1.msra.mxu0 %v172
    %2247 = vmatprep.subr.mxu0 %v181
    %2248 = vmatpush1.msra.mxu0 %v180
    %2249 = vmatprep.subr.mxu0 %v189
    %2250 = vmatpush1.msra.mxu0 %v188
    %2251 = vmatprep.subr.mxu0 %v197
    %2252 = vmatpush1.msra.mxu0 %v196
    %2253 = vmatprep.subr.mxu0 %v205
    %2254 = vmatpush1.msra.mxu0 %v204
    %2255 = vmatprep.subr.mxu0 %v213
    %2256 = vmatpush1.msra.mxu0 %v212
    %2257 = vmatprep.subr.mxu0 %v221
    %2258 = vmatpush1.msra.mxu0 %v220
    %2259 = vmatprep.subr.mxu0 %v229
    %2260 = vmatpush1.msra.mxu0 %v228
    %2261 = vmatprep.subr.mxu0 %v237
    %2262 = vmatpush1.msra.mxu0 %v236
    %2263 = vmatprep.subr.mxu0 %v245
    %2264 = vmatpush1.msra.mxu0 %v244
    %2265 = vmatprep.subr.mxu0 %v253
    %2266 = vmatpush1.msra.mxu0 %v252
    %2267 = vmatprep.subr.mxu0 %v261
    %2268 = vmatpush1.msra.mxu0 %v260
    %2269 = vmatprep.subr.mxu0 %v269
    %2270 = vmatpush1.msra.mxu0 %v268
    %2271 = vmatprep.subr.mxu0 %v277
    %2272 = vmatpush1.msra.mxu0 %v276
    %2273 = vmatprep.subr.mxu0 %v285
    %2274 = vmatpush1.msra.mxu0 %v284
    %2275 = vmatprep.subr.mxu0 %v293
    %2276 = vmatpush1.msra.mxu0 %v292
    %2277 = vmatprep.subr.mxu0 %v301
    %2278 = vmatpush1.msra.mxu0 %v300
    %2279 = vmatprep.subr.mxu0 %v309
    %2280 = vmatpush1.msra.mxu0 %v308
    %2281 = vmatprep.subr.mxu0 %v317
    %2282 = vmatpush1.msra.mxu0 %v316
    %2283 = vmatprep.subr.mxu0 %v325
    %2284 = vmatpush1.msra.mxu0 %v324
    %2285 = vmatprep.subr.mxu0 %v333
    %2286 = vmatpush1.msra.mxu0 %v332
    %2287 = vmatprep.subr.mxu0 %v341
    %2288 = vmatpush1.msra.mxu0 %v340
    %2289 = vmatprep.subr.mxu0 %v349
    %2290 = vmatpush1.msra.mxu0 %v348
    %2291 = vmatprep.mubr.f32.mxu0 %v2125
    %2292 = vmatmul.mubr.f32.gmra.mrb[0].mxu0 %v2143
    %v2293 = vpop.f32.mrb[0].mxu0
    %v2294 = vadd.f32 0.0, %v2293
    %v2295 = vpop.f32.mrb[0].mxu0
    %v2296 = vadd.f32 0.0, %v2295
    %2297 = vdwg.mxu0
    %2298 = vmatprep.subr.mxu0 %v103
    %2299 = vmatpush1.msra.mxu0 %v102
    %2300 = vmatprep.subr.mxu0 %v111
    %2301 = vmatpush1.msra.mxu0 %v110
    %2302 = vmatprep.subr.mxu0 %v119
    %2303 = vmatpush1.msra.mxu0 %v118
    %2304 = vmatprep.subr.mxu0 %v127
    %2305 = vmatpush1.msra.mxu0 %v126
    %2306 = vmatprep.subr.mxu0 %v135
    %2307 = vmatpush1.msra.mxu0 %v134
    %2308 = vmatprep.subr.mxu0 %v143
    %2309 = vmatpush1.msra.mxu0 %v142
    %2310 = vmatprep.subr.mxu0 %v151
    %2311 = vmatpush1.msra.mxu0 %v150
    %2312 = vmatprep.subr.mxu0 %v159
    %2313 = vmatpush1.msra.mxu0 %v158
    %2314 = vmatprep.subr.mxu0 %v167
    %2315 = vmatpush1.msra.mxu0 %v166
    %2316 = vmatprep.subr.mxu0 %v175
    %2317 = vmatpush1.msra.mxu0 %v174
    %2318 = vmatprep.subr.mxu0 %v183
    %2319 = vmatpush1.msra.mxu0 %v182
    %2320 = vmatprep.subr.mxu0 %v191
    %2321 = vmatpush1.msra.mxu0 %v190
    %2322 = vmatprep.subr.mxu0 %v199
    %2323 = vmatpush1.msra.mxu0 %v198
    %2324 = vmatprep.subr.mxu0 %v207
    %2325 = vmatpush1.msra.mxu0 %v206
    %2326 = vmatprep.subr.mxu0 %v215
    %2327 = vmatpush1.msra.mxu0 %v214
    %2328 = vmatprep.subr.mxu0 %v223
    %2329 = vmatpush1.msra.mxu0 %v222
    %2330 = vmatprep.subr.mxu0 %v231
    %2331 = vmatpush1.msra.mxu0 %v230
    %2332 = vmatprep.subr.mxu0 %v239
    %2333 = vmatpush1.msra.mxu0 %v238
    %2334 = vmatprep.subr.mxu0 %v247
    %2335 = vmatpush1.msra.mxu0 %v246
    %2336 = vmatprep.subr.mxu0 %v255
    %2337 = vmatpush1.msra.mxu0 %v254
    %2338 = vmatprep.subr.mxu0 %v263
    %2339 = vmatpush1.msra.mxu0 %v262
    %2340 = vmatprep.subr.mxu0 %v271
    %2341 = vmatpush1.msra.mxu0 %v270
    %2342 = vmatprep.subr.mxu0 %v279
    %2343 = vmatpush1.msra.mxu0 %v278
    %2344 = vmatprep.subr.mxu0 %v287
    %2345 = vmatpush1.msra.mxu0 %v286
    %2346 = vmatprep.subr.mxu0 %v295
    %2347 = vmatpush1.msra.mxu0 %v294
    %2348 = vmatprep.subr.mxu0 %v303
    %2349 = vmatpush1.msra.mxu0 %v302
    %2350 = vmatprep.subr.mxu0 %v311
    %2351 = vmatpush1.msra.mxu0 %v310
    %2352 = vmatprep.subr.mxu0 %v319
    %2353 = vmatpush1.msra.mxu0 %v318
    %2354 = vmatprep.subr.mxu0 %v327
    %2355 = vmatpush1.msra.mxu0 %v326
    %2356 = vmatprep.subr.mxu0 %v335
    %2357 = vmatpush1.msra.mxu0 %v334
    %2358 = vmatprep.subr.mxu0 %v343
    %2359 = vmatpush1.msra.mxu0 %v342
    %2360 = vmatprep.subr.mxu0 %v351
    %2361 = vmatpush1.msra.mxu0 %v350
    %2362 = vmatprep.mubr.f32.mxu0 %v2125
    %2363 = vmatmul.mubr.f32.gmra.mrb[0].mxu0 %v2143
    %v2364 = vpop.f32.mrb[0].mxu0
    %v2365 = vadd.f32 0.0, %v2364
    %v2366 = vpop.f32.mrb[0].mxu0
    %v2367 = vadd.f32 0.0, %v2366
    %2368 = vdwg.mxu0
    %2369 = vmatprep.subr.mxu0 %v105
    %2370 = vmatpush1.msra.mxu0 %v104
    %2371 = vmatprep.subr.mxu0 %v113
    %2372 = vmatpush1.msra.mxu0 %v112
    %2373 = vmatprep.subr.mxu0 %v121
    %2374 = vmatpush1.msra.mxu0 %v120
    %2375 = vmatprep.subr.mxu0 %v129
    %2376 = vmatpush1.msra.mxu0 %v128
    %2377 = vmatprep.subr.mxu0 %v137
    %2378 = vmatpush1.msra.mxu0 %v136
    %2379 = vmatprep.subr.mxu0 %v145
    %2380 = vmatpush1.msra.mxu0 %v144
    %2381 = vmatprep.subr.mxu0 %v153
    %2382 = vmatpush1.msra.mxu0 %v152
    %2383 = vmatprep.subr.mxu0 %v161
    %2384 = vmatpush1.msra.mxu0 %v160
    %2385 = vmatprep.subr.mxu0 %v169
    %2386 = vmatpush1.msra.mxu0 %v168
    %2387 = vmatprep.subr.mxu0 %v177
    %2388 = vmatpush1.msra.mxu0 %v176
    %2389 = vmatprep.subr.mxu0 %v185
    %2390 = vmatpush1.msra.mxu0 %v184
    %2391 = vmatprep.subr.mxu0 %v193
    %2392 = vmatpush1.msra.mxu0 %v192
    %2393 = vmatprep.subr.mxu0 %v201
    %2394 = vmatpush1.msra.mxu0 %v200
    %2395 = vmatprep.subr.mxu0 %v209
    %2396 = vmatpush1.msra.mxu0 %v208
    %2397 = vmatprep.subr.mxu0 %v217
    %2398 = vmatpush1.msra.mxu0 %v216
    %2399 = vmatprep.subr.mxu0 %v225
    %2400 = vmatpush1.msra.mxu0 %v224
    %2401 = vmatprep.subr.mxu0 %v233
    %2402 = vmatpush1.msra.mxu0 %v232
    %2403 = vmatprep.subr.mxu0 %v241
    %2404 = vmatpush1.msra.mxu0 %v240
    %2405 = vmatprep.subr.mxu0 %v249
    %2406 = vmatpush1.msra.mxu0 %v248
    %2407 = vmatprep.subr.mxu0 %v257
    %2408 = vmatpush1.msra.mxu0 %v256
    %2409 = vmatprep.subr.mxu0 %v265
    %2410 = vmatpush1.msra.mxu0 %v264
    %2411 = vmatprep.subr.mxu0 %v273
    %2412 = vmatpush1.msra.mxu0 %v272
    %2413 = vmatprep.subr.mxu0 %v281
    %2414 = vmatpush1.msra.mxu0 %v280
    %2415 = vmatprep.subr.mxu0 %v289
    %2416 = vmatpush1.msra.mxu0 %v288
    %2417 = vmatprep.subr.mxu0 %v297
    %2418 = vmatpush1.msra.mxu0 %v296
    %2419 = vmatprep.subr.mxu0 %v305
    %2420 = vmatpush1.msra.mxu0 %v304
    %2421 = vmatprep.subr.mxu0 %v313
    %2422 = vmatpush1.msra.mxu0 %v312
    %2423 = vmatprep.subr.mxu0 %v321
    %2424 = vmatpush1.msra.mxu0 %v320
    %2425 = vmatprep.subr.mxu0 %v329
    %2426 = vmatpush1.msra.mxu0 %v328
    %2427 = vmatprep.subr.mxu0 %v337
    %2428 = vmatpush1.msra.mxu0 %v336
    %2429 = vmatprep.subr.mxu0 %v345
    %2430 = vmatpush1.msra.mxu0 %v344
    %2431 = vmatprep.subr.mxu0 %v353
    %2432 = vmatpush1.msra.mxu0 %v352
    %2433 = vmatprep.mubr.f32.mxu0 %v2125
    %2434 = vmatmul.mubr.f32.gmra.mrb[0].mxu0 %v2143
    %v2435 = vpop.f32.mrb[0].mxu0
    %v2436 = vadd.f32 0.0, %v2435
    %v2437 = vpop.f32.mrb[0].mxu0
    %v2438 = vadd.f32 0.0, %v2437
    %2439 = vdwg.mxu0
    %v2440 = vadd.f32 %v597, %v2223
    %v2441 = vadd.f32 %v599, %v2225
    %v2442 = vadd.f32 %v668, %v2294
    %v2443 = vadd.f32 %v670, %v2296
    %2445 = vset.pattern.permute.xlu0 0
    %2446 = vperm.xlu0 %2445, %v2155
    %v2447 = vpop.permute.xlu0 %2446
    %v2449 = vmul.f32 %v2447, %v999
    %v2450 = vmul.f32 %v2447, %v1003
    %v2451 = vmul.f32 %v2447, %v1007
    %v2452 = vmul.f32 %v2447, %v1011
    %v2453 = vadd.f32 %v2449, %v1024
    %v2454 = vadd.f32 %v2450, %v1028
    %v2455 = vadd.f32 %v2451, %v1032
    %v2456 = vadd.f32 %v2452, %v1036
    %v2457 = vadd.f32 %v2453, %v2365
    %v2458 = vadd.f32 %v2454, %v2367
    %v2459 = vadd.f32 %v2455, %v2436
    %v2460 = vadd.f32 %v2456, %v2438
    %v2461 = vmul.f32 %v2457, 0.5
    %v2462 = vmul.f32 %v2458, 0.5
    %v2463 = vmul.f32 %v2459, 0.5
    %v2464 = vtanh.pop %v2461
    %v2465 = vtanh.pop %v2462
    %v2466 = vtanh.pop %v2463
    %v2467 = vmul.f32 %v2464, 0.5
    %v2468 = vmul.f32 %v2465, 0.5
    %v2469 = vmul.f32 %v2466, 0.5
    %v2470 = vadd.f32 %v2467, 0.5
    %v2471 = vadd.f32 %v2468, 0.5
    %v2472 = vadd.f32 %v2469, 0.5
    %v2473 = vtanh.pop %v2460
    %v2474 = vmul.f32 %v2471, %v2123
    %v2475 = vmul.f32 %v2470, %v2473
    %v2476 = vadd.f32 %v2474, %v2475
    %v2477 = vtanh.pop %v2476
    %v2478 = vmul.f32 %v2472, %v2477
    %v2479 = vmul.f32 %v2440, 0.5
    %v2480 = vmul.f32 %v2441, 0.5
    %v2481 = vmul.f32 %v2442, 0.5
    %v2482 = vtanh.pop %v2479
    %v2483 = vtanh.pop %v2480
    %v2484 = vtanh.pop %v2481
    %v2485 = vmul.f32 %v2482, 0.5
    %v2486 = vmul.f32 %v2483, 0.5
    %v2487 = vmul.f32 %v2484, 0.5
    %v2488 = vadd.f32 %v2485, 0.5
    %v2489 = vadd.f32 %v2486, 0.5
    %v2490 = vadd.f32 %v2487, 0.5
    %v2491 = vtanh.pop %v2443
    %v2492 = vmul.f32 %v2489, %v2141
    %v2493 = vmul.f32 %v2488, %v2491
    %v2494 = vadd.f32 %v2492, %v2493
    %v2495 = vtanh.pop %v2494
    %v2496 = vmul.f32 %v2490, %v2495
    %v2497 = vlaneseq
    %v2498 = vshrl.u32 %v2497, 7
    %v2499 = vsub.s32 5, %v2498
    %v2500 = vrot.slane %v354, %v2499
    %v2501 = vmul.f32 %v2496, %v2500
    %2502 = vadd.xlane.f32.xlu0 %v2501
    %v2503 = vpop.xlane.xlu0 %2502
    %v2504 = vlaneseq
    %v2505 = vshrl.u32 %v2504, 7
    %v2506 = vsub.s32 5, %v2505
    %v2507 = vrot.slane %v355, %v2506
    %v2508 = vadd.f32 %v2503, %v2507
    %2509 = vmatprep.subr.mxu0 %v99
    %2510 = vmatpush1.msra.mxu0 %v98
    %2511 = vmatprep.subr.mxu0 %v107
    %2512 = vmatpush1.msra.mxu0 %v106
    %2513 = vmatprep.subr.mxu0 %v115
    %2514 = vmatpush1.msra.mxu0 %v114
    %2515 = vmatprep.subr.mxu0 %v123
    %2516 = vmatpush1.msra.mxu0 %v122
    %2517 = vmatprep.subr.mxu0 %v131
    %2518 = vmatpush1.msra.mxu0 %v130
    %2519 = vmatprep.subr.mxu0 %v139
    %2520 = vmatpush1.msra.mxu0 %v138
    %2521 = vmatprep.subr.mxu0 %v147
    %2522 = vmatpush1.msra.mxu0 %v146
    %2523 = vmatprep.subr.mxu0 %v155
    %2524 = vmatpush1.msra.mxu0 %v154
    %2525 = vmatprep.subr.mxu0 %v163
    %2526 = vmatpush1.msra.mxu0 %v162
    %2527 = vmatprep.subr.mxu0 %v171
    %2528 = vmatpush1.msra.mxu0 %v170
    %2529 = vmatprep.subr.mxu0 %v179
    %2530 = vmatpush1.msra.mxu0 %v178
    %2531 = vmatprep.subr.mxu0 %v187
    %2532 = vmatpush1.msra.mxu0 %v186
    %2533 = vmatprep.subr.mxu0 %v195
    %2534 = vmatpush1.msra.mxu0 %v194
    %2535 = vmatprep.subr.mxu0 %v203
    %2536 = vmatpush1.msra.mxu0 %v202
    %2537 = vmatprep.subr.mxu0 %v211
    %2538 = vmatpush1.msra.mxu0 %v210
    %2539 = vmatprep.subr.mxu0 %v219
    %2540 = vmatpush1.msra.mxu0 %v218
    %2541 = vmatprep.subr.mxu0 %v227
    %2542 = vmatpush1.msra.mxu0 %v226
    %2543 = vmatprep.subr.mxu0 %v235
    %2544 = vmatpush1.msra.mxu0 %v234
    %2545 = vmatprep.subr.mxu0 %v243
    %2546 = vmatpush1.msra.mxu0 %v242
    %2547 = vmatprep.subr.mxu0 %v251
    %2548 = vmatpush1.msra.mxu0 %v250
    %2549 = vmatprep.subr.mxu0 %v259
    %2550 = vmatpush1.msra.mxu0 %v258
    %2551 = vmatprep.subr.mxu0 %v267
    %2552 = vmatpush1.msra.mxu0 %v266
    %2553 = vmatprep.subr.mxu0 %v275
    %2554 = vmatpush1.msra.mxu0 %v274
    %2555 = vmatprep.subr.mxu0 %v283
    %2556 = vmatpush1.msra.mxu0 %v282
    %2557 = vmatprep.subr.mxu0 %v291
    %2558 = vmatpush1.msra.mxu0 %v290
    %2559 = vmatprep.subr.mxu0 %v299
    %2560 = vmatpush1.msra.mxu0 %v298
    %2561 = vmatprep.subr.mxu0 %v307
    %2562 = vmatpush1.msra.mxu0 %v306
    %2563 = vmatprep.subr.mxu0 %v315
    %2564 = vmatpush1.msra.mxu0 %v314
    %2565 = vmatprep.subr.mxu0 %v323
    %2566 = vmatpush1.msra.mxu0 %v322
    %2567 = vmatprep.subr.mxu0 %v331
    %2568 = vmatpush1.msra.mxu0 %v330
    %2569 = vmatprep.subr.mxu0 %v339
    %2570 = vmatpush1.msra.mxu0 %v338
    %2571 = vmatprep.subr.mxu0 %v347
    %2572 = vmatpush1.msra.mxu0 %v346
    %2573 = vmatprep.mubr.f32.mxu0 %v2478
    %2574 = vmatmul.mubr.f32.gmra.mrb[0].mxu0 %v2496
    %v2575 = vpop.f32.mrb[0].mxu0
    %v2576 = vadd.f32 0.0, %v2575
    %v2577 = vpop.f32.mrb[0].mxu0
    %v2578 = vadd.f32 0.0, %v2577
    %2579 = vdwg.mxu0
    %2580 = vmatprep.subr.mxu0 %v101
    %2581 = vmatpush1.msra.mxu0 %v100
    %2582 = vmatprep.subr.mxu0 %v109
    %2583 = vmatpush1.msra.mxu0 %v108
    %2584 = vmatprep.subr.mxu0 %v117
    %2585 = vmatpush1.msra.mxu0 %v116
    %2586 = vmatprep.subr.mxu0 %v125
    %2587 = vmatpush1.msra.mxu0 %v124
    %2588 = vmatprep.subr.mxu0 %v133
    %2589 = vmatpush1.msra.mxu0 %v132
    %2590 = vmatprep.subr.mxu0 %v141
    %2591 = vmatpush1.msra.mxu0 %v140
    %2592 = vmatprep.subr.mxu0 %v149
    %2593 = vmatpush1.msra.mxu0 %v148
    %2594 = vmatprep.subr.mxu0 %v157
    %2595 = vmatpush1.msra.mxu0 %v156
    %2596 = vmatprep.subr.mxu0 %v165
    %2597 = vmatpush1.msra.mxu0 %v164
    %2598 = vmatprep.subr.mxu0 %v173
    %2599 = vmatpush1.msra.mxu0 %v172
    %2600 = vmatprep.subr.mxu0 %v181
    %2601 = vmatpush1.msra.mxu0 %v180
    %2602 = vmatprep.subr.mxu0 %v189
    %2603 = vmatpush1.msra.mxu0 %v188
    %2604 = vmatprep.subr.mxu0 %v197
    %2605 = vmatpush1.msra.mxu0 %v196
    %2606 = vmatprep.subr.mxu0 %v205
    %2607 = vmatpush1.msra.mxu0 %v204
    %2608 = vmatprep.subr.mxu0 %v213
    %2609 = vmatpush1.msra.mxu0 %v212
    %2610 = vmatprep.subr.mxu0 %v221
    %2611 = vmatpush1.msra.mxu0 %v220
    %2612 = vmatprep.subr.mxu0 %v229
    %2613 = vmatpush1.msra.mxu0 %v228
    %2614 = vmatprep.subr.mxu0 %v237
    %2615 = vmatpush1.msra.mxu0 %v236
    %2616 = vmatprep.subr.mxu0 %v245
    %2617 = vmatpush1.msra.mxu0 %v244
    %2618 = vmatprep.subr.mxu0 %v253
    %2619 = vmatpush1.msra.mxu0 %v252
    %2620 = vmatprep.subr.mxu0 %v261
    %2621 = vmatpush1.msra.mxu0 %v260
    %2622 = vmatprep.subr.mxu0 %v269
    %2623 = vmatpush1.msra.mxu0 %v268
    %2624 = vmatprep.subr.mxu0 %v277
    %2625 = vmatpush1.msra.mxu0 %v276
    %2626 = vmatprep.subr.mxu0 %v285
    %2627 = vmatpush1.msra.mxu0 %v284
    %2628 = vmatprep.subr.mxu0 %v293
    %2629 = vmatpush1.msra.mxu0 %v292
    %2630 = vmatprep.subr.mxu0 %v301
    %2631 = vmatpush1.msra.mxu0 %v300
    %2632 = vmatprep.subr.mxu0 %v309
    %2633 = vmatpush1.msra.mxu0 %v308
    %2634 = vmatprep.subr.mxu0 %v317
    %2635 = vmatpush1.msra.mxu0 %v316
    %2636 = vmatprep.subr.mxu0 %v325
    %2637 = vmatpush1.msra.mxu0 %v324
    %2638 = vmatprep.subr.mxu0 %v333
    %2639 = vmatpush1.msra.mxu0 %v332
    %2640 = vmatprep.subr.mxu0 %v341
    %2641 = vmatpush1.msra.mxu0 %v340
    %2642 = vmatprep.subr.mxu0 %v349
    %2643 = vmatpush1.msra.mxu0 %v348
    %2644 = vmatprep.mubr.f32.mxu0 %v2478
    %2645 = vmatmul.mubr.f32.gmra.mrb[0].mxu0 %v2496
    %v2646 = vpop.f32.mrb[0].mxu0
    %v2647 = vadd.f32 0.0, %v2646
    %v2648 = vpop.f32.mrb[0].mxu0
    %v2649 = vadd.f32 0.0, %v2648
    %2650 = vdwg.mxu0
    %2651 = vmatprep.subr.mxu0 %v103
    %2652 = vmatpush1.msra.mxu0 %v102
    %2653 = vmatprep.subr.mxu0 %v111
    %2654 = vmatpush1.msra.mxu0 %v110
    %2655 = vmatprep.subr.mxu0 %v119
    %2656 = vmatpush1.msra.mxu0 %v118
    %2657 = vmatprep.subr.mxu0 %v127
    %2658 = vmatpush1.msra.mxu0 %v126
    %2659 = vmatprep.subr.mxu0 %v135
    %2660 = vmatpush1.msra.mxu0 %v134
    %2661 = vmatprep.subr.mxu0 %v143
    %2662 = vmatpush1.msra.mxu0 %v142
    %2663 = vmatprep.subr.mxu0 %v151
    %2664 = vmatpush1.msra.mxu0 %v150
    %2665 = vmatprep.subr.mxu0 %v159
    %2666 = vmatpush1.msra.mxu0 %v158
    %2667 = vmatprep.subr.mxu0 %v167
    %2668 = vmatpush1.msra.mxu0 %v166
    %2669 = vmatprep.subr.mxu0 %v175
    %2670 = vmatpush1.msra.mxu0 %v174
    %2671 = vmatprep.subr.mxu0 %v183
    %2672 = vmatpush1.msra.mxu0 %v182
    %2673 = vmatprep.subr.mxu0 %v191
    %2674 = vmatpush1.msra.mxu0 %v190
    %2675 = vmatprep.subr.mxu0 %v199
    %2676 = vmatpush1.msra.mxu0 %v198
    %2677 = vmatprep.subr.mxu0 %v207
    %2678 = vmatpush1.msra.mxu0 %v206
    %2679 = vmatprep.subr.mxu0 %v215
    %2680 = vmatpush1.msra.mxu0 %v214
    %2681 = vmatprep.subr.mxu0 %v223
    %2682 = vmatpush1.msra.mxu0 %v222
    %2683 = vmatprep.subr.mxu0 %v231
    %2684 = vmatpush1.msra.mxu0 %v230
    %2685 = vmatprep.subr.mxu0 %v239
    %2686 = vmatpush1.msra.mxu0 %v238
    %2687 = vmatprep.subr.mxu0 %v247
    %2688 = vmatpush1.msra.mxu0 %v246
    %2689 = vmatprep.subr.mxu0 %v255
    %2690 = vmatpush1.msra.mxu0 %v254
    %2691 = vmatprep.subr.mxu0 %v263
    %2692 = vmatpush1.msra.mxu0 %v262
    %2693 = vmatprep.subr.mxu0 %v271
    %2694 = vmatpush1.msra.mxu0 %v270
    %2695 = vmatprep.subr.mxu0 %v279
    %2696 = vmatpush1.msra.mxu0 %v278
    %2697 = vmatprep.subr.mxu0 %v287
    %2698 = vmatpush1.msra.mxu0 %v286
    %2699 = vmatprep.subr.mxu0 %v295
    %2700 = vmatpush1.msra.mxu0 %v294
    %2701 = vmatprep.subr.mxu0 %v303
    %2702 = vmatpush1.msra.mxu0 %v302
    %2703 = vmatprep.subr.mxu0 %v311
    %2704 = vmatpush1.msra.mxu0 %v310
    %2705 = vmatprep.subr.mxu0 %v319
    %2706 = vmatpush1.msra.mxu0 %v318
    %2707 = vmatprep.subr.mxu0 %v327
    %2708 = vmatpush1.msra.mxu0 %v326
    %2709 = vmatprep.subr.mxu0 %v335
    %2710 = vmatpush1.msra.mxu0 %v334
    %2711 = vmatprep.subr.mxu0 %v343
    %2712 = vmatpush1.msra.mxu0 %v342
    %2713 = vmatprep.subr.mxu0 %v351
    %2714 = vmatpush1.msra.mxu0 %v350
    %2715 = vmatprep.mubr.f32.mxu0 %v2478
    %2716 = vmatmul.mubr.f32.gmra.mrb[0].mxu0 %v2496
    %v2717 = vpop.f32.mrb[0].mxu0
    %v2718 = vadd.f32 0.0, %v2717
    %v2719 = vpop.f32.mrb[0].mxu0
    %v2720 = vadd.f32 0.0, %v2719
    %2721 = vdwg.mxu0
    %2722 = vmatprep.subr.mxu0 %v105
    %2723 = vmatpush1.msra.mxu0 %v104
    %2724 = vmatprep.subr.mxu0 %v113
    %2725 = vmatpush1.msra.mxu0 %v112
    %2726 = vmatprep.subr.mxu0 %v121
    %2727 = vmatpush1.msra.mxu0 %v120
    %2728 = vmatprep.subr.mxu0 %v129
    %2729 = vmatpush1.msra.mxu0 %v128
    %2730 = vmatprep.subr.mxu0 %v137
    %2731 = vmatpush1.msra.mxu0 %v136
    %2732 = vmatprep.subr.mxu0 %v145
    %2733 = vmatpush1.msra.mxu0 %v144
    %2734 = vmatprep.subr.mxu0 %v153
    %2735 = vmatpush1.msra.mxu0 %v152
    %2736 = vmatprep.subr.mxu0 %v161
    %2737 = vmatpush1.msra.mxu0 %v160
    %2738 = vmatprep.subr.mxu0 %v169
    %2739 = vmatpush1.msra.mxu0 %v168
    %2740 = vmatprep.subr.mxu0 %v177
    %2741 = vmatpush1.msra.mxu0 %v176
    %2742 = vmatprep.subr.mxu0 %v185
    %2743 = vmatpush1.msra.mxu0 %v184
    %2744 = vmatprep.subr.mxu0 %v193
    %2745 = vmatpush1.msra.mxu0 %v192
    %2746 = vmatprep.subr.mxu0 %v201
    %2747 = vmatpush1.msra.mxu0 %v200
    %2748 = vmatprep.subr.mxu0 %v209
    %2749 = vmatpush1.msra.mxu0 %v208
    %2750 = vmatprep.subr.mxu0 %v217
    %2751 = vmatpush1.msra.mxu0 %v216
    %2752 = vmatprep.subr.mxu0 %v225
    %2753 = vmatpush1.msra.mxu0 %v224
    %2754 = vmatprep.subr.mxu0 %v233
    %2755 = vmatpush1.msra.mxu0 %v232
    %2756 = vmatprep.subr.mxu0 %v241
    %2757 = vmatpush1.msra.mxu0 %v240
    %2758 = vmatprep.subr.mxu0 %v249
    %2759 = vmatpush1.msra.mxu0 %v248
    %2760 = vmatprep.subr.mxu0 %v257
    %2761 = vmatpush1.msra.mxu0 %v256
    %2762 = vmatprep.subr.mxu0 %v265
    %2763 = vmatpush1.msra.mxu0 %v264
    %2764 = vmatprep.subr.mxu0 %v273
    %2765 = vmatpush1.msra.mxu0 %v272
    %2766 = vmatprep.subr.mxu0 %v281
    %2767 = vmatpush1.msra.mxu0 %v280
    %2768 = vmatprep.subr.mxu0 %v289
    %2769 = vmatpush1.msra.mxu0 %v288
    %2770 = vmatprep.subr.mxu0 %v297
    %2771 = vmatpush1.msra.mxu0 %v296
    %2772 = vmatprep.subr.mxu0 %v305
    %2773 = vmatpush1.msra.mxu0 %v304
    %2774 = vmatprep.subr.mxu0 %v313
    %2775 = vmatpush1.msra.mxu0 %v312
    %2776 = vmatprep.subr.mxu0 %v321
    %2777 = vmatpush1.msra.mxu0 %v320
    %2778 = vmatprep.subr.mxu0 %v329
    %2779 = vmatpush1.msra.mxu0 %v328
    %2780 = vmatprep.subr.mxu0 %v337
    %2781 = vmatpush1.msra.mxu0 %v336
    %2782 = vmatprep.subr.mxu0 %v345
    %2783 = vmatpush1.msra.mxu0 %v344
    %2784 = vmatprep.subr.mxu0 %v353
    %2785 = vmatpush1.msra.mxu0 %v352
    %2786 = vmatprep.mubr.f32.mxu0 %v2478
    %2787 = vmatmul.mubr.f32.gmra.mrb[0].mxu0 %v2496
    %v2788 = vpop.f32.mrb[0].mxu0
    %v2789 = vadd.f32 0.0, %v2788
    %v2790 = vpop.f32.mrb[0].mxu0
    %v2791 = vadd.f32 0.0, %v2790
    %2792 = vdwg.mxu0
    %v2793 = vadd.f32 %v597, %v2576
    %v2794 = vadd.f32 %v599, %v2578
    %v2795 = vadd.f32 %v668, %v2647
    %v2796 = vadd.f32 %v670, %v2649
    %2798 = vset.pattern.permute.xlu0 0
    %2799 = vperm.xlu0 %2798, %v2508
    %v2800 = vpop.permute.xlu0 %2799
    %v2802 = vmul.f32 %v2800, %v999
    %v2803 = vmul.f32 %v2800, %v1003
    %v2804 = vmul.f32 %v2800, %v1007
    %v2805 = vmul.f32 %v2800, %v1011
    %v2806 = vadd.f32 %v2802, %v1024
    %v2807 = vadd.f32 %v2803, %v1028
    %v2808 = vadd.f32 %v2804, %v1032
    %v2809 = vadd.f32 %v2805, %v1036
    %v2810 = vadd.f32 %v2806, %v2718
    %v2811 = vadd.f32 %v2807, %v2720
    %v2812 = vadd.f32 %v2808, %v2789
    %v2813 = vadd.f32 %v2809, %v2791
    %v2814 = vmul.f32 %v2810, 0.5
    %v2815 = vmul.f32 %v2811, 0.5
    %v2816 = vmul.f32 %v2812, 0.5
    %v2817 = vtanh.pop %v2814
    %v2818 = vtanh.pop %v2815
    %v2819 = vtanh.pop %v2816
    %v2820 = vmul.f32 %v2817, 0.5
    %v2821 = vmul.f32 %v2818, 0.5
    %v2822 = vmul.f32 %v2819, 0.5
    %v2823 = vadd.f32 %v2820, 0.5
    %v2824 = vadd.f32 %v2821, 0.5
    %v2825 = vadd.f32 %v2822, 0.5
    %v2826 = vtanh.pop %v2813
    %v2827 = vmul.f32 %v2824, %v2476
    %v2828 = vmul.f32 %v2823, %v2826
    %v2829 = vadd.f32 %v2827, %v2828
    %v2830 = vtanh.pop %v2829
    %v2831 = vmul.f32 %v2825, %v2830
    %v2832 = vmul.f32 %v2793, 0.5
    %v2833 = vmul.f32 %v2794, 0.5
    %v2834 = vmul.f32 %v2795, 0.5
    %v2835 = vtanh.pop %v2832
    %v2836 = vtanh.pop %v2833
    %v2837 = vtanh.pop %v2834
    %v2838 = vmul.f32 %v2835, 0.5
    %v2839 = vmul.f32 %v2836, 0.5
    %v2840 = vmul.f32 %v2837, 0.5
    %v2841 = vadd.f32 %v2838, 0.5
    %v2842 = vadd.f32 %v2839, 0.5
    %v2843 = vadd.f32 %v2840, 0.5
    %v2844 = vtanh.pop %v2796
    %v2845 = vmul.f32 %v2842, %v2494
    %v2846 = vmul.f32 %v2841, %v2844
    %v2847 = vadd.f32 %v2845, %v2846
    %v2848 = vtanh.pop %v2847
    %v2849 = vmul.f32 %v2843, %v2848
    %v2850 = vlaneseq
    %v2851 = vshrl.u32 %v2850, 7
    %v2852 = vsub.s32 6, %v2851
    %v2853 = vrot.slane %v354, %v2852
    %v2854 = vmul.f32 %v2849, %v2853
    %2855 = vadd.xlane.f32.xlu0 %v2854
    %v2856 = vpop.xlane.xlu0 %2855
    %v2857 = vlaneseq
    %v2858 = vshrl.u32 %v2857, 7
    %v2859 = vsub.s32 6, %v2858
    %v2860 = vrot.slane %v355, %v2859
    %v2861 = vadd.f32 %v2856, %v2860
    %2862 = vmatprep.subr.mxu0 %v99
    %2863 = vmatpush1.msra.mxu0 %v98
    %2864 = vmatprep.subr.mxu0 %v107
    %2865 = vmatpush1.msra.mxu0 %v106
    %2866 = vmatprep.subr.mxu0 %v115
    %2867 = vmatpush1.msra.mxu0 %v114
    %2868 = vmatprep.subr.mxu0 %v123
    %2869 = vmatpush1.msra.mxu0 %v122
    %2870 = vmatprep.subr.mxu0 %v131
    %2871 = vmatpush1.msra.mxu0 %v130
    %2872 = vmatprep.subr.mxu0 %v139
    %2873 = vmatpush1.msra.mxu0 %v138
    %2874 = vmatprep.subr.mxu0 %v147
    %2875 = vmatpush1.msra.mxu0 %v146
    %2876 = vmatprep.subr.mxu0 %v155
    %2877 = vmatpush1.msra.mxu0 %v154
    %2878 = vmatprep.subr.mxu0 %v163
    %2879 = vmatpush1.msra.mxu0 %v162
    %2880 = vmatprep.subr.mxu0 %v171
    %2881 = vmatpush1.msra.mxu0 %v170
    %2882 = vmatprep.subr.mxu0 %v179
    %2883 = vmatpush1.msra.mxu0 %v178
    %2884 = vmatprep.subr.mxu0 %v187
    %2885 = vmatpush1.msra.mxu0 %v186
    %2886 = vmatprep.subr.mxu0 %v195
    %2887 = vmatpush1.msra.mxu0 %v194
    %2888 = vmatprep.subr.mxu0 %v203
    %2889 = vmatpush1.msra.mxu0 %v202
    %2890 = vmatprep.subr.mxu0 %v211
    %2891 = vmatpush1.msra.mxu0 %v210
    %2892 = vmatprep.subr.mxu0 %v219
    %2893 = vmatpush1.msra.mxu0 %v218
    %2894 = vmatprep.subr.mxu0 %v227
    %2895 = vmatpush1.msra.mxu0 %v226
    %2896 = vmatprep.subr.mxu0 %v235
    %2897 = vmatpush1.msra.mxu0 %v234
    %2898 = vmatprep.subr.mxu0 %v243
    %2899 = vmatpush1.msra.mxu0 %v242
    %2900 = vmatprep.subr.mxu0 %v251
    %2901 = vmatpush1.msra.mxu0 %v250
    %2902 = vmatprep.subr.mxu0 %v259
    %2903 = vmatpush1.msra.mxu0 %v258
    %2904 = vmatprep.subr.mxu0 %v267
    %2905 = vmatpush1.msra.mxu0 %v266
    %2906 = vmatprep.subr.mxu0 %v275
    %2907 = vmatpush1.msra.mxu0 %v274
    %2908 = vmatprep.subr.mxu0 %v283
    %2909 = vmatpush1.msra.mxu0 %v282
    %2910 = vmatprep.subr.mxu0 %v291
    %2911 = vmatpush1.msra.mxu0 %v290
    %2912 = vmatprep.subr.mxu0 %v299
    %2913 = vmatpush1.msra.mxu0 %v298
    %2914 = vmatprep.subr.mxu0 %v307
    %2915 = vmatpush1.msra.mxu0 %v306
    %2916 = vmatprep.subr.mxu0 %v315
    %2917 = vmatpush1.msra.mxu0 %v314
    %2918 = vmatprep.subr.mxu0 %v323
    %2919 = vmatpush1.msra.mxu0 %v322
    %2920 = vmatprep.subr.mxu0 %v331
    %2921 = vmatpush1.msra.mxu0 %v330
    %2922 = vmatprep.subr.mxu0 %v339
    %2923 = vmatpush1.msra.mxu0 %v338
    %2924 = vmatprep.subr.mxu0 %v347
    %2925 = vmatpush1.msra.mxu0 %v346
    %2926 = vmatprep.mubr.f32.mxu0 %v2831
    %2927 = vmatmul.mubr.f32.gmra.mrb[0].mxu0 %v2849
    %v2928 = vpop.f32.mrb[0].mxu0
    %v2929 = vadd.f32 0.0, %v2928
    %v2930 = vpop.f32.mrb[0].mxu0
    %v2931 = vadd.f32 0.0, %v2930
    %2932 = vdwg.mxu0
    %2933 = vmatprep.subr.mxu0 %v101
    %2934 = vmatpush1.msra.mxu0 %v100
    %2935 = vmatprep.subr.mxu0 %v109
    %2936 = vmatpush1.msra.mxu0 %v108
    %2937 = vmatprep.subr.mxu0 %v117
    %2938 = vmatpush1.msra.mxu0 %v116
    %2939 = vmatprep.subr.mxu0 %v125
    %2940 = vmatpush1.msra.mxu0 %v124
    %2941 = vmatprep.subr.mxu0 %v133
    %2942 = vmatpush1.msra.mxu0 %v132
    %2943 = vmatprep.subr.mxu0 %v141
    %2944 = vmatpush1.msra.mxu0 %v140
    %2945 = vmatprep.subr.mxu0 %v149
    %2946 = vmatpush1.msra.mxu0 %v148
    %2947 = vmatprep.subr.mxu0 %v157
    %2948 = vmatpush1.msra.mxu0 %v156
    %2949 = vmatprep.subr.mxu0 %v165
    %2950 = vmatpush1.msra.mxu0 %v164
    %2951 = vmatprep.subr.mxu0 %v173
    %2952 = vmatpush1.msra.mxu0 %v172
    %2953 = vmatprep.subr.mxu0 %v181
    %2954 = vmatpush1.msra.mxu0 %v180
    %2955 = vmatprep.subr.mxu0 %v189
    %2956 = vmatpush1.msra.mxu0 %v188
    %2957 = vmatprep.subr.mxu0 %v197
    %2958 = vmatpush1.msra.mxu0 %v196
    %2959 = vmatprep.subr.mxu0 %v205
    %2960 = vmatpush1.msra.mxu0 %v204
    %2961 = vmatprep.subr.mxu0 %v213
    %2962 = vmatpush1.msra.mxu0 %v212
    %2963 = vmatprep.subr.mxu0 %v221
    %2964 = vmatpush1.msra.mxu0 %v220
    %2965 = vmatprep.subr.mxu0 %v229
    %2966 = vmatpush1.msra.mxu0 %v228
    %2967 = vmatprep.subr.mxu0 %v237
    %2968 = vmatpush1.msra.mxu0 %v236
    %2969 = vmatprep.subr.mxu0 %v245
    %2970 = vmatpush1.msra.mxu0 %v244
    %2971 = vmatprep.subr.mxu0 %v253
    %2972 = vmatpush1.msra.mxu0 %v252
    %2973 = vmatprep.subr.mxu0 %v261
    %2974 = vmatpush1.msra.mxu0 %v260
    %2975 = vmatprep.subr.mxu0 %v269
    %2976 = vmatpush1.msra.mxu0 %v268
    %2977 = vmatprep.subr.mxu0 %v277
    %2978 = vmatpush1.msra.mxu0 %v276
    %2979 = vmatprep.subr.mxu0 %v285
    %2980 = vmatpush1.msra.mxu0 %v284
    %2981 = vmatprep.subr.mxu0 %v293
    %2982 = vmatpush1.msra.mxu0 %v292
    %2983 = vmatprep.subr.mxu0 %v301
    %2984 = vmatpush1.msra.mxu0 %v300
    %2985 = vmatprep.subr.mxu0 %v309
    %2986 = vmatpush1.msra.mxu0 %v308
    %2987 = vmatprep.subr.mxu0 %v317
    %2988 = vmatpush1.msra.mxu0 %v316
    %2989 = vmatprep.subr.mxu0 %v325
    %2990 = vmatpush1.msra.mxu0 %v324
    %2991 = vmatprep.subr.mxu0 %v333
    %2992 = vmatpush1.msra.mxu0 %v332
    %2993 = vmatprep.subr.mxu0 %v341
    %2994 = vmatpush1.msra.mxu0 %v340
    %2995 = vmatprep.subr.mxu0 %v349
    %2996 = vmatpush1.msra.mxu0 %v348
    %2997 = vmatprep.mubr.f32.mxu0 %v2831
    %2998 = vmatmul.mubr.f32.gmra.mrb[0].mxu0 %v2849
    %v2999 = vpop.f32.mrb[0].mxu0
    %v3000 = vadd.f32 0.0, %v2999
    %v3001 = vpop.f32.mrb[0].mxu0
    %v3002 = vadd.f32 0.0, %v3001
    %3003 = vdwg.mxu0
    %3004 = vmatprep.subr.mxu0 %v103
    %3005 = vmatpush1.msra.mxu0 %v102
    %3006 = vmatprep.subr.mxu0 %v111
    %3007 = vmatpush1.msra.mxu0 %v110
    %3008 = vmatprep.subr.mxu0 %v119
    %3009 = vmatpush1.msra.mxu0 %v118
    %3010 = vmatprep.subr.mxu0 %v127
    %3011 = vmatpush1.msra.mxu0 %v126
    %3012 = vmatprep.subr.mxu0 %v135
    %3013 = vmatpush1.msra.mxu0 %v134
    %3014 = vmatprep.subr.mxu0 %v143
    %3015 = vmatpush1.msra.mxu0 %v142
    %3016 = vmatprep.subr.mxu0 %v151
    %3017 = vmatpush1.msra.mxu0 %v150
    %3018 = vmatprep.subr.mxu0 %v159
    %3019 = vmatpush1.msra.mxu0 %v158
    %3020 = vmatprep.subr.mxu0 %v167
    %3021 = vmatpush1.msra.mxu0 %v166
    %3022 = vmatprep.subr.mxu0 %v175
    %3023 = vmatpush1.msra.mxu0 %v174
    %3024 = vmatprep.subr.mxu0 %v183
    %3025 = vmatpush1.msra.mxu0 %v182
    %3026 = vmatprep.subr.mxu0 %v191
    %3027 = vmatpush1.msra.mxu0 %v190
    %3028 = vmatprep.subr.mxu0 %v199
    %3029 = vmatpush1.msra.mxu0 %v198
    %3030 = vmatprep.subr.mxu0 %v207
    %3031 = vmatpush1.msra.mxu0 %v206
    %3032 = vmatprep.subr.mxu0 %v215
    %3033 = vmatpush1.msra.mxu0 %v214
    %3034 = vmatprep.subr.mxu0 %v223
    %3035 = vmatpush1.msra.mxu0 %v222
    %3036 = vmatprep.subr.mxu0 %v231
    %3037 = vmatpush1.msra.mxu0 %v230
    %3038 = vmatprep.subr.mxu0 %v239
    %3039 = vmatpush1.msra.mxu0 %v238
    %3040 = vmatprep.subr.mxu0 %v247
    %3041 = vmatpush1.msra.mxu0 %v246
    %3042 = vmatprep.subr.mxu0 %v255
    %3043 = vmatpush1.msra.mxu0 %v254
    %3044 = vmatprep.subr.mxu0 %v263
    %3045 = vmatpush1.msra.mxu0 %v262
    %3046 = vmatprep.subr.mxu0 %v271
    %3047 = vmatpush1.msra.mxu0 %v270
    %3048 = vmatprep.subr.mxu0 %v279
    %3049 = vmatpush1.msra.mxu0 %v278
    %3050 = vmatprep.subr.mxu0 %v287
    %3051 = vmatpush1.msra.mxu0 %v286
    %3052 = vmatprep.subr.mxu0 %v295
    %3053 = vmatpush1.msra.mxu0 %v294
    %3054 = vmatprep.subr.mxu0 %v303
    %3055 = vmatpush1.msra.mxu0 %v302
    %3056 = vmatprep.subr.mxu0 %v311
    %3057 = vmatpush1.msra.mxu0 %v310
    %3058 = vmatprep.subr.mxu0 %v319
    %3059 = vmatpush1.msra.mxu0 %v318
    %3060 = vmatprep.subr.mxu0 %v327
    %3061 = vmatpush1.msra.mxu0 %v326
    %3062 = vmatprep.subr.mxu0 %v335
    %3063 = vmatpush1.msra.mxu0 %v334
    %3064 = vmatprep.subr.mxu0 %v343
    %3065 = vmatpush1.msra.mxu0 %v342
    %3066 = vmatprep.subr.mxu0 %v351
    %3067 = vmatpush1.msra.mxu0 %v350
    %3068 = vmatprep.mubr.f32.mxu0 %v2831
    %3069 = vmatmul.mubr.f32.gmra.mrb[0].mxu0 %v2849
    %v3070 = vpop.f32.mrb[0].mxu0
    %v3071 = vadd.f32 0.0, %v3070
    %v3072 = vpop.f32.mrb[0].mxu0
    %v3073 = vadd.f32 0.0, %v3072
    %3074 = vdwg.mxu0
    %3075 = vmatprep.subr.mxu0 %v105
    %3076 = vmatpush1.msra.mxu0 %v104
    %3077 = vmatprep.subr.mxu0 %v113
    %3078 = vmatpush1.msra.mxu0 %v112
    %3079 = vmatprep.subr.mxu0 %v121
    %3080 = vmatpush1.msra.mxu0 %v120
    %3081 = vmatprep.subr.mxu0 %v129
    %3082 = vmatpush1.msra.mxu0 %v128
    %3083 = vmatprep.subr.mxu0 %v137
    %3084 = vmatpush1.msra.mxu0 %v136
    %3085 = vmatprep.subr.mxu0 %v145
    %3086 = vmatpush1.msra.mxu0 %v144
    %3087 = vmatprep.subr.mxu0 %v153
    %3088 = vmatpush1.msra.mxu0 %v152
    %3089 = vmatprep.subr.mxu0 %v161
    %3090 = vmatpush1.msra.mxu0 %v160
    %3091 = vmatprep.subr.mxu0 %v169
    %3092 = vmatpush1.msra.mxu0 %v168
    %3093 = vmatprep.subr.mxu0 %v177
    %3094 = vmatpush1.msra.mxu0 %v176
    %3095 = vmatprep.subr.mxu0 %v185
    %3096 = vmatpush1.msra.mxu0 %v184
    %3097 = vmatprep.subr.mxu0 %v193
    %3098 = vmatpush1.msra.mxu0 %v192
    %3099 = vmatprep.subr.mxu0 %v201
    %3100 = vmatpush1.msra.mxu0 %v200
    %3101 = vmatprep.subr.mxu0 %v209
    %3102 = vmatpush1.msra.mxu0 %v208
    %3103 = vmatprep.subr.mxu0 %v217
    %3104 = vmatpush1.msra.mxu0 %v216
    %3105 = vmatprep.subr.mxu0 %v225
    %3106 = vmatpush1.msra.mxu0 %v224
    %3107 = vmatprep.subr.mxu0 %v233
    %3108 = vmatpush1.msra.mxu0 %v232
    %3109 = vmatprep.subr.mxu0 %v241
    %3110 = vmatpush1.msra.mxu0 %v240
    %3111 = vmatprep.subr.mxu0 %v249
    %3112 = vmatpush1.msra.mxu0 %v248
    %3113 = vmatprep.subr.mxu0 %v257
    %3114 = vmatpush1.msra.mxu0 %v256
    %3115 = vmatprep.subr.mxu0 %v265
    %3116 = vmatpush1.msra.mxu0 %v264
    %3117 = vmatprep.subr.mxu0 %v273
    %3118 = vmatpush1.msra.mxu0 %v272
    %3119 = vmatprep.subr.mxu0 %v281
    %3120 = vmatpush1.msra.mxu0 %v280
    %3121 = vmatprep.subr.mxu0 %v289
    %3122 = vmatpush1.msra.mxu0 %v288
    %3123 = vmatprep.subr.mxu0 %v297
    %3124 = vmatpush1.msra.mxu0 %v296
    %3125 = vmatprep.subr.mxu0 %v305
    %3126 = vmatpush1.msra.mxu0 %v304
    %3127 = vmatprep.subr.mxu0 %v313
    %3128 = vmatpush1.msra.mxu0 %v312
    %3129 = vmatprep.subr.mxu0 %v321
    %3130 = vmatpush1.msra.mxu0 %v320
    %3131 = vmatprep.subr.mxu0 %v329
    %3132 = vmatpush1.msra.mxu0 %v328
    %3133 = vmatprep.subr.mxu0 %v337
    %3134 = vmatpush1.msra.mxu0 %v336
    %3135 = vmatprep.subr.mxu0 %v345
    %3136 = vmatpush1.msra.mxu0 %v344
    %3137 = vmatprep.subr.mxu0 %v353
    %3138 = vmatpush1.msra.mxu0 %v352
    %3139 = vmatprep.mubr.f32.mxu0 %v2831
    %3140 = vmatmul.mubr.f32.gmra.mrb[0].mxu0 %v2849
    %v3141 = vpop.f32.mrb[0].mxu0
    %v3142 = vadd.f32 0.0, %v3141
    %v3143 = vpop.f32.mrb[0].mxu0
    %v3144 = vadd.f32 0.0, %v3143
    %3145 = vdwg.mxu0
    %v3146 = vadd.f32 %v597, %v2929
    %v3147 = vadd.f32 %v599, %v2931
    %v3148 = vadd.f32 %v668, %v3000
    %v3149 = vadd.f32 %v670, %v3002
    %3151 = vset.pattern.permute.xlu0 0
    %3152 = vperm.xlu0 %3151, %v2861
    %v3153 = vpop.permute.xlu0 %3152
    %v3155 = vmul.f32 %v3153, %v999
    %v3156 = vmul.f32 %v3153, %v1003
    %v3157 = vmul.f32 %v3153, %v1007
    %v3158 = vmul.f32 %v3153, %v1011
    %v3159 = vadd.f32 %v3155, %v1024
    %v3160 = vadd.f32 %v3156, %v1028
    %v3161 = vadd.f32 %v3157, %v1032
    %v3162 = vadd.f32 %v3158, %v1036
    %v3163 = vadd.f32 %v3159, %v3071
    %v3164 = vadd.f32 %v3160, %v3073
    %v3165 = vadd.f32 %v3161, %v3142
    %v3166 = vadd.f32 %v3162, %v3144
    %v3167 = vmul.f32 %v3163, 0.5
    %v3168 = vmul.f32 %v3164, 0.5
    %v3169 = vmul.f32 %v3165, 0.5
    %v3170 = vtanh.pop %v3167
    %v3171 = vtanh.pop %v3168
    %v3172 = vtanh.pop %v3169
    %v3173 = vmul.f32 %v3170, 0.5
    %v3174 = vmul.f32 %v3171, 0.5
    %v3175 = vmul.f32 %v3172, 0.5
    %v3176 = vadd.f32 %v3173, 0.5
    %v3177 = vadd.f32 %v3174, 0.5
    %v3178 = vadd.f32 %v3175, 0.5
    %v3179 = vtanh.pop %v3166
    %v3180 = vmul.f32 %v3177, %v2829
    %v3181 = vmul.f32 %v3176, %v3179
    %v3182 = vadd.f32 %v3180, %v3181
    %v3183 = vtanh.pop %v3182
    %v3184 = vmul.f32 %v3178, %v3183
    %v3185 = vmul.f32 %v3146, 0.5
    %v3186 = vmul.f32 %v3147, 0.5
    %v3187 = vmul.f32 %v3148, 0.5
    %v3188 = vtanh.pop %v3185
    %v3189 = vtanh.pop %v3186
    %v3190 = vtanh.pop %v3187
    %v3191 = vmul.f32 %v3188, 0.5
    %v3192 = vmul.f32 %v3189, 0.5
    %v3193 = vmul.f32 %v3190, 0.5
    %v3194 = vadd.f32 %v3191, 0.5
    %v3195 = vadd.f32 %v3192, 0.5
    %v3196 = vadd.f32 %v3193, 0.5
    %v3197 = vtanh.pop %v3149
    %v3198 = vmul.f32 %v3195, %v2847
    %v3199 = vmul.f32 %v3194, %v3197
    %v3200 = vadd.f32 %v3198, %v3199
    %v3201 = vtanh.pop %v3200
    %v3202 = vmul.f32 %v3196, %v3201
    %v3203 = vlaneseq
    %v3204 = vshrl.u32 %v3203, 7
    %v3205 = vsub.s32 7, %v3204
    %v3206 = vrot.slane %v354, %v3205
    %v3207 = vmul.f32 %v3202, %v3206
    %3208 = vadd.xlane.f32.xlu0 %v3207
    %v3209 = vpop.xlane.xlu0 %3208
    %v3210 = vlaneseq
    %v3211 = vshrl.u32 %v3210, 7
    %v3212 = vsub.s32 7, %v3211
    %v3213 = vrot.slane %v355, %v3212
    %v3214 = vadd.f32 %v3209, %v3213
    %3215 = vmatprep.subr.mxu0 %v103
    %3216 = vmatpush1.msra.mxu0 %v102
    %3217 = vmatprep.subr.mxu0 %v111
    %3218 = vmatpush1.msra.mxu0 %v110
    %3219 = vmatprep.subr.mxu0 %v119
    %3220 = vmatpush1.msra.mxu0 %v118
    %3221 = vmatprep.subr.mxu0 %v127
    %3222 = vmatpush1.msra.mxu0 %v126
    %3223 = vmatprep.subr.mxu0 %v135
    %3224 = vmatpush1.msra.mxu0 %v134
    %3225 = vmatprep.subr.mxu0 %v143
    %3226 = vmatpush1.msra.mxu0 %v142
    %3227 = vmatprep.subr.mxu0 %v151
    %3228 = vmatpush1.msra.mxu0 %v150
    %3229 = vmatprep.subr.mxu0 %v159
    %3230 = vmatpush1.msra.mxu0 %v158
    %3231 = vmatprep.subr.mxu0 %v167
    %3232 = vmatpush1.msra.mxu0 %v166
    %3233 = vmatprep.subr.mxu0 %v175
    %3234 = vmatpush1.msra.mxu0 %v174
    %3235 = vmatprep.subr.mxu0 %v183
    %3236 = vmatpush1.msra.mxu0 %v182
    %3237 = vmatprep.subr.mxu0 %v191
    %3238 = vmatpush1.msra.mxu0 %v190
    %3239 = vmatprep.subr.mxu0 %v199
    %3240 = vmatpush1.msra.mxu0 %v198
    %3241 = vmatprep.subr.mxu0 %v207
    %3242 = vmatpush1.msra.mxu0 %v206
    %3243 = vmatprep.subr.mxu0 %v215
    %3244 = vmatpush1.msra.mxu0 %v214
    %3245 = vmatprep.subr.mxu0 %v223
    %3246 = vmatpush1.msra.mxu0 %v222
    %3247 = vmatprep.subr.mxu0 %v231
    %3248 = vmatpush1.msra.mxu0 %v230
    %3249 = vmatprep.subr.mxu0 %v239
    %3250 = vmatpush1.msra.mxu0 %v238
    %3251 = vmatprep.subr.mxu0 %v247
    %3252 = vmatpush1.msra.mxu0 %v246
    %3253 = vmatprep.subr.mxu0 %v255
    %3254 = vmatpush1.msra.mxu0 %v254
    %3255 = vmatprep.subr.mxu0 %v263
    %3256 = vmatpush1.msra.mxu0 %v262
    %3257 = vmatprep.subr.mxu0 %v271
    %3258 = vmatpush1.msra.mxu0 %v270
    %3259 = vmatprep.subr.mxu0 %v279
    %3260 = vmatpush1.msra.mxu0 %v278
    %3261 = vmatprep.subr.mxu0 %v287
    %3262 = vmatpush1.msra.mxu0 %v286
    %3263 = vmatprep.subr.mxu0 %v295
    %3264 = vmatpush1.msra.mxu0 %v294
    %3265 = vmatprep.subr.mxu0 %v303
    %3266 = vmatpush1.msra.mxu0 %v302
    %3267 = vmatprep.subr.mxu0 %v311
    %3268 = vmatpush1.msra.mxu0 %v310
    %3269 = vmatprep.subr.mxu0 %v319
    %3270 = vmatpush1.msra.mxu0 %v318
    %3271 = vmatprep.subr.mxu0 %v327
    %3272 = vmatpush1.msra.mxu0 %v326
    %3273 = vmatprep.subr.mxu0 %v335
    %3274 = vmatpush1.msra.mxu0 %v334
    %3275 = vmatprep.subr.mxu0 %v343
    %3276 = vmatpush1.msra.mxu0 %v342
    %3277 = vmatprep.subr.mxu0 %v351
    %3278 = vmatpush1.msra.mxu0 %v350
    %3279 = vmatprep.mubr.f32.mxu0 %v3184
    %3280 = vmatmul.mubr.f32.gmra.mrb[0].mxu0 %v3202
    %v3281 = vpop.f32.mrb[0].mxu0
    %v3282 = vadd.f32 0.0, %v3281
    %v3283 = vpop.f32.mrb[0].mxu0
    %v3284 = vadd.f32 0.0, %v3283
    %3285 = vdwg.mxu0
    %3286 = vmatprep.subr.mxu0 %v105
    %3287 = vmatpush1.msra.mxu0 %v104
    %3288 = vmatprep.subr.mxu0 %v113
    %3289 = vmatpush1.msra.mxu0 %v112
    %3290 = vmatprep.subr.mxu0 %v121
    %3291 = vmatpush1.msra.mxu0 %v120
    %3292 = vmatprep.subr.mxu0 %v129
    %3293 = vmatpush1.msra.mxu0 %v128
    %3294 = vmatprep.subr.mxu0 %v137
    %3295 = vmatpush1.msra.mxu0 %v136
    %3296 = vmatprep.subr.mxu0 %v145
    %3297 = vmatpush1.msra.mxu0 %v144
    %3298 = vmatprep.subr.mxu0 %v153
    %3299 = vmatpush1.msra.mxu0 %v152
    %3300 = vmatprep.subr.mxu0 %v161
    %3301 = vmatpush1.msra.mxu0 %v160
    %3302 = vmatprep.subr.mxu0 %v169
    %3303 = vmatpush1.msra.mxu0 %v168
    %3304 = vmatprep.subr.mxu0 %v177
    %3305 = vmatpush1.msra.mxu0 %v176
    %3306 = vmatprep.subr.mxu0 %v185
    %3307 = vmatpush1.msra.mxu0 %v184
    %3308 = vmatprep.subr.mxu0 %v193
    %3309 = vmatpush1.msra.mxu0 %v192
    %3310 = vmatprep.subr.mxu0 %v201
    %3311 = vmatpush1.msra.mxu0 %v200
    %3312 = vmatprep.subr.mxu0 %v209
    %3313 = vmatpush1.msra.mxu0 %v208
    %3314 = vmatprep.subr.mxu0 %v217
    %3315 = vmatpush1.msra.mxu0 %v216
    %3316 = vmatprep.subr.mxu0 %v225
    %3317 = vmatpush1.msra.mxu0 %v224
    %3318 = vmatprep.subr.mxu0 %v233
    %3319 = vmatpush1.msra.mxu0 %v232
    %3320 = vmatprep.subr.mxu0 %v241
    %3321 = vmatpush1.msra.mxu0 %v240
    %3322 = vmatprep.subr.mxu0 %v249
    %3323 = vmatpush1.msra.mxu0 %v248
    %3324 = vmatprep.subr.mxu0 %v257
    %3325 = vmatpush1.msra.mxu0 %v256
    %3326 = vmatprep.subr.mxu0 %v265
    %3327 = vmatpush1.msra.mxu0 %v264
    %3328 = vmatprep.subr.mxu0 %v273
    %3329 = vmatpush1.msra.mxu0 %v272
    %3330 = vmatprep.subr.mxu0 %v281
    %3331 = vmatpush1.msra.mxu0 %v280
    %3332 = vmatprep.subr.mxu0 %v289
    %3333 = vmatpush1.msra.mxu0 %v288
    %3334 = vmatprep.subr.mxu0 %v297
    %3335 = vmatpush1.msra.mxu0 %v296
    %3336 = vmatprep.subr.mxu0 %v305
    %3337 = vmatpush1.msra.mxu0 %v304
    %3338 = vmatprep.subr.mxu0 %v313
    %3339 = vmatpush1.msra.mxu0 %v312
    %3340 = vmatprep.subr.mxu0 %v321
    %3341 = vmatpush1.msra.mxu0 %v320
    %3342 = vmatprep.subr.mxu0 %v329
    %3343 = vmatpush1.msra.mxu0 %v328
    %3344 = vmatprep.subr.mxu0 %v337
    %3345 = vmatpush1.msra.mxu0 %v336
    %3346 = vmatprep.subr.mxu0 %v345
    %3347 = vmatpush1.msra.mxu0 %v344
    %3348 = vmatprep.subr.mxu0 %v353
    %3349 = vmatpush1.msra.mxu0 %v352
    %3350 = vmatprep.mubr.f32.mxu0 %v3184
    %3351 = vmatmul.mubr.f32.gmra.mrb[0].mxu0 %v3202
    %v3352 = vpop.f32.mrb[0].mxu0
    %v3353 = vadd.f32 0.0, %v3352
    %v3354 = vpop.f32.mrb[0].mxu0
    %v3355 = vadd.f32 0.0, %v3354
    %3356 = vdwg.mxu0
    %3358 = vset.pattern.permute.xlu0 0
    %3359 = vperm.xlu0 %3358, %v3214
    %v3360 = vpop.permute.xlu0 %3359
    %v3362 = vmul.f32 %v3360, %v999
    %v3363 = vmul.f32 %v3360, %v1003
    %v3364 = vmul.f32 %v3360, %v1007
    %v3365 = vmul.f32 %v3360, %v1011
    %v3366 = vadd.f32 %v3362, %v1024
    %v3367 = vadd.f32 %v3363, %v1028
    %v3368 = vadd.f32 %v3364, %v1032
    %v3369 = vadd.f32 %v3365, %v1036
    %v3370 = vadd.f32 %v3366, %v3282
    %v3371 = vadd.f32 %v3367, %v3284
    %v3372 = vadd.f32 %v3368, %v3353
    %v3373 = vadd.f32 %v3369, %v3355
    %v3374 = vmul.f32 %v3370, 0.5
    %v3375 = vmul.f32 %v3371, 0.5
    %v3376 = vmul.f32 %v3372, 0.5
    %v3377 = vtanh.pop %v3374
    %v3378 = vtanh.pop %v3375
    %v3379 = vtanh.pop %v3376
    %v3380 = vmul.f32 %v3377, 0.5
    %v3381 = vmul.f32 %v3378, 0.5
    %v3382 = vmul.f32 %v3379, 0.5
    %v3383 = vadd.f32 %v3380, 0.5
    %v3384 = vadd.f32 %v3381, 0.5
    %v3385 = vadd.f32 %v3382, 0.5
    %v3386 = vtanh.pop %v3373
    %v3387 = vmul.f32 %v3384, %v3182
    %v3388 = vmul.f32 %v3383, %v3386
    %v3389 = vadd.f32 %v3387, %v3388
    %v3390 = vtanh.pop %v3389
    %v3391 = vmul.f32 %v3385, %v3390
    %v3393 = vcombine.high %v354, %v354
    %v3395 = vunpack.c.l.s4 1966171168
    %v3396 = vunpack.c.0.s8 %v3395
    %v3397 = vlaneseq
    %v3398 = vshrl.u32 %v3397, 7
    %v3399 = vsub.s32 %v3396, %v3398
    %v3400 = vrot.slane %v354, %v3399
    %v3402 = vunpack.c.l.s4 1966171168
    %v3403 = vunpack.c.0.s8 %v3402
    %v3404 = vlaneseq
    %v3405 = vshrl.u32 %v3404, 7
    %v3406 = vsub.s32 %v3403, %v3405
    %v3407 = vrot.slane %v3393, %v3406
    %v3408 = vcombine.high %v3400, %v3400
    %v3409 = vcombine.high %v3407, %v3407
    %v3411 = vunpack.c.l.s4 1966171168
    %v3412 = vunpack.c.0.s8 %v3411
    %v3413 = vlaneseq
    %v3414 = vshrl.u32 %v3413, 7
    %v3415 = vsub.s32 %v3412, %v3414
    %v3416 = vrot.slane %v3400, %v3415
    %v3418 = vunpack.c.l.s4 1966171168
    %v3419 = vunpack.c.0.s8 %v3418
    %v3420 = vlaneseq
    %v3421 = vshrl.u32 %v3420, 7
    %v3422 = vsub.s32 %v3419, %v3421
    %v3423 = vrot.slane %v3407, %v3422
    %v3425 = vunpack.c.l.s4 1966171168
    %v3426 = vunpack.c.0.s8 %v3425
    %v3427 = vlaneseq
    %v3428 = vshrl.u32 %v3427, 7
    %v3429 = vsub.s32 %v3426, %v3428
    %v3430 = vrot.slane %v3408, %v3429
    %v3432 = vunpack.c.l.s4 1966171168
    %v3433 = vunpack.c.0.s8 %v3432
    %v3434 = vlaneseq
    %v3435 = vshrl.u32 %v3434, 7
    %v3436 = vsub.s32 %v3433, %v3435
    %v3437 = vrot.slane %v3409, %v3436
    %v3438 = vcombine.high %v3416, %v3416
    %v3439 = vcombine.high %v3423, %v3423
    %v3440 = vcombine.high %v3430, %v3430
    %v3441 = vcombine.high %v3437, %v3437
    %v3442 = vlaneseq
    %v3443 = vshrl.u32 %v3442, 7
    %v3444 = vsub.s32 0, %v3443
    %v3445 = vrot.slane %v3416, %v3444
    %v3446 = vlaneseq
    %v3447 = vshrl.u32 %v3446, 7
    %v3448 = vsub.s32 0, %v3447
    %v3449 = vrot.slane %v3430, %v3448
    %v3450 = vlaneseq
    %v3451 = vshrl.u32 %v3450, 7
    %v3452 = vsub.s32 0, %v3451
    %v3453 = vrot.slane %v3438, %v3452
    %v3454 = vlaneseq
    %v3455 = vshrl.u32 %v3454, 7
    %v3456 = vsub.s32 0, %v3455
    %v3457 = vrot.slane %v3440, %v3456
    %v3458 = vlaneseq
    %v3459 = vshrl.u32 %v3458, 7
    %v3460 = vsub.s32 0, %v3459
    %v3461 = vrot.slane %v3423, %v3460
    %v3462 = vlaneseq
    %v3463 = vshrl.u32 %v3462, 7
    %v3464 = vsub.s32 0, %v3463
    %v3465 = vrot.slane %v3437, %v3464
    %v3466 = vlaneseq
    %v3467 = vshrl.u32 %v3466, 7
    %v3468 = vsub.s32 0, %v3467
    %v3469 = vrot.slane %v3439, %v3468
    %v3470 = vlaneseq
    %v3471 = vshrl.u32 %v3470, 7
    %v3472 = vsub.s32 0, %v3471
    %v3473 = vrot.slane %v3441, %v3472
    %v3482 = vmul.f32 %v689, %v3445
    %v3483 = vmul.f32 %v1084, %v3449
    %v3484 = vmul.f32 %v1437, %v3453
    %v3485 = vmul.f32 %v1790, %v3457
    %v3486 = vmul.f32 %v2143, %v3461
    %v3487 = vmul.f32 %v2496, %v3465
    %v3488 = vmul.f32 %v2849, %v3469
    %v3489 = vmul.f32 %v3202, %v3473
    %3490 = vadd.xlane.f32.xlu0 %v3482
    %v3491 = vpop.xlane.xlu0 %3490
    %3492 = vadd.xlane.f32.xlu0 %v3483
    %v3493 = vpop.xlane.xlu0 %3492
    %3494 = vadd.xlane.f32.xlu0 %v3484
    %v3495 = vpop.xlane.xlu0 %3494
    %3496 = vadd.xlane.f32.xlu0 %v3485
    %v3497 = vpop.xlane.xlu0 %3496
    %3498 = vadd.xlane.f32.xlu0 %v3486
    %v3499 = vpop.xlane.xlu0 %3498
    %3500 = vadd.xlane.f32.xlu0 %v3487
    %v3501 = vpop.xlane.xlu0 %3500
    %3502 = vadd.xlane.f32.xlu0 %v3488
    %v3503 = vpop.xlane.xlu0 %3502
    %3504 = vadd.xlane.f32.xlu0 %v3489
    %v3505 = vpop.xlane.xlu0 %3504
    %3507 = vset.pattern.permute.xlu0 0
    %3508 = vperm.xlu0 %3507, %v355
    %v3509 = vpop.permute.xlu0 %3508
    %v3510 = vlaneseq
    %v3511 = vshrl.u32 %v3510, 7
    %v3512 = vsub.s32 0, %v3511
    %v3513 = vrot.slane %v3509, %v3512
    %v3514 = vlaneseq
    %v3515 = vshrl.u32 %v3514, 7
    %v3516 = vsub.s32 1, %v3515
    %v3517 = vrot.slane %v3509, %v3516
    %v3518 = vlaneseq
    %v3519 = vshrl.u32 %v3518, 7
    %v3520 = vsub.s32 2, %v3519
    %v3521 = vrot.slane %v3509, %v3520
    %v3522 = vlaneseq
    %v3523 = vshrl.u32 %v3522, 7
    %v3524 = vsub.s32 3, %v3523
    %v3525 = vrot.slane %v3509, %v3524
    %v3526 = vlaneseq
    %v3527 = vshrl.u32 %v3526, 7
    %v3528 = vsub.s32 4, %v3527
    %v3529 = vrot.slane %v3509, %v3528
    %v3530 = vlaneseq
    %v3531 = vshrl.u32 %v3530, 7
    %v3532 = vsub.s32 5, %v3531
    %v3533 = vrot.slane %v3509, %v3532
    %v3534 = vlaneseq
    %v3535 = vshrl.u32 %v3534, 7
    %v3536 = vsub.s32 6, %v3535
    %v3537 = vrot.slane %v3509, %v3536
    %v3538 = vlaneseq
    %v3539 = vshrl.u32 %v3538, 7
    %v3540 = vsub.s32 7, %v3539
    %v3541 = vrot.slane %v3509, %v3540
    %v3550 = vadd.f32 %v3491, %v3513
    %v3551 = vadd.f32 %v3493, %v3517
    %v3552 = vadd.f32 %v3495, %v3521
    %v3553 = vadd.f32 %v3497, %v3525
    %v3554 = vadd.f32 %v3499, %v3529
    %v3555 = vadd.f32 %v3501, %v3533
    %v3556 = vadd.f32 %v3503, %v3537
    %v3557 = vadd.f32 %v3505, %v3541
    %3566 = vset.pattern.permute.xlu0 0
    %3567 = vperm.xlu0 %3566, %v3550
    %v3568 = vpop.permute.xlu0 %3567
    %3569 = vset.pattern.permute.xlu0 0
    %3570 = vperm.xlu0 %3569, %v3551
    %v3571 = vpop.permute.xlu0 %3570
    %3572 = vset.pattern.permute.xlu0 0
    %3573 = vperm.xlu0 %3572, %v3552
    %v3574 = vpop.permute.xlu0 %3573
    %3575 = vset.pattern.permute.xlu0 0
    %3576 = vperm.xlu0 %3575, %v3553
    %v3577 = vpop.permute.xlu0 %3576
    %3578 = vset.pattern.permute.xlu0 0
    %3579 = vperm.xlu0 %3578, %v3554
    %v3580 = vpop.permute.xlu0 %3579
    %3581 = vset.pattern.permute.xlu0 0
    %3582 = vperm.xlu0 %3581, %v3555
    %v3583 = vpop.permute.xlu0 %3582
    %3584 = vset.pattern.permute.xlu0 0
    %3585 = vperm.xlu0 %3584, %v3556
    %v3586 = vpop.permute.xlu0 %3585
    %3587 = vset.pattern.permute.xlu0 0
    %3588 = vperm.xlu0 %3587, %v3557
    %v3589 = vpop.permute.xlu0 %3588
    %v3590 = vlaneseq
    %v3591 = vand.u32 %v3590, 127
    %v3592 = vlaneseq
    %v3593 = vshrl.u32 %v3592, 7
    %v3594 = vsub.s32 %v3591, %v3593
    %v3595 = vrot.slane %v3568, %v3594
    %v3596 = vlaneseq
    %v3597 = vshrl.u32 %v3596, 7
    %v3598 = vsub.s32 %v3591, %v3597
    %v3599 = vrot.slane %v3571, %v3598
    %v3600 = vlaneseq
    %v3601 = vshrl.u32 %v3600, 7
    %v3602 = vsub.s32 %v3591, %v3601
    %v3603 = vrot.slane %v3574, %v3602
    %v3604 = vlaneseq
    %v3605 = vshrl.u32 %v3604, 7
    %v3606 = vsub.s32 %v3591, %v3605
    %v3607 = vrot.slane %v3577, %v3606
    %v3608 = vlaneseq
    %v3609 = vshrl.u32 %v3608, 7
    %v3610 = vsub.s32 %v3591, %v3609
    %v3611 = vrot.slane %v3580, %v3610
    %v3612 = vlaneseq
    %v3613 = vshrl.u32 %v3612, 7
    %v3614 = vsub.s32 %v3591, %v3613
    %v3615 = vrot.slane %v3583, %v3614
    %v3616 = vlaneseq
    %v3617 = vshrl.u32 %v3616, 7
    %v3618 = vsub.s32 %v3591, %v3617
    %v3619 = vrot.slane %v3586, %v3618
    %v3620 = vlaneseq
    %v3621 = vshrl.u32 %v3620, 7
    %v3622 = vsub.s32 %v3591, %v3621
    %v3623 = vrot.slane %v3589, %v3622
    %vm3624 = vcmask 1041409
    %v3625 = vsel %vm3624, %v3599, %v3595
    %vm3626 = vcmask 1042434
    %v3627 = vsel %vm3626, %v3603, %v3625
    %vm3628 = vcmask 1043459
    %v3629 = vsel %vm3628, %v3607, %v3627
    %vm3630 = vcmask 1044484
    %v3631 = vsel %vm3630, %v3611, %v3629
    %vm3632 = vcmask 1045509
    %v3633 = vsel %vm3632, %v3615, %v3631
    %vm3634 = vcmask 1046534
    %v3635 = vsel %vm3634, %v3619, %v3633
    %vm3636 = vcmask 1047559
    %v3637 = vsel %vm3636, %v3623, %v3635
    %vm3639 = vcmask 64512
    %3640 = vst.msk [vmem:[#allocation10] sm:$0xff] %vm3639, %v3637
    %v3641 = vld [vmem:[%s10] sm:$0xff]
    %v3643 = vcombine.high %v3641, %v3641
    %v3645 = vunpack.c.l.s4 1966171168
    %v3646 = vunpack.c.0.s8 %v3645
    %v3647 = vlaneseq
    %v3648 = vshrl.u32 %v3647, 7
    %v3649 = vsub.s32 %v3646, %v3648
    %v3650 = vrot.slane %v3641, %v3649
    %v3652 = vunpack.c.l.s4 1966171168
    %v3653 = vunpack.c.0.s8 %v3652
    %v3654 = vlaneseq
    %v3655 = vshrl.u32 %v3654, 7
    %v3656 = vsub.s32 %v3653, %v3655
    %v3657 = vrot.slane %v3643, %v3656
    %v3658 = vcombine.high %v3650, %v3650
    %v3659 = vcombine.high %v3657, %v3657
    %v3661 = vunpack.c.l.s4 1966171168
    %v3662 = vunpack.c.0.s8 %v3661
    %v3663 = vlaneseq
    %v3664 = vshrl.u32 %v3663, 7
    %v3665 = vsub.s32 %v3662, %v3664
    %v3666 = vrot.slane %v3650, %v3665
    %v3668 = vunpack.c.l.s4 1966171168
    %v3669 = vunpack.c.0.s8 %v3668
    %v3670 = vlaneseq
    %v3671 = vshrl.u32 %v3670, 7
    %v3672 = vsub.s32 %v3669, %v3671
    %v3673 = vrot.slane %v3657, %v3672
    %v3675 = vunpack.c.l.s4 1966171168
    %v3676 = vunpack.c.0.s8 %v3675
    %v3677 = vlaneseq
    %v3678 = vshrl.u32 %v3677, 7
    %v3679 = vsub.s32 %v3676, %v3678
    %v3680 = vrot.slane %v3658, %v3679
    %v3682 = vunpack.c.l.s4 1966171168
    %v3683 = vunpack.c.0.s8 %v3682
    %v3684 = vlaneseq
    %v3685 = vshrl.u32 %v3684, 7
    %v3686 = vsub.s32 %v3683, %v3685
    %v3687 = vrot.slane %v3659, %v3686
    %v3688 = vcombine.high %v3666, %v3666
    %v3689 = vcombine.high %v3673, %v3673
    %v3690 = vcombine.high %v3680, %v3680
    %v3691 = vcombine.high %v3687, %v3687
    %v3692 = vlaneseq
    %v3693 = vshrl.u32 %v3692, 7
    %v3694 = vsub.s32 0, %v3693
    %v3695 = vrot.slane %v3666, %v3694
    %v3696 = vlaneseq
    %v3697 = vshrl.u32 %v3696, 7
    %v3698 = vsub.s32 0, %v3697
    %v3699 = vrot.slane %v3680, %v3698
    %v3700 = vlaneseq
    %v3701 = vshrl.u32 %v3700, 7
    %v3702 = vsub.s32 0, %v3701
    %v3703 = vrot.slane %v3688, %v3702
    %v3704 = vlaneseq
    %v3705 = vshrl.u32 %v3704, 7
    %v3706 = vsub.s32 0, %v3705
    %v3707 = vrot.slane %v3690, %v3706
    %v3708 = vlaneseq
    %v3709 = vshrl.u32 %v3708, 7
    %v3710 = vsub.s32 0, %v3709
    %v3711 = vrot.slane %v3673, %v3710
    %v3712 = vlaneseq
    %v3713 = vshrl.u32 %v3712, 7
    %v3714 = vsub.s32 0, %v3713
    %v3715 = vrot.slane %v3687, %v3714
    %v3716 = vlaneseq
    %v3717 = vshrl.u32 %v3716, 7
    %v3718 = vsub.s32 0, %v3717
    %v3719 = vrot.slane %v3689, %v3718
    %v3720 = vlaneseq
    %v3721 = vshrl.u32 %v3720, 7
    %v3722 = vsub.s32 0, %v3721
    %v3723 = vrot.slane %v3691, %v3722
    %v3732 = vmul.f32 %v1066, %v3695
    %v3733 = vmul.f32 %v1419, %v3699
    %v3734 = vmul.f32 %v1772, %v3703
    %v3735 = vmul.f32 %v2125, %v3707
    %v3736 = vmul.f32 %v2478, %v3711
    %v3737 = vmul.f32 %v2831, %v3715
    %v3738 = vmul.f32 %v3184, %v3719
    %v3739 = vmul.f32 %v3391, %v3723
    %3740 = vadd.xlane.f32.xlu0 %v3732
    %v3741 = vpop.xlane.xlu0 %3740
    %3742 = vadd.xlane.f32.xlu0 %v3733
    %v3743 = vpop.xlane.xlu0 %3742
    %3744 = vadd.xlane.f32.xlu0 %v3734
    %v3745 = vpop.xlane.xlu0 %3744
    %3746 = vadd.xlane.f32.xlu0 %v3735
    %v3747 = vpop.xlane.xlu0 %3746
    %3748 = vadd.xlane.f32.xlu0 %v3736
    %v3749 = vpop.xlane.xlu0 %3748
    %3750 = vadd.xlane.f32.xlu0 %v3737
    %v3751 = vpop.xlane.xlu0 %3750
    %3752 = vadd.xlane.f32.xlu0 %v3738
    %v3753 = vpop.xlane.xlu0 %3752
    %3754 = vadd.xlane.f32.xlu0 %v3739
    %v3755 = vpop.xlane.xlu0 %3754
    %v3756 = vld [vmem:[%s11] sm:$0xff]
    %3758 = vset.pattern.permute.xlu0 0
    %3759 = vperm.xlu0 %3758, %v3756
    %v3760 = vpop.permute.xlu0 %3759
    %v3761 = vlaneseq
    %v3762 = vshrl.u32 %v3761, 7
    %v3763 = vsub.s32 0, %v3762
    %v3764 = vrot.slane %v3760, %v3763
    %v3765 = vlaneseq
    %v3766 = vshrl.u32 %v3765, 7
    %v3767 = vsub.s32 1, %v3766
    %v3768 = vrot.slane %v3760, %v3767
    %v3769 = vlaneseq
    %v3770 = vshrl.u32 %v3769, 7
    %v3771 = vsub.s32 2, %v3770
    %v3772 = vrot.slane %v3760, %v3771
    %v3773 = vlaneseq
    %v3774 = vshrl.u32 %v3773, 7
    %v3775 = vsub.s32 3, %v3774
    %v3776 = vrot.slane %v3760, %v3775
    %v3777 = vlaneseq
    %v3778 = vshrl.u32 %v3777, 7
    %v3779 = vsub.s32 4, %v3778
    %v3780 = vrot.slane %v3760, %v3779
    %v3781 = vlaneseq
    %v3782 = vshrl.u32 %v3781, 7
    %v3783 = vsub.s32 5, %v3782
    %v3784 = vrot.slane %v3760, %v3783
    %v3785 = vlaneseq
    %v3786 = vshrl.u32 %v3785, 7
    %v3787 = vsub.s32 6, %v3786
    %v3788 = vrot.slane %v3760, %v3787
    %v3789 = vlaneseq
    %v3790 = vshrl.u32 %v3789, 7
    %v3791 = vsub.s32 7, %v3790
    %v3792 = vrot.slane %v3760, %v3791
    %v3801 = vadd.f32 %v3741, %v3764
    %v3802 = vadd.f32 %v3743, %v3768
    %v3803 = vadd.f32 %v3745, %v3772
    %v3804 = vadd.f32 %v3747, %v3776
    %v3805 = vadd.f32 %v3749, %v3780
    %v3806 = vadd.f32 %v3751, %v3784
    %v3807 = vadd.f32 %v3753, %v3788
    %v3808 = vadd.f32 %v3755, %v3792
    %3817 = vset.pattern.permute.xlu0 0
    %3818 = vperm.xlu0 %3817, %v3801
    %v3819 = vpop.permute.xlu0 %3818
    %3820 = vset.pattern.permute.xlu0 0
    %3821 = vperm.xlu0 %3820, %v3802
    %v3822 = vpop.permute.xlu0 %3821
    %3823 = vset.pattern.permute.xlu0 0
    %3824 = vperm.xlu0 %3823, %v3803
    %v3825 = vpop.permute.xlu0 %3824
    %3826 = vset.pattern.permute.xlu0 0
    %3827 = vperm.xlu0 %3826, %v3804
    %v3828 = vpop.permute.xlu0 %3827
    %3829 = vset.pattern.permute.xlu0 0
    %3830 = vperm.xlu0 %3829, %v3805
    %v3831 = vpop.permute.xlu0 %3830
    %3832 = vset.pattern.permute.xlu0 0
    %3833 = vperm.xlu0 %3832, %v3806
    %v3834 = vpop.permute.xlu0 %3833
    %3835 = vset.pattern.permute.xlu0 0
    %3836 = vperm.xlu0 %3835, %v3807
    %v3837 = vpop.permute.xlu0 %3836
    %3838 = vset.pattern.permute.xlu0 0
    %3839 = vperm.xlu0 %3838, %v3808
    %v3840 = vpop.permute.xlu0 %3839
    %v3841 = vlaneseq
    %v3842 = vshrl.u32 %v3841, 7
    %v3843 = vsub.s32 %v3591, %v3842
    %v3844 = vrot.slane %v3819, %v3843
    %v3845 = vlaneseq
    %v3846 = vshrl.u32 %v3845, 7
    %v3847 = vsub.s32 %v3591, %v3846
    %v3848 = vrot.slane %v3822, %v3847
    %v3849 = vlaneseq
    %v3850 = vshrl.u32 %v3849, 7
    %v3851 = vsub.s32 %v3591, %v3850
    %v3852 = vrot.slane %v3825, %v3851
    %v3853 = vlaneseq
    %v3854 = vshrl.u32 %v3853, 7
    %v3855 = vsub.s32 %v3591, %v3854
    %v3856 = vrot.slane %v3828, %v3855
    %v3857 = vlaneseq
    %v3858 = vshrl.u32 %v3857, 7
    %v3859 = vsub.s32 %v3591, %v3858
    %v3860 = vrot.slane %v3831, %v3859
    %v3861 = vlaneseq
    %v3862 = vshrl.u32 %v3861, 7
    %v3863 = vsub.s32 %v3591, %v3862
    %v3864 = vrot.slane %v3834, %v3863
    %v3865 = vlaneseq
    %v3866 = vshrl.u32 %v3865, 7
    %v3867 = vsub.s32 %v3591, %v3866
    %v3868 = vrot.slane %v3837, %v3867
    %v3869 = vlaneseq
    %v3870 = vshrl.u32 %v3869, 7
    %v3871 = vsub.s32 %v3591, %v3870
    %v3872 = vrot.slane %v3840, %v3871
    %v3873 = vsel %vm3624, %v3848, %v3844
    %v3874 = vsel %vm3626, %v3852, %v3873
    %v3875 = vsel %vm3628, %v3856, %v3874
    %v3876 = vsel %vm3630, %v3860, %v3875
    %v3877 = vsel %vm3632, %v3864, %v3876
    %v3878 = vsel %vm3634, %v3868, %v3877
    %v3879 = vsel %vm3636, %v3872, %v3878
    %3881 = vst.msk [vmem:[#allocation11] sm:$0xff] %vm3639, %v3879
    // Predicated region
    $region66: #{tpu_custom_call.1} parent=1 // pred_check
      _
    $region67: #{tpu_custom_call.1} parent=1 // pred_check_branch
      %3883 = sbr.rel (0) target = $region69
    $region68: #{tpu_custom_call.1} parent=1 // pred_region
      %s3885 = ssub.s32 128, 128
      %3886 = vsyncadd [#allocation4], %s3885
      %s3888 = sshll.u32 [#allocation10], 4
      %s3889 = int_to_ptr.vmem [resolvable:$true] %s3888
      %3891 = dma.vmem_to_hbm [thread:$0]  %s3889, 128, %s12, [#allocation4]
    $region69: #{tpu_custom_call.1} parent=1 // pred_fallthru
      _
    // Predicated region
    $region70: #{tpu_custom_call.1} parent=1 // pred_check
      _
    $region71: #{tpu_custom_call.1} parent=1 // pred_check_branch
      %3893 = sbr.rel (0) target = $region73
    $region72: #{tpu_custom_call.1} parent=1 // pred_region
      %s3895 = ssub.s32 128, 128
      %3896 = vsyncadd [#allocation12], %s3895
      %s3898 = sshll.u32 [#allocation11], 4
      %s3899 = int_to_ptr.vmem [resolvable:$true] %s3898
      %3901 = dma.vmem_to_hbm [thread:$0]  %s3899, 128, %s13, [#allocation12]
    $region73: #{tpu_custom_call.1} parent=1 // pred_fallthru
      _
    // Predicated region
    $region74: #{tpu_custom_call.1} parent=1 // pred_check
      _
    $region75: #{tpu_custom_call.1} parent=1 // pred_check_branch
      %3903 = sbr.rel (0) target = $region77
    $region76: #{tpu_custom_call.1} parent=1 // pred_region
      %3904 = dma.done [#allocation4], 128
    $region77: #{tpu_custom_call.1} parent=1 // pred_fallthru
      _
    // Predicated region
    $region78: #{tpu_custom_call.1} parent=1 // pred_check
      _
    $region79: #{tpu_custom_call.1} parent=1 // pred_check_branch
      %3906 = sbr.rel (0) target = $region81
    $region80: #{tpu_custom_call.1} parent=1 // pred_region
      %3907 = dma.done [#allocation12], 128
    $region81: #{tpu_custom_call.1} parent=1 // pred_fallthru
      _
    %3908 = vsyncpa [#allocation3], 1
    %3909 = vsyncpa [#allocation6], 1
    %3910 = vsyncpa [#allocation9], 1
    %3911 = vsyncpa [#allocation4], 1
    %3912 = vsyncpa [#allocation12], 1

</llo_original>
